<compile_context>
chip_gen: v7x
topology: tpu7x:2x2x1
jax: 0.10.0
libtpu: 0.0.40
codegen_flags: <defaults>
</compile_context>

<pallas_src>
import functools

import jax
import jax.numpy as jnp
import numpy as np
from jax import lax
from jax.experimental import pallas as pl
from jax.experimental.pallas import tpu as pltpu


# ----------------------------------------------------------------------------
# small static helpers
# ----------------------------------------------------------------------------
def _nbytes(shape, dtype):
    return int(np.prod(shape)) * jnp.dtype(dtype).itemsize


def _pick_batch_block(n, per_elem, target, min_per_block=None):
    """Smallest divisor d of n with d*per_elem >= target (else n).

    If that choice leaves a single grid step and `min_per_block` is given,
    fall back to the largest divisor that keeps >=2 grid steps while still
    reaching `min_per_block` (v7x has 2 TensorCores sharing the 'parallel'
    grid axis; v5e/v6e are single-TC so this is a no-op there)."""
    divs = [d for d in range(1, n + 1) if n % d == 0]
    cand = next((d for d in divs if d * per_elem >= target), n)
    if min_per_block is not None and n // cand < 2:
        for d in reversed(divs):
            if n // d >= 2 and d * per_elem >= min_per_block:
                return d
    return cand


_WEIGHT_SINGLE_BUFFER_BYTES = 1 << 20  # only bother for >= 1 MiB weights


def _weight_spec(block_shape, index_map, nbytes):
    """Constant-index (weight) operands don't benefit from double buffering;
    request a single buffer when they are large enough to matter (the
    512-channel regime on v6e/v7x).  Falls back silently if this JAX version's
    BlockSpec has no pipeline_mode."""
    if nbytes >= _WEIGHT_SINGLE_BUFFER_BYTES:
        try:
            return pl.BlockSpec(block_shape, index_map,
                                pipeline_mode=pl.Buffered(1))
        except TypeError:
            pass
    return pl.BlockSpec(block_shape, index_map)


# ----------------------------------------------------------------------------
# Kernel A: fused LeakyReLU -> Conv4x4s2 -> ReLU -> ConvTranspose4x4s2 + BN stats
# ----------------------------------------------------------------------------
def _fused_unet_core_kernel(xs_ref, wd_ref, wu_ref, y4_ref, stats_ref, y3pad_ref,
                            *, bn, ho, wo, cin, inner, outer, cdt):
    """Batch-blocked fused core.

      xs_ref    : (bn, ho+1, wo+1, 4*cin)   zero-padded, 2x2 space-to-depth folded x
      wd_ref    : (16*cin, inner)           merged-tap down-conv weight
      wu_ref    : (4, 4*inner, outer)       per-output-parity merged up-conv weights
      y4_ref    : (bn, ho, 2, wo, 2*outer)  pre-BN ConvT output, parity-interleaved
                                            NHWC (free-reshapes to (H*W, outer))
      stats_ref : (1, 2, outer)             per-grid-step [sum, sum_sq] partials
      y3pad_ref : (bn, ho+2, wo+2, inner)   VMEM scratch: zero-padded ReLU(down conv)
    """
    m = bn * ho * wo

    # ---- LeakyReLU(0.2), once per input element (f32 on the VPU) -------------
    xs = xs_ref[...].astype(jnp.float32)
    xs = jnp.where(xs >= 0.0, xs, 0.2 * xs)                    # (bn, ho+1, wo+1, 4cin)

    # ---- down conv: k4/s2/p1 conv == 2x2 stride-1 conv over the space-to-depth
    #      folded input.  The 4 taps are concatenated on the channel axis so the
    #      whole conv is ONE (m, 16*cin) @ (16*cin, inner) matmul.
    win_d = jnp.concatenate(
        [xs[:, a:a + ho, b:b + wo, :] for a in range(2) for b in range(2)],
        axis=-1).reshape(m, 16 * cin).astype(cdt)
    y2 = jnp.dot(win_d, wd_ref[...], preferred_element_type=jnp.float32)

    # ---- ReLU + zero-pad (halo of 1) into the VMEM scratch --------------------
    # Only the 1-element halo is zeroed (interior is fully overwritten).  Do NOT
    # hoist this behind pl.when(program_id==0): scratch is per-core on v7x.
    y3pad_ref[:, 0:1, :, :] = jnp.zeros((bn, 1, wo + 2, inner), jnp.float32)
    y3pad_ref[:, ho + 1:ho + 2, :, :] = jnp.zeros((bn, 1, wo + 2, inner), jnp.float32)
    y3pad_ref[:, 1:ho + 1, 0:1, :] = jnp.zeros((bn, ho, 1, inner), jnp.float32)
    y3pad_ref[:, 1:ho + 1, wo + 1:wo + 2, :] = jnp.zeros((bn, ho, 1, inner), jnp.float32)
    y3pad_ref[:, 1:ho + 1, 1:wo + 1, :] = jnp.maximum(y2, 0.0).reshape(bn, ho, wo, inner)

    # ---- ConvTranspose2d(k4,s2,p1) decomposed by output parity ----------------
    # y4[:, 2i+po, 2j+pw, :] = sum_{d,e} y3pad[:, i+po+d, j+pw+e, :] @ W[po,pw,d,e]
    # The 4 (d,e) taps are concatenated on the channel axis -> ONE matmul per
    # parity, and each parity's result goes straight to its y4_ref slot so at
    # most one accumulator is live at a time.
    s1 = jnp.zeros((1, outer), jnp.float32)
    s2 = jnp.zeros((1, outer), jnp.float32)
    for po in range(2):
        for pw in range(2):
            win_u = jnp.concatenate(
                [y3pad_ref[:, po + d:po + d + ho, pw + e:pw + e + wo, :]
                 for d in range(2) for e in range(2)],
                axis=-1).reshape(m, 4 * inner).astype(cdt)
            acc = jnp.dot(win_u, wu_ref[2 * po + pw],
                          preferred_element_type=jnp.float32)
            # fused BatchNorm statistics (VPU/XLU filler under the MXU slot)
            s1 = s1 + jnp.sum(acc, axis=0, keepdims=True)
            s2 = s2 + jnp.sum(acc * acc, axis=0, keepdims=True)
            y4_ref[:, :, po:po + 1, :, pw * outer:(pw + 1) * outer] = (
                acc.reshape(bn, ho, 1, wo, outer).astype(y4_ref.dtype))
    stats_ref[0] = jnp.concatenate([s1, s2], axis=0)            # (2, outer)


# ----------------------------------------------------------------------------
# Kernel B: BatchNorm affine + skip concat (two layouts, chosen per regime)
# ----------------------------------------------------------------------------
def _bn_concat_nchw_kernel(x_ref, y4_ref, scale_ref, shift_ref, o_ref, *, bn, cin):
    """H*W-on-lanes regime (large spatial): output is NCHW-flat, lane-dense stores.

      x_ref : (bn, cin, HW)   y4_ref : (bn, HW, outer)
      scale_ref/shift_ref : (1, outer)   o_ref : (bn, cin+outer, HW)
    """
    o_ref[:, :cin, :] = x_ref[...].astype(o_ref.dtype)
    for b in range(bn):                                   # small static loop
        yb = y4_ref[b].astype(jnp.float32) * scale_ref[...] + shift_ref[...]
        o_ref[b, cin:, :] = jnp.transpose(yb).astype(o_ref.dtype)   # (outer, HW)


def _bn_concat_nhwc_kernel(x_ref, y4_ref, scale_ref, shift_ref, o_ref, *, bn, cin):
    """Channels-on-lanes regime (H*W < 128, e.g. ~512-channel innermost block):
    output is NHWC-flat; the cheap final NCHW permute happens in the wrapper.

      x_ref : (bn, cin, HW)   y4_ref : (bn, HW, outer)   o_ref : (bn, HW, cin+outer)
    """
    for b in range(bn):
        o_ref[b, :, :cin] = jnp.transpose(x_ref[b]).astype(o_ref.dtype)
    y = y4_ref[...].astype(jnp.float32) * scale_ref[...] + shift_ref[...]
    o_ref[:, :, cin:] = y.astype(o_ref.dtype)


# ----------------------------------------------------------------------------
# UNetBlock (innermost) forward
# ----------------------------------------------------------------------------
def unet_block_forward(x_nchw, params, *, compute_dtype=jnp.float32):
    n, cin, h, w = x_nchw.shape
    assert h % 2 == 0 and w % 2 == 0, "UNet block requires even spatial dims"
    inner = params["w_down"].shape[0]
    outer = params["w_up"].shape[1]
    ho, wo = h // 2, w // 2
    hw = h * w
    cdt = jnp.dtype(compute_dtype)
    # bf16 path also stores the A->B intermediate in bf16 (halves the dominant
    # inter-kernel HBM traffic); f32 path keeps it f32 for tight parity.
    inter_dtype = jnp.bfloat16 if cdt == jnp.dtype(jnp.bfloat16) else jnp.float32

    # -- input prep: zero-pad + 2x2 space-to-depth fold (one pass over x). ------
    # TODO(synk): fold this pad/transpose into kernel A for the larger UNet
    # levels on v5e (saves one HBM round trip over a 4x-cin-wide copy of x).
    xp = jnp.pad(x_nchw, ((0, 0), (0, 0), (1, 1), (1, 1)))
    xs = xp.reshape(n, cin, ho + 1, 2, wo + 1, 2)
    xs = jnp.transpose(xs, (0, 2, 4, 3, 5, 1)).reshape(n, ho + 1, wo + 1, 4 * cin)

    # -- weight prep (tiny), cast to the MXU feed dtype in the wrapper ----------
    # down-conv: (inner, cin, 4, 4) -> merged (16*cin, inner),
    #   K index = (2a+b)*4*cin + sr*2*cin + sc*cin + c (matches in-kernel concat).
    wd = jnp.transpose(params["w_down"], (2, 3, 1, 0))          # (kh, kw, cin, inner)
    wd = wd.reshape(2, 2, 2, 2, cin, inner)                     # (a, sr, b, sc, cin, inner)
    wd = jnp.transpose(wd, (0, 2, 1, 3, 4, 5)).reshape(16 * cin, inner).astype(cdt)
    # up-conv: (inner, outer, 4, 4) -> (parity=2*po+pw, K=4*inner, outer),
    #   K index = (2d+e)*inner + ic, tap = w_up[:, :, 3-po-2d, 3-pw-2e].
    wut = jnp.transpose(params["w_up"], (2, 3, 0, 1))           # (kh, kw, inner, outer)
    taps = []
    for po in range(2):
        for pw in range(2):
            for d in range(2):
                for e in range(2):
                    taps.append(wut[3 - po - 2 * d, 3 - pw - 2 * e])
    wu = jnp.stack(taps).reshape(4, 4 * inner, outer).astype(cdt)

    # -- kernel A: batch-blocked fused core -------------------------------------
    bn = _pick_batch_block(n, ho * wo, target=256, min_per_block=128)
    num_blocks = n // bn
    est_a = (2 * _nbytes((bn, ho + 1, wo + 1, 4 * cin), x_nchw.dtype)
             + 2 * _nbytes((16 * cin, inner), cdt)
             + 2 * _nbytes((4, 4 * inner, outer), cdt)
             + 2 * _nbytes((bn, ho, 2, wo, 2 * outer), inter_dtype)
             + 2 * _nbytes((1, 2, outer), jnp.float32)
             + _nbytes((bn, ho + 2, wo + 2, inner), jnp.float32))
    vmem_a = int(min(64 << 20, max(32 << 20, 2 * est_a)))

    kernel_a = functools.partial(
        _fused_unet_core_kernel, bn=bn, ho=ho, wo=wo, cin=cin, inner=inner,
        outer=outer, cdt=cdt)
    y4f, stats = pl.pallas_call(
        kernel_a,
        out_shape=(jax.ShapeDtypeStruct((n, ho, 2, wo, 2 * outer), inter_dtype),
                   jax.ShapeDtypeStruct((num_blocks, 2, outer), jnp.float32)),
        grid_spec=pltpu.PrefetchScalarGridSpec(
            num_scalar_prefetch=0,
            grid=(num_blocks,),
            in_specs=[
                pl.BlockSpec((bn, ho + 1, wo + 1, 4 * cin), lambda i: (i, 0, 0, 0)),
                _weight_spec((16 * cin, inner), lambda i: (0, 0),
                             _nbytes((16 * cin, inner), cdt)),
                _weight_spec((4, 4 * inner, outer), lambda i: (0, 0, 0),
                             _nbytes((4, 4 * inner, outer), cdt)),
            ],
            out_specs=(
                pl.BlockSpec((bn, ho, 2, wo, 2 * outer), lambda i: (i, 0, 0, 0, 0)),
                pl.BlockSpec((1, 2, outer), lambda i: (i, 0, 0)),
            ),
            scratch_shapes=[pltpu.VMEM((bn, ho + 2, wo + 2, inner), jnp.float32)]),
        compiler_params=pltpu.CompilerParams(
            dimension_semantics=("parallel",),
            vmem_limit_bytes=vmem_a),
    )(xs, wd, wu)

    # -- BatchNorm batch statistics (training mode: biased var, eps=1e-5). ------
    # Per-grid-step partials are reduced here (tiny (num_blocks,2,outer) sum)
    # so the kernel-A grid stays 'parallel'.
    # TODO(synk): single-pass E[x^2]-E[x]^2 in f32; switch to a shifted/Welford
    # scheme if activations ever have |mean| >> std.
    tot = jnp.sum(stats, axis=0)                                # (2, outer)
    count = jnp.float32(n * hw)
    mean = tot[0] / count
    var = tot[1] / count - mean * mean
    inv = lax.rsqrt(var + 1e-5)
    scale = (params["gamma"] * inv)[None, :]                    # (1, outer) f32
    shift = (params["beta"] - mean * params["gamma"] * inv)[None, :]

    # -- kernel B: BN affine + skip concat, layout chosen per regime ------------
    y4_flat = y4f.reshape(n, hw, outer)     # free reshape: parity-interleaved -> NHWC-flat
    x_flat = x_nchw.reshape(n, cin, hw)     # free reshape
    ctot = cin + outer
    per_elem_bytes = (_nbytes((cin, hw), x_nchw.dtype)
                      + _nbytes((hw, outer), inter_dtype)
                      + _nbytes((ctot, hw), x_nchw.dtype))
    bn2 = _pick_batch_block(n, per_elem_bytes, target=1 << 20)
    vmem_b = int(min(64 << 20, max(32 << 20, 4 * bn2 * per_elem_bytes)))
    hw_on_lanes = (hw >= 128) or (hw >= ctot)   # lane-dense store axis per regime
    common = dict(
        grid=(n // bn2,),
        in_specs=[
            pl.BlockSpec((bn2, cin, hw), lambda i: (i, 0, 0)),
            pl.BlockSpec((bn2, hw, outer), lambda i: (i, 0, 0)),
            pl.BlockSpec((1, outer), lambda i: (0, 0)),
            pl.BlockSpec((1, outer), lambda i: (0, 0)),
        ])
    cparams = pltpu.CompilerParams(dimension_semantics=("parallel",),
                                   vmem_limit_bytes=vmem_b)

    if hw_on_lanes:
        out_flat = pl.pallas_call(
            functools.partial(_bn_concat_nchw_kernel, bn=bn2, cin=cin),
            out_shape=jax.ShapeDtypeStruct((n, ctot, hw), x_nchw.dtype),
            grid_spec=pltpu.PrefetchScalarGridSpec(
                num_scalar_prefetch=0,
                out_specs=pl.BlockSpec((bn2, ctot, hw), lambda i: (i, 0, 0)),
                **common),
            compiler_params=cparams,
        )(x_flat, y4_flat, scale, shift)
        return out_flat.reshape(n, ctot, h, w)                  # free reshape
    else:
        out_nhwc = pl.pallas_call(
            functools.partial(_bn_concat_nhwc_kernel, bn=bn2, cin=cin),
            out_shape=jax.ShapeDtypeStruct((n, hw, ctot), x_nchw.dtype),
            grid_spec=pltpu.PrefetchScalarGridSpec(
                num_scalar_prefetch=0,
                out_specs=pl.BlockSpec((bn2, hw, ctot), lambda i: (i, 0, 0)),
                **common),
            compiler_params=cparams,
        )(x_flat, y4_flat, scale, shift)
        # channels were on lanes in-kernel; cheap XLA permute to NCHW outside.
        return jnp.transpose(out_nhwc, (0, 2, 1)).reshape(n, ctot, h, w)


# ----------------------------------------------------------------------------
# Pure-JAX reference (sanity check)
# ----------------------------------------------------------------------------
def _ref_forward(x, params):
    hx = jnp.where(x >= 0, x, 0.2 * x)
    y2 = lax.conv_general_dilated(
        hx, params["w_down"], (2, 2), ((1, 1), (1, 1)),
        dimension_numbers=("NCHW", "OIHW", "NCHW"),
        precision=lax.Precision.HIGHEST)
    y3 = jnp.maximum(y2, 0.0)
    w_eq = jnp.transpose(jnp.flip(params["w_up"], axis=(2, 3)), (1, 0, 2, 3))
    y4 = lax.conv_general_dilated(
        y3, w_eq, (1, 1), ((2, 2), (2, 2)), lhs_dilation=(2, 2),
        dimension_numbers=("NCHW", "OIHW", "NCHW"),
        precision=lax.Precision.HIGHEST)
    mean = jnp.mean(y4, axis=(0, 2, 3), keepdims=True)
    var = jnp.mean((y4 - mean) ** 2, axis=(0, 2, 3), keepdims=True)
    y5 = (y4 - mean) * lax.rsqrt(var + 1e-5)
    y5 = y5 * params["gamma"][None, :, None, None] + params["beta"][None, :, None, None]
    return jnp.concatenate([x, y5], axis=1)


def init_params(key, input_nc, inner_nc, outer_nc):
    k1, k2, k3, k4 = jax.random.split(key, 4)
    return dict(
        w_down=0.02 * jax.random.normal(k1, (inner_nc, input_nc, 4, 4), jnp.float32),
        w_up=0.02 * jax.random.normal(k2, (inner_nc, outer_nc, 4, 4), jnp.float32),
        gamma=1.0 + 0.1 * jax.random.normal(k3, (outer_nc,), jnp.float32),
        beta=0.1 * jax.random.normal(k4, (outer_nc,), jnp.float32),
    )


if __name__ == "__main__":
    # innermost UNetBlock: outer_nc = input_nc = 4, inner_nc = 8
    outer_nc, inner_nc = 4, 8
    input_nc = outer_nc

    key = jax.random.PRNGKey(0)
    kx, kp, kx2 = jax.random.split(key, 3)
    x = jax.random.normal(kx, (2, input_nc, 16, 16), jnp.float32)
    params = init_params(kp, input_nc, inner_nc, outer_nc)

    ref = jax.block_until_ready(_ref_forward(x, params))

    # f32 MXU path (default): tight parity with the f32 reference.
    out = jax.block_until_ready(jax.jit(unet_block_forward)(x, params))
    assert out.shape == (2, input_nc + outer_nc, 16, 16), out.shape
    np.testing.assert_allclose(np.asarray(out), np.asarray(ref),
                               atol=2e-3, rtol=2e-3)

    # bf16 MXU-feed + bf16 A->B intermediate (v6e/v7x regime): same kernels,
    # weights cast in the wrapper, f32 accumulation/elementwise/BN stats.
    out_bf16 = jax.block_until_ready(
        jax.jit(functools.partial(unet_block_forward,
                                  compute_dtype=jnp.bfloat16))(x, params))
    np.testing.assert_allclose(np.asarray(out_bf16), np.asarray(ref),
                               atol=1e-1, rtol=1e-1)

    # small-spatial input (H*W < 128): exercises the channels-on-lanes output
    # layout of the BN/concat kernel (the realistic innermost-block regime).
    x_small = jax.random.normal(kx2, (2, input_nc, 8, 8), jnp.float32)
    ref_s = jax.block_until_ready(_ref_forward(x_small, params))
    out_s = jax.block_until_ready(jax.jit(unet_block_forward)(x_small, params))
    np.testing.assert_allclose(np.asarray(out_s), np.asarray(ref_s),
                               atol=2e-3, rtol=2e-3)

    print("KERNEL_OK")
</pallas_src>

<mosaic_0001>
module attributes {stable_mosaic.version = 11 : i64} {
  func.func @_fused_unet_core_kernel(%arg0: i32, %arg1: memref<2x9x9x16xf32, #tpu.memory_space<vmem>>, %arg2: memref<64x8xf32, #tpu.memory_space<vmem>>, %arg3: memref<4x32x4xf32, #tpu.memory_space<vmem>>, %arg4: memref<2x8x2x8x8xf32, #tpu.memory_space<vmem>>, %arg5: memref<1x2x4xf32, #tpu.memory_space<vmem>>, %arg6: memref<2x10x10x8xf32, #tpu.memory_space<vmem>>) attributes {dimension_semantics = [#tpu.dimension_semantics<parallel>], iteration_bounds = array<i64: 1>, scalar_prefetch = 0 : i64, scratch_operands = 1 : i64, tpu.core_type = #tpu.core_type<tc>, window_params = [{transform_indices = @transform_0, window_bounds = array<i64: 2, 9, 9, 16>}, {pipeline_mode = #tpu.pipeline_mode<synchronous>, transform_indices = @transform_1, window_bounds = array<i64: 64, 8>}, {pipeline_mode = #tpu.pipeline_mode<synchronous>, transform_indices = @transform_2, window_bounds = array<i64: 4, 32, 4>}, {transform_indices = @transform_3, window_bounds = array<i64: 2, 8, 2, 8, 8>}, {transform_indices = @transform_4, window_bounds = array<i64: 1, 2, 4>}]} {
    %c0 = arith.constant 0 : index
    %c0_0 = arith.constant 0 : index
    %c0_1 = arith.constant 0 : index
    %c0_2 = arith.constant 0 : index
    %0 = vector.load %arg1[%c0, %c0_0, %c0_1, %c0_2] : memref<2x9x9x16xf32, #tpu.memory_space<vmem>>, vector<2x9x9x16xf32>
    %cst = arith.constant 0.000000e+00 : f32
    %1 = vector.broadcast %cst : f32 to vector<2x9x9x16xf32>
    %2 = arith.cmpf oge, %0, %1 : vector<2x9x9x16xf32>
    %cst_3 = arith.constant 2.000000e-01 : f32
    %3 = vector.broadcast %cst_3 : f32 to vector<2x9x9x16xf32>
    %4 = arith.mulf %3, %0 : vector<2x9x9x16xf32>
    %5 = arith.select %2, %0, %4 : vector<2x9x9x16xi1>, vector<2x9x9x16xf32>
    %6 = vector.extract_strided_slice %5 {offsets = [0, 0, 0, 0], sizes = [2, 8, 8, 16], strides = [1, 1, 1, 1]} : vector<2x9x9x16xf32> to vector<2x8x8x16xf32>
    %7 = vector.extract_strided_slice %5 {offsets = [0, 0, 1, 0], sizes = [2, 8, 8, 16], strides = [1, 1, 1, 1]} : vector<2x9x9x16xf32> to vector<2x8x8x16xf32>
    %8 = vector.extract_strided_slice %5 {offsets = [0, 1, 0, 0], sizes = [2, 8, 8, 16], strides = [1, 1, 1, 1]} : vector<2x9x9x16xf32> to vector<2x8x8x16xf32>
    %9 = vector.extract_strided_slice %5 {offsets = [0, 1, 1, 0], sizes = [2, 8, 8, 16], strides = [1, 1, 1, 1]} : vector<2x9x9x16xf32> to vector<2x8x8x16xf32>
    %10 = tpu.concatenate %6, %7, %8, %9 in 3 : vector<2x8x8x16xf32>, vector<2x8x8x16xf32>, vector<2x8x8x16xf32>, vector<2x8x8x16xf32> -> vector<2x8x8x64xf32>
    %11 = vector.shape_cast %10 : vector<2x8x8x64xf32> to vector<128x64xf32>
    %c0_4 = arith.constant 0 : index
    %c0_5 = arith.constant 0 : index
    %12 = vector.load %arg2[%c0_4, %c0_5] : memref<64x8xf32, #tpu.memory_space<vmem>>, vector<64x8xf32>
    %cst_6 = arith.constant dense<0.000000e+00> : vector<128x8xf32>
    %13 = tpu.matmul %11, %12, %cst_6 {dimension_numbers = #tpu.dot_dimension_numbers<[1], [0], [0], [1], [0, 0, 1, 1], [], []>} : vector<128x64xf32>, vector<64x8xf32>, vector<128x8xf32> -> vector<128x8xf32>
    %cst_7 = arith.constant 0.000000e+00 : f32
    %14 = vector.broadcast %cst_7 : f32 to vector<2x1x10x8xf32>
    %c0_8 = arith.constant 0 : index
    %c0_9 = arith.constant 0 : index
    %c0_10 = arith.constant 0 : index
    %c0_11 = arith.constant 0 : index
    %15 = vector.load %arg6[%c0_8, %c0_9, %c0_10, %c0_11] : memref<2x10x10x8xf32, #tpu.memory_space<vmem>>, vector<2x1x10x8xf32>
    tpu.vector_store %arg6[%c0_8, %c0_9, %c0_10, %c0_11], %14 {strides = array<i32>} : memref<2x10x10x8xf32, #tpu.memory_space<vmem>>, vector<2x1x10x8xf32>,
    %cst_12 = arith.constant 0.000000e+00 : f32
    %16 = vector.broadcast %cst_12 : f32 to vector<2x1x10x8xf32>
    %c0_13 = arith.constant 0 : index
    %c9 = arith.constant 9 : index
    %c0_14 = arith.constant 0 : index
    %c0_15 = arith.constant 0 : index
    %17 = vector.load %arg6[%c0_13, %c9, %c0_14, %c0_15] : memref<2x10x10x8xf32, #tpu.memory_space<vmem>>, vector<2x1x10x8xf32>
    tpu.vector_store %arg6[%c0_13, %c9, %c0_14, %c0_15], %16 {strides = array<i32>} : memref<2x10x10x8xf32, #tpu.memory_space<vmem>>, vector<2x1x10x8xf32>,
    %cst_16 = arith.constant 0.000000e+00 : f32
    %18 = vector.broadcast %cst_16 : f32 to vector<2x8x1x8xf32>
    %c0_17 = arith.constant 0 : index
    %c1 = arith.constant 1 : index
    %c0_18 = arith.constant 0 : index
    %c0_19 = arith.constant 0 : index
    %19 = vector.load %arg6[%c0_17, %c1, %c0_18, %c0_19] : memref<2x10x10x8xf32, #tpu.memory_space<vmem>>, vector<2x8x1x8xf32>
    tpu.vector_store %arg6[%c0_17, %c1, %c0_18, %c0_19], %18 {strides = array<i32>} : memref<2x10x10x8xf32, #tpu.memory_space<vmem>>, vector<2x8x1x8xf32>,
    %cst_20 = arith.constant 0.000000e+00 : f32
    %20 = vector.broadcast %cst_20 : f32 to vector<2x8x1x8xf32>
    %c0_21 = arith.constant 0 : index
    %c1_22 = arith.constant 1 : index
    %c9_23 = arith.constant 9 : index
    %c0_24 = arith.constant 0 : index
    %21 = vector.load %arg6[%c0_21, %c1_22, %c9_23, %c0_24] : memref<2x10x10x8xf32, #tpu.memory_space<vmem>>, vector<2x8x1x8xf32>
    tpu.vector_store %arg6[%c0_21, %c1_22, %c9_23, %c0_24], %20 {strides = array<i32>} : memref<2x10x10x8xf32, #tpu.memory_space<vmem>>, vector<2x8x1x8xf32>,
    %cst_25 = arith.constant 0.000000e+00 : f32
    %22 = vector.broadcast %cst_25 : f32 to vector<128x8xf32>
    %23 = arith.maximumf %13, %22 : vector<128x8xf32>
    %24 = vector.shape_cast %23 : vector<128x8xf32> to vector<2x8x8x8xf32>
    %c0_26 = arith.constant 0 : index
    %c1_27 = arith.constant 1 : index
    %c1_28 = arith.constant 1 : index
    %c0_29 = arith.constant 0 : index
    %25 = vector.load %arg6[%c0_26, %c1_27, %c1_28, %c0_29] : memref<2x10x10x8xf32, #tpu.memory_space<vmem>>, vector<2x8x8x8xf32>
    tpu.vector_store %arg6[%c0_26, %c1_27, %c1_28, %c0_29], %24 {strides = array<i32>} : memref<2x10x10x8xf32, #tpu.memory_space<vmem>>, vector<2x8x8x8xf32>,
    %cst_30 = arith.constant 0.000000e+00 : f32
    %26 = vector.broadcast %cst_30 : f32 to vector<1x4xf32>
    %cst_31 = arith.constant 0.000000e+00 : f32
    %27 = vector.broadcast %cst_31 : f32 to vector<1x4xf32>
    %c0_32 = arith.constant 0 : index
    %c0_33 = arith.constant 0 : index
    %c0_34 = arith.constant 0 : index
    %c0_35 = arith.constant 0 : index
    %28 = vector.load %arg6[%c0_32, %c0_33, %c0_34, %c0_35] : memref<2x10x10x8xf32, #tpu.memory_space<vmem>>, vector<2x8x8x8xf32>
    %c0_36 = arith.constant 0 : index
    %c0_37 = arith.constant 0 : index
    %c1_38 = arith.constant 1 : index
    %c0_39 = arith.constant 0 : index
    %29 = vector.load %arg6[%c0_36, %c0_37, %c1_38, %c0_39] : memref<2x10x10x8xf32, #tpu.memory_space<vmem>>, vector<2x8x8x8xf32>
    %c0_40 = arith.constant 0 : index
    %c1_41 = arith.constant 1 : index
    %c0_42 = arith.constant 0 : index
    %c0_43 = arith.constant 0 : index
    %30 = vector.load %arg6[%c0_40, %c1_41, %c0_42, %c0_43] : memref<2x10x10x8xf32, #tpu.memory_space<vmem>>, vector<2x8x8x8xf32>
    %c0_44 = arith.constant 0 : index
    %c1_45 = arith.constant 1 : index
    %c1_46 = arith.constant 1 : index
    %c0_47 = arith.constant 0 : index
    %31 = vector.load %arg6[%c0_44, %c1_45, %c1_46, %c0_47] : memref<2x10x10x8xf32, #tpu.memory_space<vmem>>, vector<2x8x8x8xf32>
    %32 = tpu.concatenate %28, %29, %30, %31 in 3 : vector<2x8x8x8xf32>, vector<2x8x8x8xf32>, vector<2x8x8x8xf32>, vector<2x8x8x8xf32> -> vector<2x8x8x32xf32>
    %33 = vector.shape_cast %32 : vector<2x8x8x32xf32> to vector<128x32xf32>
    %c0_48 = arith.constant 0 : index
    %c0_49 = arith.constant 0 : index
    %c0_50 = arith.constant 0 : index
    %34 = vector.load %arg3[%c0_48, %c0_49, %c0_50] : memref<4x32x4xf32, #tpu.memory_space<vmem>>, vector<1x32x4xf32>
    %35 = vector.shape_cast %34 : vector<1x32x4xf32> to vector<32x4xf32>
    %cst_51 = arith.constant dense<0.000000e+00> : vector<128x4xf32>
    %36 = tpu.matmul %33, %35, %cst_51 {dimension_numbers = #tpu.dot_dimension_numbers<[1], [0], [0], [1], [0, 0, 1, 1], [], []>} : vector<128x32xf32>, vector<32x4xf32>, vector<128x4xf32> -> vector<128x4xf32>
    %cst_52 = arith.constant dense<0.000000e+00> : vector<4xf32>
    %37 = vector.multi_reduction <add>, %36, %cst_52 [0] : vector<128x4xf32> to vector<4xf32>
    %38 = vector.shape_cast %37 : vector<4xf32> to vector<1x4xf32>
    %39 = arith.addf %26, %38 : vector<1x4xf32>
    %40 = arith.mulf %36, %36 : vector<128x4xf32>
    %cst_53 = arith.constant dense<0.000000e+00> : vector<4xf32>
    %41 = vector.multi_reduction <add>, %40, %cst_53 [0] : vector<128x4xf32> to vector<4xf32>
    %42 = vector.shape_cast %41 : vector<4xf32> to vector<1x4xf32>
    %43 = arith.addf %27, %42 : vector<1x4xf32>
    %44 = vector.shape_cast %36 : vector<128x4xf32> to vector<2x8x1x8x4xf32>
    %c0_54 = arith.constant 0 : index
    %c0_55 = arith.constant 0 : index
    %c0_56 = arith.constant 0 : index
    %c0_57 = arith.constant 0 : index
    %c0_58 = arith.constant 0 : index
    %45 = vector.load %arg4[%c0_54, %c0_55, %c0_56, %c0_57, %c0_58] : memref<2x8x2x8x8xf32, #tpu.memory_space<vmem>>, vector<2x8x1x8x4xf32>
    tpu.vector_store %arg4[%c0_54, %c0_55, %c0_56, %c0_57, %c0_58], %44 {strides = array<i32>} : memref<2x8x2x8x8xf32, #tpu.memory_space<vmem>>, vector<2x8x1x8x4xf32>,
    %c0_59 = arith.constant 0 : index
    %c0_60 = arith.constant 0 : index
    %c1_61 = arith.constant 1 : index
    %c0_62 = arith.constant 0 : index
    %46 = vector.load %arg6[%c0_59, %c0_60, %c1_61, %c0_62] : memref<2x10x10x8xf32, #tpu.memory_space<vmem>>, vector<2x8x8x8xf32>
    %c0_63 = arith.constant 0 : index
    %c0_64 = arith.constant 0 : index
    %c2 = arith.constant 2 : index
    %c0_65 = arith.constant 0 : index
    %47 = vector.load %arg6[%c0_63, %c0_64, %c2, %c0_65] : memref<2x10x10x8xf32, #tpu.memory_space<vmem>>, vector<2x8x8x8xf32>
    %c0_66 = arith.constant 0 : index
    %c1_67 = arith.constant 1 : index
    %c1_68 = arith.constant 1 : index
    %c0_69 = arith.constant 0 : index
    %48 = vector.load %arg6[%c0_66, %c1_67, %c1_68, %c0_69] : memref<2x10x10x8xf32, #tpu.memory_space<vmem>>, vector<2x8x8x8xf32>
    %c0_70 = arith.constant 0 : index
    %c1_71 = arith.constant 1 : index
    %c2_72 = arith.constant 2 : index
    %c0_73 = arith.constant 0 : index
    %49 = vector.load %arg6[%c0_70, %c1_71, %c2_72, %c0_73] : memref<2x10x10x8xf32, #tpu.memory_space<vmem>>, vector<2x8x8x8xf32>
    %50 = tpu.concatenate %46, %47, %48, %49 in 3 : vector<2x8x8x8xf32>, vector<2x8x8x8xf32>, vector<2x8x8x8xf32>, vector<2x8x8x8xf32> -> vector<2x8x8x32xf32>
    %51 = vector.shape_cast %50 : vector<2x8x8x32xf32> to vector<128x32xf32>
    %c1_74 = arith.constant 1 : index
    %c0_75 = arith.constant 0 : index
    %c0_76 = arith.constant 0 : index
    %52 = vector.load %arg3[%c1_74, %c0_75, %c0_76] : memref<4x32x4xf32, #tpu.memory_space<vmem>>, vector<1x32x4xf32>
    %53 = vector.shape_cast %52 : vector<1x32x4xf32> to vector<32x4xf32>
    %cst_77 = arith.constant dense<0.000000e+00> : vector<128x4xf32>
    %54 = tpu.matmul %51, %53, %cst_77 {dimension_numbers = #tpu.dot_dimension_numbers<[1], [0], [0], [1], [0, 0, 1, 1], [], []>} : vector<128x32xf32>, vector<32x4xf32>, vector<128x4xf32> -> vector<128x4xf32>
    %cst_78 = arith.constant dense<0.000000e+00> : vector<4xf32>
    %55 = vector.multi_reduction <add>, %54, %cst_78 [0] : vector<128x4xf32> to vector<4xf32>
    %56 = vector.shape_cast %55 : vector<4xf32> to vector<1x4xf32>
    %57 = arith.addf %39, %56 : vector<1x4xf32>
    %58 = arith.mulf %54, %54 : vector<128x4xf32>
    %cst_79 = arith.constant dense<0.000000e+00> : vector<4xf32>
    %59 = vector.multi_reduction <add>, %58, %cst_79 [0] : vector<128x4xf32> to vector<4xf32>
    %60 = vector.shape_cast %59 : vector<4xf32> to vector<1x4xf32>
    %61 = arith.addf %43, %60 : vector<1x4xf32>
    %62 = vector.shape_cast %54 : vector<128x4xf32> to vector<2x8x1x8x4xf32>
    %c0_80 = arith.constant 0 : index
    %c0_81 = arith.constant 0 : index
    %c0_82 = arith.constant 0 : index
    %c0_83 = arith.constant 0 : index
    %c4 = arith.constant 4 : index
    %63 = vector.load %arg4[%c0_80, %c0_81, %c0_82, %c0_83, %c4] : memref<2x8x2x8x8xf32, #tpu.memory_space<vmem>>, vector<2x8x1x8x4xf32>
    tpu.vector_store %arg4[%c0_80, %c0_81, %c0_82, %c0_83, %c4], %62 {strides = array<i32>} : memref<2x8x2x8x8xf32, #tpu.memory_space<vmem>>, vector<2x8x1x8x4xf32>,
    %c0_84 = arith.constant 0 : index
    %c1_85 = arith.constant 1 : index
    %c0_86 = arith.constant 0 : index
    %c0_87 = arith.constant 0 : index
    %64 = vector.load %arg6[%c0_84, %c1_85, %c0_86, %c0_87] : memref<2x10x10x8xf32, #tpu.memory_space<vmem>>, vector<2x8x8x8xf32>
    %c0_88 = arith.constant 0 : index
    %c1_89 = arith.constant 1 : index
    %c1_90 = arith.constant 1 : index
    %c0_91 = arith.constant 0 : index
    %65 = vector.load %arg6[%c0_88, %c1_89, %c1_90, %c0_91] : memref<2x10x10x8xf32, #tpu.memory_space<vmem>>, vector<2x8x8x8xf32>
    %c0_92 = arith.constant 0 : index
    %c2_93 = arith.constant 2 : index
    %c0_94 = arith.constant 0 : index
    %c0_95 = arith.constant 0 : index
    %66 = vector.load %arg6[%c0_92, %c2_93, %c0_94, %c0_95] : memref<2x10x10x8xf32, #tpu.memory_space<vmem>>, vector<2x8x8x8xf32>
    %c0_96 = arith.constant 0 : index
    %c2_97 = arith.constant 2 : index
    %c1_98 = arith.constant 1 : index
    %c0_99 = arith.constant 0 : index
    %67 = vector.load %arg6[%c0_96, %c2_97, %c1_98, %c0_99] : memref<2x10x10x8xf32, #tpu.memory_space<vmem>>, vector<2x8x8x8xf32>
    %68 = tpu.concatenate %64, %65, %66, %67 in 3 : vector<2x8x8x8xf32>, vector<2x8x8x8xf32>, vector<2x8x8x8xf32>, vector<2x8x8x8xf32> -> vector<2x8x8x32xf32>
    %69 = vector.shape_cast %68 : vector<2x8x8x32xf32> to vector<128x32xf32>
    %c2_100 = arith.constant 2 : index
    %c0_101 = arith.constant 0 : index
    %c0_102 = arith.constant 0 : index
    %70 = vector.load %arg3[%c2_100, %c0_101, %c0_102] : memref<4x32x4xf32, #tpu.memory_space<vmem>>, vector<1x32x4xf32>
    %71 = vector.shape_cast %70 : vector<1x32x4xf32> to vector<32x4xf32>
    %cst_103 = arith.constant dense<0.000000e+00> : vector<128x4xf32>
    %72 = tpu.matmul %69, %71, %cst_103 {dimension_numbers = #tpu.dot_dimension_numbers<[1], [0], [0], [1], [0, 0, 1, 1], [], []>} : vector<128x32xf32>, vector<32x4xf32>, vector<128x4xf32> -> vector<128x4xf32>
    %cst_104 = arith.constant dense<0.000000e+00> : vector<4xf32>
    %73 = vector.multi_reduction <add>, %72, %cst_104 [0] : vector<128x4xf32> to vector<4xf32>
    %74 = vector.shape_cast %73 : vector<4xf32> to vector<1x4xf32>
    %75 = arith.addf %57, %74 : vector<1x4xf32>
    %76 = arith.mulf %72, %72 : vector<128x4xf32>
    %cst_105 = arith.constant dense<0.000000e+00> : vector<4xf32>
    %77 = vector.multi_reduction <add>, %76, %cst_105 [0] : vector<128x4xf32> to vector<4xf32>
    %78 = vector.shape_cast %77 : vector<4xf32> to vector<1x4xf32>
    %79 = arith.addf %61, %78 : vector<1x4xf32>
    %80 = vector.shape_cast %72 : vector<128x4xf32> to vector<2x8x1x8x4xf32>
    %c0_106 = arith.constant 0 : index
    %c0_107 = arith.constant 0 : index
    %c1_108 = arith.constant 1 : index
    %c0_109 = arith.constant 0 : index
    %c0_110 = arith.constant 0 : index
    %81 = vector.load %arg4[%c0_106, %c0_107, %c1_108, %c0_109, %c0_110] : memref<2x8x2x8x8xf32, #tpu.memory_space<vmem>>, vector<2x8x1x8x4xf32>
    tpu.vector_store %arg4[%c0_106, %c0_107, %c1_108, %c0_109, %c0_110], %80 {strides = array<i32>} : memref<2x8x2x8x8xf32, #tpu.memory_space<vmem>>, vector<2x8x1x8x4xf32>,
    %c0_111 = arith.constant 0 : index
    %c1_112 = arith.constant 1 : index
    %c1_113 = arith.constant 1 : index
    %c0_114 = arith.constant 0 : index
    %82 = vector.load %arg6[%c0_111, %c1_112, %c1_113, %c0_114] : memref<2x10x10x8xf32, #tpu.memory_space<vmem>>, vector<2x8x8x8xf32>
    %c0_115 = arith.constant 0 : index
    %c1_116 = arith.constant 1 : index
    %c2_117 = arith.constant 2 : index
    %c0_118 = arith.constant 0 : index
    %83 = vector.load %arg6[%c0_115, %c1_116, %c2_117, %c0_118] : memref<2x10x10x8xf32, #tpu.memory_space<vmem>>, vector<2x8x8x8xf32>
    %c0_119 = arith.constant 0 : index
    %c2_120 = arith.constant 2 : index
    %c1_121 = arith.constant 1 : index
    %c0_122 = arith.constant 0 : index
    %84 = vector.load %arg6[%c0_119, %c2_120, %c1_121, %c0_122] : memref<2x10x10x8xf32, #tpu.memory_space<vmem>>, vector<2x8x8x8xf32>
    %c0_123 = arith.constant 0 : index
    %c2_124 = arith.constant 2 : index
    %c2_125 = arith.constant 2 : index
    %c0_126 = arith.constant 0 : index
    %85 = vector.load %arg6[%c0_123, %c2_124, %c2_125, %c0_126] : memref<2x10x10x8xf32, #tpu.memory_space<vmem>>, vector<2x8x8x8xf32>
    %86 = tpu.concatenate %82, %83, %84, %85 in 3 : vector<2x8x8x8xf32>, vector<2x8x8x8xf32>, vector<2x8x8x8xf32>, vector<2x8x8x8xf32> -> vector<2x8x8x32xf32>
    %87 = vector.shape_cast %86 : vector<2x8x8x32xf32> to vector<128x32xf32>
    %c3 = arith.constant 3 : index
    %c0_127 = arith.constant 0 : index
    %c0_128 = arith.constant 0 : index
    %88 = vector.load %arg3[%c3, %c0_127, %c0_128] : memref<4x32x4xf32, #tpu.memory_space<vmem>>, vector<1x32x4xf32>
    %89 = vector.shape_cast %88 : vector<1x32x4xf32> to vector<32x4xf32>
    %cst_129 = arith.constant dense<0.000000e+00> : vector<128x4xf32>
    %90 = tpu.matmul %87, %89, %cst_129 {dimension_numbers = #tpu.dot_dimension_numbers<[1], [0], [0], [1], [0, 0, 1, 1], [], []>} : vector<128x32xf32>, vector<32x4xf32>, vector<128x4xf32> -> vector<128x4xf32>
    %cst_130 = arith.constant dense<0.000000e+00> : vector<4xf32>
    %91 = vector.multi_reduction <add>, %90, %cst_130 [0] : vector<128x4xf32> to vector<4xf32>
    %92 = vector.shape_cast %91 : vector<4xf32> to vector<1x4xf32>
    %93 = arith.addf %75, %92 : vector<1x4xf32>
    %94 = arith.mulf %90, %90 : vector<128x4xf32>
    %cst_131 = arith.constant dense<0.000000e+00> : vector<4xf32>
    %95 = vector.multi_reduction <add>, %94, %cst_131 [0] : vector<128x4xf32> to vector<4xf32>
    %96 = vector.shape_cast %95 : vector<4xf32> to vector<1x4xf32>
    %97 = arith.addf %79, %96 : vector<1x4xf32>
    %98 = vector.shape_cast %90 : vector<128x4xf32> to vector<2x8x1x8x4xf32>
    %c0_132 = arith.constant 0 : index
    %c0_133 = arith.constant 0 : index
    %c1_134 = arith.constant 1 : index
    %c0_135 = arith.constant 0 : index
    %c4_136 = arith.constant 4 : index
    %99 = vector.load %arg4[%c0_132, %c0_133, %c1_134, %c0_135, %c4_136] : memref<2x8x2x8x8xf32, #tpu.memory_space<vmem>>, vector<2x8x1x8x4xf32>
    tpu.vector_store %arg4[%c0_132, %c0_133, %c1_134, %c0_135, %c4_136], %98 {strides = array<i32>} : memref<2x8x2x8x8xf32, #tpu.memory_space<vmem>>, vector<2x8x1x8x4xf32>,
    %100 = tpu.concatenate %93, %97 in 0 : vector<1x4xf32>, vector<1x4xf32> -> vector<2x4xf32>
    %c0_137 = arith.constant 0 : index
    %c0_138 = arith.constant 0 : index
    %c0_139 = arith.constant 0 : index
    %101 = vector.load %arg5[%c0_137, %c0_138, %c0_139] : memref<1x2x4xf32, #tpu.memory_space<vmem>>, vector<1x2x4xf32>
    %102 = vector.shape_cast %101 : vector<1x2x4xf32> to vector<2x4xf32>
    %103 = vector.shape_cast %100 : vector<2x4xf32> to vector<1x2x4xf32>
    tpu.vector_store %arg5[%c0_137, %c0_138, %c0_139], %103 {strides = array<i32>} : memref<1x2x4xf32, #tpu.memory_space<vmem>>, vector<1x2x4xf32>,
    return
  }
  func.func @transform_0(%arg0: i32) -> (i32, i32, i32, i32) {
    %c0_i32 = arith.constant 0 : i32
    %c0_i32_0 = arith.constant 0 : i32
    %c0_i32_1 = arith.constant 0 : i32
    %c0_i32_2 = arith.constant 0 : i32
    return %arg0, %c0_i32, %c0_i32_0, %c0_i32_1 : i32, i32, i32, i32
  }
  func.func @transform_1(%arg0: i32) -> (i32, i32) {
    %c0_i32 = arith.constant 0 : i32
    %c0_i32_0 = arith.constant 0 : i32
    %c0_i32_1 = arith.constant 0 : i32
    return %c0_i32, %c0_i32_0 : i32, i32
  }
  func.func @transform_2(%arg0: i32) -> (i32, i32, i32) {
    %c0_i32 = arith.constant 0 : i32
    %c0_i32_0 = arith.constant 0 : i32
    %c0_i32_1 = arith.constant 0 : i32
    %c0_i32_2 = arith.constant 0 : i32
    return %c0_i32, %c0_i32_0, %c0_i32_1 : i32, i32, i32
  }
  func.func @transform_3(%arg0: i32) -> (i32, i32, i32, i32, i32) {
    %c0_i32 = arith.constant 0 : i32
    %c0_i32_0 = arith.constant 0 : i32
    %c0_i32_1 = arith.constant 0 : i32
    %c0_i32_2 = arith.constant 0 : i32
    %c0_i32_3 = arith.constant 0 : i32
    return %arg0, %c0_i32, %c0_i32_0, %c0_i32_1, %c0_i32_2 : i32, i32, i32, i32, i32
  }
  func.func @transform_4(%arg0: i32) -> (i32, i32, i32) {
    %c0_i32 = arith.constant 0 : i32
    %c0_i32_0 = arith.constant 0 : i32
    %c0_i32_1 = arith.constant 0 : i32
    return %arg0, %c0_i32, %c0_i32_0 : i32, i32, i32
  }
}

module attributes {stable_mosaic.version = 11 : i64} {
  func.func @_bn_concat_nchw_kernel(%arg0: i32, %arg1: memref<2x4x256xf32, #tpu.memory_space<vmem>>, %arg2: memref<2x256x4xf32, #tpu.memory_space<vmem>>, %arg3: memref<1x4xf32, #tpu.memory_space<vmem>>, %arg4: memref<1x4xf32, #tpu.memory_space<vmem>>, %arg5: memref<2x8x256xf32, #tpu.memory_space<vmem>>) attributes {dimension_semantics = [#tpu.dimension_semantics<parallel>], iteration_bounds = array<i64: 1>, scalar_prefetch = 0 : i64, scratch_operands = 0 : i64, tpu.core_type = #tpu.core_type<tc>, window_params = [{transform_indices = @transform_0, window_bounds = array<i64: 2, 4, 256>}, {transform_indices = @transform_1, window_bounds = array<i64: 2, 256, 4>}, {pipeline_mode = #tpu.pipeline_mode<synchronous>, transform_indices = @transform_2, window_bounds = array<i64: 1, 4>}, {pipeline_mode = #tpu.pipeline_mode<synchronous>, transform_indices = @transform_3, window_bounds = array<i64: 1, 4>}, {transform_indices = @transform_4, window_bounds = array<i64: 2, 8, 256>}]} {
    %c0 = arith.constant 0 : index
    %c0_0 = arith.constant 0 : index
    %c0_1 = arith.constant 0 : index
    %0 = vector.load %arg1[%c0, %c0_0, %c0_1] : memref<2x4x256xf32, #tpu.memory_space<vmem>>, vector<2x4x256xf32>
    %c0_2 = arith.constant 0 : index
    %c0_3 = arith.constant 0 : index
    %c0_4 = arith.constant 0 : index
    %1 = vector.load %arg5[%c0_2, %c0_3, %c0_4] : memref<2x8x256xf32, #tpu.memory_space<vmem>>, vector<2x4x256xf32>
    tpu.vector_store %arg5[%c0_2, %c0_3, %c0_4], %0 {strides = array<i32>} : memref<2x8x256xf32, #tpu.memory_space<vmem>>, vector<2x4x256xf32>,
    %c0_5 = arith.constant 0 : index
    %c0_6 = arith.constant 0 : index
    %c0_7 = arith.constant 0 : index
    %2 = vector.load %arg2[%c0_5, %c0_6, %c0_7] : memref<2x256x4xf32, #tpu.memory_space<vmem>>, vector<1x256x4xf32>
    %3 = vector.shape_cast %2 : vector<1x256x4xf32> to vector<256x4xf32>
    %c0_8 = arith.constant 0 : index
    %c0_9 = arith.constant 0 : index
    %4 = vector.load %arg3[%c0_8, %c0_9] : memref<1x4xf32, #tpu.memory_space<vmem>>, vector<1x4xf32>
    %5 = vector.broadcast %4 : vector<1x4xf32> to vector<256x4xf32>
    %6 = arith.mulf %3, %5 : vector<256x4xf32>
    %c0_10 = arith.constant 0 : index
    %c0_11 = arith.constant 0 : index
    %7 = vector.load %arg4[%c0_10, %c0_11] : memref<1x4xf32, #tpu.memory_space<vmem>>, vector<1x4xf32>
    %8 = vector.broadcast %7 : vector<1x4xf32> to vector<256x4xf32>
    %9 = arith.addf %6, %8 : vector<256x4xf32>
    %10 = tpu.transpose %9, [1, 0] : vector<256x4xf32> -> vector<4x256xf32>
    %c0_12 = arith.constant 0 : index
    %c4 = arith.constant 4 : index
    %c0_13 = arith.constant 0 : index
    %11 = vector.load %arg5[%c0_12, %c4, %c0_13] : memref<2x8x256xf32, #tpu.memory_space<vmem>>, vector<1x4x256xf32>
    %12 = vector.shape_cast %11 : vector<1x4x256xf32> to vector<4x256xf32>
    %13 = vector.shape_cast %10 : vector<4x256xf32> to vector<1x4x256xf32>
    tpu.vector_store %arg5[%c0_12, %c4, %c0_13], %13 {strides = array<i32>} : memref<2x8x256xf32, #tpu.memory_space<vmem>>, vector<1x4x256xf32>,
    %c1 = arith.constant 1 : index
    %c0_14 = arith.constant 0 : index
    %c0_15 = arith.constant 0 : index
    %14 = vector.load %arg2[%c1, %c0_14, %c0_15] : memref<2x256x4xf32, #tpu.memory_space<vmem>>, vector<1x256x4xf32>
    %15 = vector.shape_cast %14 : vector<1x256x4xf32> to vector<256x4xf32>
    %c0_16 = arith.constant 0 : index
    %c0_17 = arith.constant 0 : index
    %16 = vector.load %arg3[%c0_16, %c0_17] : memref<1x4xf32, #tpu.memory_space<vmem>>, vector<1x4xf32>
    %17 = vector.broadcast %16 : vector<1x4xf32> to vector<256x4xf32>
    %18 = arith.mulf %15, %17 : vector<256x4xf32>
    %c0_18 = arith.constant 0 : index
    %c0_19 = arith.constant 0 : index
    %19 = vector.load %arg4[%c0_18, %c0_19] : memref<1x4xf32, #tpu.memory_space<vmem>>, vector<1x4xf32>
    %20 = vector.broadcast %19 : vector<1x4xf32> to vector<256x4xf32>
    %21 = arith.addf %18, %20 : vector<256x4xf32>
    %22 = tpu.transpose %21, [1, 0] : vector<256x4xf32> -> vector<4x256xf32>
    %c1_20 = arith.constant 1 : index
    %c4_21 = arith.constant 4 : index
    %c0_22 = arith.constant 0 : index
    %23 = vector.load %arg5[%c1_20, %c4_21, %c0_22] : memref<2x8x256xf32, #tpu.memory_space<vmem>>, vector<1x4x256xf32>
    %24 = vector.shape_cast %23 : vector<1x4x256xf32> to vector<4x256xf32>
    %25 = vector.shape_cast %22 : vector<4x256xf32> to vector<1x4x256xf32>
    tpu.vector_store %arg5[%c1_20, %c4_21, %c0_22], %25 {strides = array<i32>} : memref<2x8x256xf32, #tpu.memory_space<vmem>>, vector<1x4x256xf32>,
    return
  }
  func.func @transform_0(%arg0: i32) -> (i32, i32, i32) {
    %c0_i32 = arith.constant 0 : i32
    %c0_i32_0 = arith.constant 0 : i32
    %c0_i32_1 = arith.constant 0 : i32
    return %arg0, %c0_i32, %c0_i32_0 : i32, i32, i32
  }
  func.func @transform_1(%arg0: i32) -> (i32, i32, i32) {
    %c0_i32 = arith.constant 0 : i32
    %c0_i32_0 = arith.constant 0 : i32
    %c0_i32_1 = arith.constant 0 : i32
    return %arg0, %c0_i32, %c0_i32_0 : i32, i32, i32
  }
  func.func @transform_2(%arg0: i32) -> (i32, i32) {
    %c0_i32 = arith.constant 0 : i32
    %c0_i32_0 = arith.constant 0 : i32
    %c0_i32_1 = arith.constant 0 : i32
    return %c0_i32, %c0_i32_0 : i32, i32
  }
  func.func @transform_3(%arg0: i32) -> (i32, i32) {
    %c0_i32 = arith.constant 0 : i32
    %c0_i32_0 = arith.constant 0 : i32
    %c0_i32_1 = arith.constant 0 : i32
    return %c0_i32, %c0_i32_0 : i32, i32
  }
  func.func @transform_4(%arg0: i32) -> (i32, i32, i32) {
    %c0_i32 = arith.constant 0 : i32
    %c0_i32_0 = arith.constant 0 : i32
    %c0_i32_1 = arith.constant 0 : i32
    return %arg0, %c0_i32, %c0_i32_0 : i32, i32, i32
  }
}

</mosaic_0001>

<llo_original>
// kernel: unet_block_forward.3
$region0: #{unet_block_forward.3}
  #allocation0 [shape = 'u32[]', space=smem, size = 0x4, offset = 0x4, fixed_abs, tag = 'smem constant byte address 0x4 - core index']
  #allocation1 [shape = 'u32[144,128]{1,0:T(1,128)}', space=vmem, size = 0x12000, scoped, tag = 'internal scratch']
  %s0 = inlined_call_operand.vmem [shape: f32[2,4,256], index: 0, kind: input, shape index: {}]
  %s1 = inlined_call_operand.vmem [shape: f32[2,256,4], index: 1, kind: input, shape index: {}]
  %s2 = inlined_call_operand.vmem [shape: f32[1,4], index: 2, kind: input, shape index: {}]
  %s3 = inlined_call_operand.vmem [shape: f32[1,4], index: 3, kind: input, shape index: {}]
  %s4 = inlined_call_operand.vmem [shape: f32[2,8,256], index: 4, kind: output, shape index: {}]
  %s5 = sld [smem:[#allocation0]]
  $region26: #{unet_block_forward.3} parent=0
    _
  %s7 = ssub.s32 1, %s5
  %s8 = scalar_select 0, %s7, %s5
  // Predicated region
  $region2: #{unet_block_forward.3} parent=0 // pred_check
    _
  $region3: #{unet_block_forward.3} parent=0 // pred_check_branch
    %10 = sbr.rel (0) target = $region5
  $region4: #{unet_block_forward.3} parent=0 // pred_region
    _
  $region5: #{unet_block_forward.3} parent=0 // pred_fallthru
    _
  // Predicated region
  $region6: #{unet_block_forward.3} parent=0 // pred_check
    _
  $region7: #{unet_block_forward.3} parent=0 // pred_check_branch
    %12 = sbr.rel (0) target = $region9
  $region8: #{unet_block_forward.3} parent=0 // pred_region
    _
  $region9: #{unet_block_forward.3} parent=0 // pred_fallthru
    _
  // Predicated region
  $region10: #{unet_block_forward.3} parent=0 // pred_check
    _
  $region11: #{unet_block_forward.3} parent=0 // pred_check_branch
    %14 = sbr.rel (0) target = $region13
  $region12: #{unet_block_forward.3} parent=0 // pred_region
    _
  $region13: #{unet_block_forward.3} parent=0 // pred_fallthru
    _
  // Predicated region
  $region14: #{unet_block_forward.3} parent=0 // pred_check
    _
  $region15: #{unet_block_forward.3} parent=0 // pred_check_branch
    %16 = sbr.rel (0) target = $region17
  $region16: #{unet_block_forward.3} parent=0 // pred_region
    _
  $region17: #{unet_block_forward.3} parent=0 // pred_fallthru
    _
  %v17 = vld [vmem:[%s0] sm:$0xff]
  %v18 = vld [vmem:[%s0 + $0x8] sm:$0xff]
  %v21 = vcombine.high %v17, %v17
  %v22 = vcombine.high %v18, %v18
  %25 = vst [vmem:[%s4] sm:$0xf] %v17
  %26 = vst [vmem:[%s4 + $0x8] sm:$0xf] %v21
  %27 = vst [vmem:[%s4 + $0x10] sm:$0xf] %v18
  %28 = vst [vmem:[%s4 + $0x18] sm:$0xf] %v22
  %v29 = vld [vmem:[%s1] sm:$0xff]
  %v30 = vld [vmem:[%s1 + $0x8] sm:$0xff]
  %v31 = vld [vmem:[%s1 + $0x10] sm:$0xff]
  %v32 = vld [vmem:[%s1 + $0x18] sm:$0xff]
  %v33 = vld [vmem:[%s1 + $0x20] sm:$0xff]
  %v34 = vld [vmem:[%s1 + $0x28] sm:$0xff]
  %v35 = vld [vmem:[%s1 + $0x30] sm:$0xff]
  %v36 = vld [vmem:[%s1 + $0x38] sm:$0xff]
  %v37 = vld [vmem:[%s1 + $0x40] sm:$0xff]
  %v38 = vld [vmem:[%s1 + $0x48] sm:$0xff]
  %v39 = vld [vmem:[%s1 + $0x50] sm:$0xff]
  %v40 = vld [vmem:[%s1 + $0x58] sm:$0xff]
  %v41 = vld [vmem:[%s1 + $0x60] sm:$0xff]
  %v42 = vld [vmem:[%s1 + $0x68] sm:$0xff]
  %v43 = vld [vmem:[%s1 + $0x70] sm:$0xff]
  %v44 = vld [vmem:[%s1 + $0x78] sm:$0xff]
  %v45 = vld [vmem:[%s1 + $0x80] sm:$0xff]
  %v46 = vld [vmem:[%s1 + $0x88] sm:$0xff]
  %v47 = vld [vmem:[%s1 + $0x90] sm:$0xff]
  %v48 = vld [vmem:[%s1 + $0x98] sm:$0xff]
  %v49 = vld [vmem:[%s1 + $0xa0] sm:$0xff]
  %v50 = vld [vmem:[%s1 + $0xa8] sm:$0xff]
  %v51 = vld [vmem:[%s1 + $0xb0] sm:$0xff]
  %v52 = vld [vmem:[%s1 + $0xb8] sm:$0xff]
  %v53 = vld [vmem:[%s1 + $0xc0] sm:$0xff]
  %v54 = vld [vmem:[%s1 + $0xc8] sm:$0xff]
  %v55 = vld [vmem:[%s1 + $0xd0] sm:$0xff]
  %v56 = vld [vmem:[%s1 + $0xd8] sm:$0xff]
  %v57 = vld [vmem:[%s1 + $0xe0] sm:$0xff]
  %v58 = vld [vmem:[%s1 + $0xe8] sm:$0xff]
  %v59 = vld [vmem:[%s1 + $0xf0] sm:$0xff]
  %v60 = vld [vmem:[%s1 + $0xf8] sm:$0xff]
  %v61 = vld [vmem:[%s2] sm:$0x1]
  %v63 = vlaneseq
  %v64 = vshrl.u32 %v63, 7
  %v65 = vsub.s32 0, %v64
  %v66 = vrot.slane %v61, %v65
  %v68 = vmul.f32 %v29, %v66
  %v69 = vmul.f32 %v30, %v66
  %v70 = vmul.f32 %v31, %v66
  %v71 = vmul.f32 %v32, %v66
  %v72 = vmul.f32 %v33, %v66
  %v73 = vmul.f32 %v34, %v66
  %v74 = vmul.f32 %v35, %v66
  %v75 = vmul.f32 %v36, %v66
  %v76 = vmul.f32 %v37, %v66
  %v77 = vmul.f32 %v38, %v66
  %v78 = vmul.f32 %v39, %v66
  %v79 = vmul.f32 %v40, %v66
  %v80 = vmul.f32 %v41, %v66
  %v81 = vmul.f32 %v42, %v66
  %v82 = vmul.f32 %v43, %v66
  %v83 = vmul.f32 %v44, %v66
  %v84 = vmul.f32 %v45, %v66
  %v85 = vmul.f32 %v46, %v66
  %v86 = vmul.f32 %v47, %v66
  %v87 = vmul.f32 %v48, %v66
  %v88 = vmul.f32 %v49, %v66
  %v89 = vmul.f32 %v50, %v66
  %v90 = vmul.f32 %v51, %v66
  %v91 = vmul.f32 %v52, %v66
  %v92 = vmul.f32 %v53, %v66
  %v93 = vmul.f32 %v54, %v66
  %v94 = vmul.f32 %v55, %v66
  %v95 = vmul.f32 %v56, %v66
  %v96 = vmul.f32 %v57, %v66
  %v97 = vmul.f32 %v58, %v66
  %v98 = vmul.f32 %v59, %v66
  %v99 = vmul.f32 %v60, %v66
  %v100 = vld [vmem:[%s3] sm:$0x1]
  %v102 = vlaneseq
  %v103 = vshrl.u32 %v102, 7
  %v104 = vsub.s32 0, %v103
  %v105 = vrot.slane %v100, %v104
  %v107 = vadd.f32 %v68, %v105
  %v108 = vadd.f32 %v69, %v105
  %v109 = vadd.f32 %v70, %v105
  %v110 = vadd.f32 %v71, %v105
  %v111 = vadd.f32 %v72, %v105
  %v112 = vadd.f32 %v73, %v105
  %v113 = vadd.f32 %v74, %v105
  %v114 = vadd.f32 %v75, %v105
  %v115 = vadd.f32 %v76, %v105
  %v116 = vadd.f32 %v77, %v105
  %v117 = vadd.f32 %v78, %v105
  %v118 = vadd.f32 %v79, %v105
  %v119 = vadd.f32 %v80, %v105
  %v120 = vadd.f32 %v81, %v105
  %v121 = vadd.f32 %v82, %v105
  %v122 = vadd.f32 %v83, %v105
  %v123 = vadd.f32 %v84, %v105
  %v124 = vadd.f32 %v85, %v105
  %v125 = vadd.f32 %v86, %v105
  %v126 = vadd.f32 %v87, %v105
  %v127 = vadd.f32 %v88, %v105
  %v128 = vadd.f32 %v89, %v105
  %v129 = vadd.f32 %v90, %v105
  %v130 = vadd.f32 %v91, %v105
  %v131 = vadd.f32 %v92, %v105
  %v132 = vadd.f32 %v93, %v105
  %v133 = vadd.f32 %v94, %v105
  %v134 = vadd.f32 %v95, %v105
  %v135 = vadd.f32 %v96, %v105
  %v136 = vadd.f32 %v97, %v105
  %v137 = vadd.f32 %v98, %v105
  %v138 = vadd.f32 %v99, %v105
  %139 = vxpose.xlu0.b32.start [1/16] %v107, 128
  %140 = vxpose.xlu0.b32.cont [2/16] %v108, 128
  %141 = vxpose.xlu0.b32.cont [3/16] %v109, 128
  %142 = vxpose.xlu0.b32.cont [4/16] %v110, 128
  %143 = vxpose.xlu0.b32.cont [5/16] %v111, 128
  %144 = vxpose.xlu0.b32.cont [6/16] %v112, 128
  %145 = vxpose.xlu0.b32.cont [7/16] %v113, 128
  %146 = vxpose.xlu0.b32.cont [8/16] %v114, 128
  %147 = vxpose.xlu0.b32.cont [9/16] %v115, 128
  %148 = vxpose.xlu0.b32.cont [10/16] %v116, 128
  %149 = vxpose.xlu0.b32.cont [11/16] %v117, 128
  %150 = vxpose.xlu0.b32.cont [12/16] %v118, 128
  %151 = vxpose.xlu0.b32.cont [13/16] %v119, 128
  %152 = vxpose.xlu0.b32.cont [14/16] %v120, 128
  %153 = vxpose.xlu0.b32.cont [15/16] %v121, 128
  %154 = vxpose.xlu0.b32.end [16/16] %v122, 128
  %v155 = vpop.trf.xlu0
  %v156 = vpop.trf.xlu0
  %v157 = vpop.trf.xlu0
  %v158 = vpop.trf.xlu0
  %v159 = vpop.trf.xlu0
  %v160 = vpop.trf.xlu0
  %v161 = vpop.trf.xlu0
  %v162 = vpop.trf.xlu0
  %v163 = vpop.trf.xlu0
  %v164 = vpop.trf.xlu0
  %v165 = vpop.trf.xlu0
  %v166 = vpop.trf.xlu0
  %v167 = vpop.trf.xlu0
  %v168 = vpop.trf.xlu0
  %v169 = vpop.trf.xlu0
  %v170 = vpop.trf.xlu0
  %171 = vxpose.xlu0.b32.start [1/16] %v123, 128
  %172 = vxpose.xlu0.b32.cont [2/16] %v124, 128
  %173 = vxpose.xlu0.b32.cont [3/16] %v125, 128
  %174 = vxpose.xlu0.b32.cont [4/16] %v126, 128
  %175 = vxpose.xlu0.b32.cont [5/16] %v127, 128
  %176 = vxpose.xlu0.b32.cont [6/16] %v128, 128
  %177 = vxpose.xlu0.b32.cont [7/16] %v129, 128
  %178 = vxpose.xlu0.b32.cont [8/16] %v130, 128
  %179 = vxpose.xlu0.b32.cont [9/16] %v131, 128
  %180 = vxpose.xlu0.b32.cont [10/16] %v132, 128
  %181 = vxpose.xlu0.b32.cont [11/16] %v133, 128
  %182 = vxpose.xlu0.b32.cont [12/16] %v134, 128
  %183 = vxpose.xlu0.b32.cont [13/16] %v135, 128
  %184 = vxpose.xlu0.b32.cont [14/16] %v136, 128
  %185 = vxpose.xlu0.b32.cont [15/16] %v137, 128
  %186 = vxpose.xlu0.b32.end [16/16] %v138, 128
  %v187 = vpop.trf.xlu0
  %v188 = vpop.trf.xlu0
  %v189 = vpop.trf.xlu0
  %v190 = vpop.trf.xlu0
  %v191 = vpop.trf.xlu0
  %v192 = vpop.trf.xlu0
  %v193 = vpop.trf.xlu0
  %v194 = vpop.trf.xlu0
  %v195 = vpop.trf.xlu0
  %v196 = vpop.trf.xlu0
  %v197 = vpop.trf.xlu0
  %v198 = vpop.trf.xlu0
  %v199 = vpop.trf.xlu0
  %v200 = vpop.trf.xlu0
  %v201 = vpop.trf.xlu0
  %v202 = vpop.trf.xlu0
  %v205 = vrot.slane %v155, 4
  %v206 = vrot.slane %v187, 4
  %209 = vst [vmem:[%s4] sm:$0xf0] %v205
  %210 = vst [vmem:[%s4 + $0x8] sm:$0xf0] %v206
  %s211 = scalar_lea.vmem %s1, 256
  %v212 = vld [vmem:[%s211] sm:$0xff]
  %v213 = vld [vmem:[%s211 + $0x8] sm:$0xff]
  %v214 = vld [vmem:[%s211 + $0x10] sm:$0xff]
  %v215 = vld [vmem:[%s211 + $0x18] sm:$0xff]
  %v216 = vld [vmem:[%s211 + $0x20] sm:$0xff]
  %v217 = vld [vmem:[%s211 + $0x28] sm:$0xff]
  %v218 = vld [vmem:[%s211 + $0x30] sm:$0xff]
  %v219 = vld [vmem:[%s211 + $0x38] sm:$0xff]
  %v220 = vld [vmem:[%s211 + $0x40] sm:$0xff]
  %v221 = vld [vmem:[%s211 + $0x48] sm:$0xff]
  %v222 = vld [vmem:[%s211 + $0x50] sm:$0xff]
  %v223 = vld [vmem:[%s211 + $0x58] sm:$0xff]
  %v224 = vld [vmem:[%s211 + $0x60] sm:$0xff]
  %v225 = vld [vmem:[%s211 + $0x68] sm:$0xff]
  %v226 = vld [vmem:[%s211 + $0x70] sm:$0xff]
  %v227 = vld [vmem:[%s211 + $0x78] sm:$0xff]
  %v228 = vld [vmem:[%s211 + $0x80] sm:$0xff]
  %v229 = vld [vmem:[%s211 + $0x88] sm:$0xff]
  %v230 = vld [vmem:[%s211 + $0x90] sm:$0xff]
  %v231 = vld [vmem:[%s211 + $0x98] sm:$0xff]
  %v232 = vld [vmem:[%s211 + $0xa0] sm:$0xff]
  %v233 = vld [vmem:[%s211 + $0xa8] sm:$0xff]
  %v234 = vld [vmem:[%s211 + $0xb0] sm:$0xff]
  %v235 = vld [vmem:[%s211 + $0xb8] sm:$0xff]
  %v236 = vld [vmem:[%s211 + $0xc0] sm:$0xff]
  %v237 = vld [vmem:[%s211 + $0xc8] sm:$0xff]
  %v238 = vld [vmem:[%s211 + $0xd0] sm:$0xff]
  %v239 = vld [vmem:[%s211 + $0xd8] sm:$0xff]
  %v240 = vld [vmem:[%s211 + $0xe0] sm:$0xff]
  %v241 = vld [vmem:[%s211 + $0xe8] sm:$0xff]
  %v242 = vld [vmem:[%s211 + $0xf0] sm:$0xff]
  %v243 = vld [vmem:[%s211 + $0xf8] sm:$0xff]
  %v244 = vld [vmem:[%s2] sm:$0x1]
  %v246 = vlaneseq
  %v247 = vshrl.u32 %v246, 7
  %v248 = vsub.s32 0, %v247
  %v249 = vrot.slane %v244, %v248
  %v251 = vmul.f32 %v212, %v249
  %v252 = vmul.f32 %v213, %v249
  %v253 = vmul.f32 %v214, %v249
  %v254 = vmul.f32 %v215, %v249
  %v255 = vmul.f32 %v216, %v249
  %v256 = vmul.f32 %v217, %v249
  %v257 = vmul.f32 %v218, %v249
  %v258 = vmul.f32 %v219, %v249
  %v259 = vmul.f32 %v220, %v249
  %v260 = vmul.f32 %v221, %v249
  %v261 = vmul.f32 %v222, %v249
  %v262 = vmul.f32 %v223, %v249
  %v263 = vmul.f32 %v224, %v249
  %v264 = vmul.f32 %v225, %v249
  %v265 = vmul.f32 %v226, %v249
  %v266 = vmul.f32 %v227, %v249
  %v267 = vmul.f32 %v228, %v249
  %v268 = vmul.f32 %v229, %v249
  %v269 = vmul.f32 %v230, %v249
  %v270 = vmul.f32 %v231, %v249
  %v271 = vmul.f32 %v232, %v249
  %v272 = vmul.f32 %v233, %v249
  %v273 = vmul.f32 %v234, %v249
  %v274 = vmul.f32 %v235, %v249
  %v275 = vmul.f32 %v236, %v249
  %v276 = vmul.f32 %v237, %v249
  %v277 = vmul.f32 %v238, %v249
  %v278 = vmul.f32 %v239, %v249
  %v279 = vmul.f32 %v240, %v249
  %v280 = vmul.f32 %v241, %v249
  %v281 = vmul.f32 %v242, %v249
  %v282 = vmul.f32 %v243, %v249
  %v283 = vld [vmem:[%s3] sm:$0x1]
  %v285 = vlaneseq
  %v286 = vshrl.u32 %v285, 7
  %v287 = vsub.s32 0, %v286
  %v288 = vrot.slane %v283, %v287
  %v290 = vadd.f32 %v251, %v288
  %v291 = vadd.f32 %v252, %v288
  %v292 = vadd.f32 %v253, %v288
  %v293 = vadd.f32 %v254, %v288
  %v294 = vadd.f32 %v255, %v288
  %v295 = vadd.f32 %v256, %v288
  %v296 = vadd.f32 %v257, %v288
  %v297 = vadd.f32 %v258, %v288
  %v298 = vadd.f32 %v259, %v288
  %v299 = vadd.f32 %v260, %v288
  %v300 = vadd.f32 %v261, %v288
  %v301 = vadd.f32 %v262, %v288
  %v302 = vadd.f32 %v263, %v288
  %v303 = vadd.f32 %v264, %v288
  %v304 = vadd.f32 %v265, %v288
  %v305 = vadd.f32 %v266, %v288
  %v306 = vadd.f32 %v267, %v288
  %v307 = vadd.f32 %v268, %v288
  %v308 = vadd.f32 %v269, %v288
  %v309 = vadd.f32 %v270, %v288
  %v310 = vadd.f32 %v271, %v288
  %v311 = vadd.f32 %v272, %v288
  %v312 = vadd.f32 %v273, %v288
  %v313 = vadd.f32 %v274, %v288
  %v314 = vadd.f32 %v275, %v288
  %v315 = vadd.f32 %v276, %v288
  %v316 = vadd.f32 %v277, %v288
  %v317 = vadd.f32 %v278, %v288
  %v318 = vadd.f32 %v279, %v288
  %v319 = vadd.f32 %v280, %v288
  %v320 = vadd.f32 %v281, %v288
  %v321 = vadd.f32 %v282, %v288
  %322 = vxpose.xlu0.b32.start [1/16] %v290, 128
  %323 = vxpose.xlu0.b32.cont [2/16] %v291, 128
  %324 = vxpose.xlu0.b32.cont [3/16] %v292, 128
  %325 = vxpose.xlu0.b32.cont [4/16] %v293, 128
  %326 = vxpose.xlu0.b32.cont [5/16] %v294, 128
  %327 = vxpose.xlu0.b32.cont [6/16] %v295, 128
  %328 = vxpose.xlu0.b32.cont [7/16] %v296, 128
  %329 = vxpose.xlu0.b32.cont [8/16] %v297, 128
  %330 = vxpose.xlu0.b32.cont [9/16] %v298, 128
  %331 = vxpose.xlu0.b32.cont [10/16] %v299, 128
  %332 = vxpose.xlu0.b32.cont [11/16] %v300, 128
  %333 = vxpose.xlu0.b32.cont [12/16] %v301, 128
  %334 = vxpose.xlu0.b32.cont [13/16] %v302, 128
  %335 = vxpose.xlu0.b32.cont [14/16] %v303, 128
  %336 = vxpose.xlu0.b32.cont [15/16] %v304, 128
  %337 = vxpose.xlu0.b32.end [16/16] %v305, 128
  %v338 = vpop.trf.xlu0
  %v339 = vpop.trf.xlu0
  %v340 = vpop.trf.xlu0
  %v341 = vpop.trf.xlu0
  %v342 = vpop.trf.xlu0
  %v343 = vpop.trf.xlu0
  %v344 = vpop.trf.xlu0
  %v345 = vpop.trf.xlu0
  %v346 = vpop.trf.xlu0
  %v347 = vpop.trf.xlu0
  %v348 = vpop.trf.xlu0
  %v349 = vpop.trf.xlu0
  %v350 = vpop.trf.xlu0
  %v351 = vpop.trf.xlu0
  %v352 = vpop.trf.xlu0
  %v353 = vpop.trf.xlu0
  %354 = vxpose.xlu0.b32.start [1/16] %v306, 128
  %355 = vxpose.xlu0.b32.cont [2/16] %v307, 128
  %356 = vxpose.xlu0.b32.cont [3/16] %v308, 128
  %357 = vxpose.xlu0.b32.cont [4/16] %v309, 128
  %358 = vxpose.xlu0.b32.cont [5/16] %v310, 128
  %359 = vxpose.xlu0.b32.cont [6/16] %v311, 128
  %360 = vxpose.xlu0.b32.cont [7/16] %v312, 128
  %361 = vxpose.xlu0.b32.cont [8/16] %v313, 128
  %362 = vxpose.xlu0.b32.cont [9/16] %v314, 128
  %363 = vxpose.xlu0.b32.cont [10/16] %v315, 128
  %364 = vxpose.xlu0.b32.cont [11/16] %v316, 128
  %365 = vxpose.xlu0.b32.cont [12/16] %v317, 128
  %366 = vxpose.xlu0.b32.cont [13/16] %v318, 128
  %367 = vxpose.xlu0.b32.cont [14/16] %v319, 128
  %368 = vxpose.xlu0.b32.cont [15/16] %v320, 128
  %369 = vxpose.xlu0.b32.end [16/16] %v321, 128
  %v370 = vpop.trf.xlu0
  %v371 = vpop.trf.xlu0
  %v372 = vpop.trf.xlu0
  %v373 = vpop.trf.xlu0
  %v374 = vpop.trf.xlu0
  %v375 = vpop.trf.xlu0
  %v376 = vpop.trf.xlu0
  %v377 = vpop.trf.xlu0
  %v378 = vpop.trf.xlu0
  %v379 = vpop.trf.xlu0
  %v380 = vpop.trf.xlu0
  %v381 = vpop.trf.xlu0
  %v382 = vpop.trf.xlu0
  %v383 = vpop.trf.xlu0
  %v384 = vpop.trf.xlu0
  %v385 = vpop.trf.xlu0
  %v388 = vrot.slane %v338, 4
  %v389 = vrot.slane %v370, 4
  %s392 = scalar_lea.vmem %s4, 16
  %393 = vst [vmem:[%s392] sm:$0xf0] %v388
  %394 = vst [vmem:[%s392 + $0x8] sm:$0xf0] %v389
  // Predicated region
  $region18: #{unet_block_forward.3} parent=0 // pred_check
    _
  $region19: #{unet_block_forward.3} parent=0 // pred_check_branch
    %396 = sbr.rel (0) target = $region21
  $region20: #{unet_block_forward.3} parent=0 // pred_region
    _
  $region21: #{unet_block_forward.3} parent=0 // pred_fallthru
    _
  // Predicated region
  $region22: #{unet_block_forward.3} parent=0 // pred_check
    _
  $region23: #{unet_block_forward.3} parent=0 // pred_check_branch
    %398 = sbr.rel (0) target = $region25
  $region24: #{unet_block_forward.3} parent=0 // pred_region
    _
  $region25: #{unet_block_forward.3} parent=0 // pred_fallthru
    _

// kernel: unet_block_forward.2
$region0: #{unet_block_forward.2}
  #allocation0 [shape = 'u32[]', space=smem, size = 0x4, offset = 0x4, fixed_abs, tag = 'smem constant byte address 0x4 - core index']
  #allocation1 [shape = 'u32[144,128]{1,0:T(1,128)}', space=vmem, size = 0x12000, scoped, tag = 'internal scratch']
  #allocation2 [shape = 'f32[2,10,10,8]{3,2,1,0:T(8,128)}', space=vmem, size = 0x28000, scoped, tag = 'scratch operand']
  %s0 = inlined_call_operand.vmem [shape: f32[2,9,9,16], index: 0, kind: input, shape index: {}]
  %s1 = inlined_call_operand.vmem [shape: f32[64,8], index: 1, kind: input, shape index: {}]
  %s2 = inlined_call_operand.vmem [shape: f32[4,32,4], index: 2, kind: input, shape index: {}]
  %s3 = inlined_call_operand.vmem [shape: f32[2,8,2,8,8], index: 3, kind: output, shape index: {0}]
  %s4 = inlined_call_operand.vmem [shape: f32[1,2,4], index: 4, kind: output, shape index: {1}]
  %5 = xla_tuple %s3, %s4
  %s6 = sld [smem:[#allocation0]]
  $region30: #{unet_block_forward.2} parent=0
    _
  %s8 = ssub.s32 1, %s6
  %s9 = scalar_select 0, %s8, %s6
  // Predicated region
  $region2: #{unet_block_forward.2} parent=0 // pred_check
    _
  $region3: #{unet_block_forward.2} parent=0 // pred_check_branch
    %11 = sbr.rel (0) target = $region5
  $region4: #{unet_block_forward.2} parent=0 // pred_region
    _
  $region5: #{unet_block_forward.2} parent=0 // pred_fallthru
    _
  // Predicated region
  $region6: #{unet_block_forward.2} parent=0 // pred_check
    _
  $region7: #{unet_block_forward.2} parent=0 // pred_check_branch
    %13 = sbr.rel (0) target = $region9
  $region8: #{unet_block_forward.2} parent=0 // pred_region
    _
  $region9: #{unet_block_forward.2} parent=0 // pred_fallthru
    _
  // Predicated region
  $region10: #{unet_block_forward.2} parent=0 // pred_check
    _
  $region11: #{unet_block_forward.2} parent=0 // pred_check_branch
    %15 = sbr.rel (0) target = $region13
  $region12: #{unet_block_forward.2} parent=0 // pred_region
    _
  $region13: #{unet_block_forward.2} parent=0 // pred_fallthru
    _
  %v16 = vld [vmem:[%s0] sm:$0xff]
  %v17 = vld [vmem:[%s0 + $0x8] sm:$0x1]
  %v18 = vld [vmem:[%s0 + $0x10] sm:$0xff]
  %v19 = vld [vmem:[%s0 + $0x18] sm:$0x1]
  %v20 = vld [vmem:[%s0 + $0x20] sm:$0xff]
  %v21 = vld [vmem:[%s0 + $0x28] sm:$0x1]
  %v22 = vld [vmem:[%s0 + $0x30] sm:$0xff]
  %v23 = vld [vmem:[%s0 + $0x38] sm:$0x1]
  %v24 = vld [vmem:[%s0 + $0x40] sm:$0xff]
  %v25 = vld [vmem:[%s0 + $0x48] sm:$0x1]
  %v26 = vld [vmem:[%s0 + $0x50] sm:$0xff]
  %v27 = vld [vmem:[%s0 + $0x58] sm:$0x1]
  %v28 = vld [vmem:[%s0 + $0x60] sm:$0xff]
  %v29 = vld [vmem:[%s0 + $0x68] sm:$0x1]
  %v30 = vld [vmem:[%s0 + $0x70] sm:$0xff]
  %v31 = vld [vmem:[%s0 + $0x78] sm:$0x1]
  %v32 = vld [vmem:[%s0 + $0x80] sm:$0xff]
  %v33 = vld [vmem:[%s0 + $0x88] sm:$0x1]
  %v34 = vld [vmem:[%s0 + $0x90] sm:$0xff]
  %v35 = vld [vmem:[%s0 + $0x98] sm:$0x1]
  %v36 = vld [vmem:[%s0 + $0xa0] sm:$0xff]
  %v37 = vld [vmem:[%s0 + $0xa8] sm:$0x1]
  %v38 = vld [vmem:[%s0 + $0xb0] sm:$0xff]
  %v39 = vld [vmem:[%s0 + $0xb8] sm:$0x1]
  %v40 = vld [vmem:[%s0 + $0xc0] sm:$0xff]
  %v41 = vld [vmem:[%s0 + $0xc8] sm:$0x1]
  %v42 = vld [vmem:[%s0 + $0xd0] sm:$0xff]
  %v43 = vld [vmem:[%s0 + $0xd8] sm:$0x1]
  %v44 = vld [vmem:[%s0 + $0xe0] sm:$0xff]
  %v45 = vld [vmem:[%s0 + $0xe8] sm:$0x1]
  %v46 = vld [vmem:[%s0 + $0xf0] sm:$0xff]
  %v47 = vld [vmem:[%s0 + $0xf8] sm:$0x1]
  %v48 = vld [vmem:[%s0 + $0x100] sm:$0xff]
  %v49 = vld [vmem:[%s0 + $0x108] sm:$0x1]
  %v50 = vld [vmem:[%s0 + $0x110] sm:$0xff]
  %v51 = vld [vmem:[%s0 + $0x118] sm:$0x1]
  %vm52 = vcmp.ge.f32.partialorder %v16, 0.0
  %vm53 = vcmp.ge.f32.partialorder %v17, 0.0
  %vm54 = vcmp.ge.f32.partialorder %v18, 0.0
  %vm55 = vcmp.ge.f32.partialorder %v19, 0.0
  %vm56 = vcmp.ge.f32.partialorder %v20, 0.0
  %vm57 = vcmp.ge.f32.partialorder %v21, 0.0
  %vm58 = vcmp.ge.f32.partialorder %v22, 0.0
  %vm59 = vcmp.ge.f32.partialorder %v23, 0.0
  %vm60 = vcmp.ge.f32.partialorder %v24, 0.0
  %vm61 = vcmp.ge.f32.partialorder %v25, 0.0
  %vm62 = vcmp.ge.f32.partialorder %v26, 0.0
  %vm63 = vcmp.ge.f32.partialorder %v27, 0.0
  %vm64 = vcmp.ge.f32.partialorder %v28, 0.0
  %vm65 = vcmp.ge.f32.partialorder %v29, 0.0
  %vm66 = vcmp.ge.f32.partialorder %v30, 0.0
  %vm67 = vcmp.ge.f32.partialorder %v31, 0.0
  %vm68 = vcmp.ge.f32.partialorder %v32, 0.0
  %vm69 = vcmp.ge.f32.partialorder %v33, 0.0
  %vm70 = vcmp.ge.f32.partialorder %v34, 0.0
  %vm71 = vcmp.ge.f32.partialorder %v35, 0.0
  %vm72 = vcmp.ge.f32.partialorder %v36, 0.0
  %vm73 = vcmp.ge.f32.partialorder %v37, 0.0
  %vm74 = vcmp.ge.f32.partialorder %v38, 0.0
  %vm75 = vcmp.ge.f32.partialorder %v39, 0.0
  %vm76 = vcmp.ge.f32.partialorder %v40, 0.0
  %vm77 = vcmp.ge.f32.partialorder %v41, 0.0
  %vm78 = vcmp.ge.f32.partialorder %v42, 0.0
  %vm79 = vcmp.ge.f32.partialorder %v43, 0.0
  %vm80 = vcmp.ge.f32.partialorder %v44, 0.0
  %vm81 = vcmp.ge.f32.partialorder %v45, 0.0
  %vm82 = vcmp.ge.f32.partialorder %v46, 0.0
  %vm83 = vcmp.ge.f32.partialorder %v47, 0.0
  %vm84 = vcmp.ge.f32.partialorder %v48, 0.0
  %vm85 = vcmp.ge.f32.partialorder %v49, 0.0
  %vm86 = vcmp.ge.f32.partialorder %v50, 0.0
  %vm87 = vcmp.ge.f32.partialorder %v51, 0.0
  %v88 = vmul.f32 %v16, 0.2
  %v89 = vmul.f32 %v17, 0.2
  %v90 = vmul.f32 %v18, 0.2
  %v91 = vmul.f32 %v19, 0.2
  %v92 = vmul.f32 %v20, 0.2
  %v93 = vmul.f32 %v21, 0.2
  %v94 = vmul.f32 %v22, 0.2
  %v95 = vmul.f32 %v23, 0.2
  %v96 = vmul.f32 %v24, 0.2
  %v97 = vmul.f32 %v25, 0.2
  %v98 = vmul.f32 %v26, 0.2
  %v99 = vmul.f32 %v27, 0.2
  %v100 = vmul.f32 %v28, 0.2
  %v101 = vmul.f32 %v29, 0.2
  %v102 = vmul.f32 %v30, 0.2
  %v103 = vmul.f32 %v31, 0.2
  %v104 = vmul.f32 %v32, 0.2
  %v105 = vmul.f32 %v33, 0.2
  %v106 = vmul.f32 %v34, 0.2
  %v107 = vmul.f32 %v35, 0.2
  %v108 = vmul.f32 %v36, 0.2
  %v109 = vmul.f32 %v37, 0.2
  %v110 = vmul.f32 %v38, 0.2
  %v111 = vmul.f32 %v39, 0.2
  %v112 = vmul.f32 %v40, 0.2
  %v113 = vmul.f32 %v41, 0.2
  %v114 = vmul.f32 %v42, 0.2
  %v115 = vmul.f32 %v43, 0.2
  %v116 = vmul.f32 %v44, 0.2
  %v117 = vmul.f32 %v45, 0.2
  %v118 = vmul.f32 %v46, 0.2
  %v119 = vmul.f32 %v47, 0.2
  %v120 = vmul.f32 %v48, 0.2
  %v121 = vmul.f32 %v49, 0.2
  %v122 = vmul.f32 %v50, 0.2
  %v123 = vmul.f32 %v51, 0.2
  %v124 = vsel %vm52, %v16, %v88
  %v125 = vsel %vm53, %v17, %v89
  %v126 = vsel %vm54, %v18, %v90
  %v127 = vsel %vm55, %v19, %v91
  %v128 = vsel %vm56, %v20, %v92
  %v129 = vsel %vm57, %v21, %v93
  %v130 = vsel %vm58, %v22, %v94
  %v131 = vsel %vm59, %v23, %v95
  %v132 = vsel %vm60, %v24, %v96
  %v133 = vsel %vm61, %v25, %v97
  %v134 = vsel %vm62, %v26, %v98
  %v135 = vsel %vm63, %v27, %v99
  %v136 = vsel %vm64, %v28, %v100
  %v137 = vsel %vm65, %v29, %v101
  %v138 = vsel %vm66, %v30, %v102
  %v139 = vsel %vm67, %v31, %v103
  %v140 = vsel %vm68, %v32, %v104
  %v141 = vsel %vm69, %v33, %v105
  %v142 = vsel %vm70, %v34, %v106
  %v143 = vsel %vm71, %v35, %v107
  %v144 = vsel %vm72, %v36, %v108
  %v145 = vsel %vm73, %v37, %v109
  %v146 = vsel %vm74, %v38, %v110
  %v147 = vsel %vm75, %v39, %v111
  %v148 = vsel %vm76, %v40, %v112
  %v149 = vsel %vm77, %v41, %v113
  %v150 = vsel %vm78, %v42, %v114
  %v151 = vsel %vm79, %v43, %v115
  %v152 = vsel %vm80, %v44, %v116
  %v153 = vsel %vm81, %v45, %v117
  %v154 = vsel %vm82, %v46, %v118
  %v155 = vsel %vm83, %v47, %v119
  %v156 = vsel %vm84, %v48, %v120
  %v157 = vsel %vm85, %v49, %v121
  %v158 = vsel %vm86, %v50, %v122
  %v159 = vsel %vm87, %v51, %v123
  %vm192 = vcmask 1046528
  %v193 = vrot.slane %v124, 1
  %v194 = vrot.slane %v125, 1
  %v195 = vsel %vm192, %v193, %v194
  %v196 = vrot.slane %v126, 1
  %v197 = vrot.slane %v127, 1
  %v198 = vsel %vm192, %v196, %v197
  %v199 = vrot.slane %v128, 1
  %v200 = vrot.slane %v129, 1
  %v201 = vsel %vm192, %v199, %v200
  %v202 = vrot.slane %v130, 1
  %v203 = vrot.slane %v131, 1
  %v204 = vsel %vm192, %v202, %v203
  %v205 = vrot.slane %v132, 1
  %v206 = vrot.slane %v133, 1
  %v207 = vsel %vm192, %v205, %v206
  %v208 = vrot.slane %v134, 1
  %v209 = vrot.slane %v135, 1
  %v210 = vsel %vm192, %v208, %v209
  %v211 = vrot.slane %v136, 1
  %v212 = vrot.slane %v137, 1
  %v213 = vsel %vm192, %v211, %v212
  %v214 = vrot.slane %v138, 1
  %v215 = vrot.slane %v139, 1
  %v216 = vsel %vm192, %v214, %v215
  %v217 = vrot.slane %v142, 1
  %v218 = vrot.slane %v143, 1
  %v219 = vsel %vm192, %v217, %v218
  %v220 = vrot.slane %v144, 1
  %v221 = vrot.slane %v145, 1
  %v222 = vsel %vm192, %v220, %v221
  %v223 = vrot.slane %v146, 1
  %v224 = vrot.slane %v147, 1
  %v225 = vsel %vm192, %v223, %v224
  %v226 = vrot.slane %v148, 1
  %v227 = vrot.slane %v149, 1
  %v228 = vsel %vm192, %v226, %v227
  %v229 = vrot.slane %v150, 1
  %v230 = vrot.slane %v151, 1
  %v231 = vsel %vm192, %v229, %v230
  %v232 = vrot.slane %v152, 1
  %v233 = vrot.slane %v153, 1
  %v234 = vsel %vm192, %v232, %v233
  %v235 = vrot.slane %v154, 1
  %v236 = vrot.slane %v155, 1
  %v237 = vsel %vm192, %v235, %v236
  %v238 = vrot.slane %v156, 1
  %v239 = vrot.slane %v157, 1
  %v240 = vsel %vm192, %v238, %v239
  %241 = vrot.lane.b32.xlu0 %v195, 16
  %v242 = vpop.permute.xlu0 %241
  %243 = vrot.lane.b32.xlu0 %v198, 16
  %v244 = vpop.permute.xlu0 %243
  %245 = vrot.lane.b32.xlu0 %v201, 16
  %v246 = vpop.permute.xlu0 %245
  %247 = vrot.lane.b32.xlu0 %v204, 16
  %v248 = vpop.permute.xlu0 %247
  %249 = vrot.lane.b32.xlu0 %v207, 16
  %v250 = vpop.permute.xlu0 %249
  %251 = vrot.lane.b32.xlu0 %v210, 16
  %v252 = vpop.permute.xlu0 %251
  %253 = vrot.lane.b32.xlu0 %v213, 16
  %v254 = vpop.permute.xlu0 %253
  %255 = vrot.lane.b32.xlu0 %v216, 16
  %v256 = vpop.permute.xlu0 %255
  %257 = vrot.lane.b32.xlu0 %v219, 16
  %v258 = vpop.permute.xlu0 %257
  %259 = vrot.lane.b32.xlu0 %v222, 16
  %v260 = vpop.permute.xlu0 %259
  %261 = vrot.lane.b32.xlu0 %v225, 16
  %v262 = vpop.permute.xlu0 %261
  %263 = vrot.lane.b32.xlu0 %v228, 16
  %v264 = vpop.permute.xlu0 %263
  %265 = vrot.lane.b32.xlu0 %v231, 16
  %v266 = vpop.permute.xlu0 %265
  %267 = vrot.lane.b32.xlu0 %v234, 16
  %v268 = vpop.permute.xlu0 %267
  %269 = vrot.lane.b32.xlu0 %v237, 16
  %v270 = vpop.permute.xlu0 %269
  %271 = vrot.lane.b32.xlu0 %v240, 16
  %v272 = vpop.permute.xlu0 %271
  %291 = vrot.lane.b32.xlu0 %v126, 32
  %v292 = vpop.permute.xlu0 %291
  %293 = vrot.lane.b32.xlu0 %v128, 32
  %v294 = vpop.permute.xlu0 %293
  %295 = vrot.lane.b32.xlu0 %v130, 32
  %v296 = vpop.permute.xlu0 %295
  %297 = vrot.lane.b32.xlu0 %v132, 32
  %v298 = vpop.permute.xlu0 %297
  %299 = vrot.lane.b32.xlu0 %v134, 32
  %v300 = vpop.permute.xlu0 %299
  %301 = vrot.lane.b32.xlu0 %v136, 32
  %v302 = vpop.permute.xlu0 %301
  %303 = vrot.lane.b32.xlu0 %v138, 32
  %v304 = vpop.permute.xlu0 %303
  %305 = vrot.lane.b32.xlu0 %v140, 32
  %v306 = vpop.permute.xlu0 %305
  %307 = vrot.lane.b32.xlu0 %v144, 32
  %v308 = vpop.permute.xlu0 %307
  %309 = vrot.lane.b32.xlu0 %v146, 32
  %v310 = vpop.permute.xlu0 %309
  %311 = vrot.lane.b32.xlu0 %v148, 32
  %v312 = vpop.permute.xlu0 %311
  %313 = vrot.lane.b32.xlu0 %v150, 32
  %v314 = vpop.permute.xlu0 %313
  %315 = vrot.lane.b32.xlu0 %v152, 32
  %v316 = vpop.permute.xlu0 %315
  %317 = vrot.lane.b32.xlu0 %v154, 32
  %v318 = vpop.permute.xlu0 %317
  %319 = vrot.lane.b32.xlu0 %v156, 32
  %v320 = vpop.permute.xlu0 %319
  %321 = vrot.lane.b32.xlu0 %v158, 32
  %v322 = vpop.permute.xlu0 %321
  %v341 = vrot.slane %v140, 1
  %v342 = vrot.slane %v141, 1
  %v343 = vsel %vm192, %v341, %v342
  %v344 = vrot.slane %v158, 1
  %v345 = vrot.slane %v159, 1
  %v346 = vsel %vm192, %v344, %v345
  %347 = vrot.lane.b32.xlu0 %v198, 48
  %v348 = vpop.permute.xlu0 %347
  %349 = vrot.lane.b32.xlu0 %v201, 48
  %v350 = vpop.permute.xlu0 %349
  %351 = vrot.lane.b32.xlu0 %v204, 48
  %v352 = vpop.permute.xlu0 %351
  %353 = vrot.lane.b32.xlu0 %v207, 48
  %v354 = vpop.permute.xlu0 %353
  %355 = vrot.lane.b32.xlu0 %v210, 48
  %v356 = vpop.permute.xlu0 %355
  %357 = vrot.lane.b32.xlu0 %v213, 48
  %v358 = vpop.permute.xlu0 %357
  %359 = vrot.lane.b32.xlu0 %v216, 48
  %v360 = vpop.permute.xlu0 %359
  %361 = vrot.lane.b32.xlu0 %v343, 48
  %v362 = vpop.permute.xlu0 %361
  %363 = vrot.lane.b32.xlu0 %v222, 48
  %v364 = vpop.permute.xlu0 %363
  %365 = vrot.lane.b32.xlu0 %v225, 48
  %v366 = vpop.permute.xlu0 %365
  %367 = vrot.lane.b32.xlu0 %v228, 48
  %v368 = vpop.permute.xlu0 %367
  %369 = vrot.lane.b32.xlu0 %v231, 48
  %v370 = vpop.permute.xlu0 %369
  %371 = vrot.lane.b32.xlu0 %v234, 48
  %v372 = vpop.permute.xlu0 %371
  %373 = vrot.lane.b32.xlu0 %v237, 48
  %v374 = vpop.permute.xlu0 %373
  %375 = vrot.lane.b32.xlu0 %v240, 48
  %v376 = vpop.permute.xlu0 %375
  %377 = vrot.lane.b32.xlu0 %v346, 48
  %v378 = vpop.permute.xlu0 %377
  %vm395 = vcmask 130048
  %v396 = vsel %vm395, %v124, %v242
  %v397 = vsel %vm395, %v126, %v244
  %v398 = vsel %vm395, %v128, %v246
  %v399 = vsel %vm395, %v130, %v248
  %v400 = vsel %vm395, %v132, %v250
  %v401 = vsel %vm395, %v134, %v252
  %v402 = vsel %vm395, %v136, %v254
  %v403 = vsel %vm395, %v138, %v256
  %v404 = vsel %vm395, %v142, %v258
  %v405 = vsel %vm395, %v144, %v260
  %v406 = vsel %vm395, %v146, %v262
  %v407 = vsel %vm395, %v148, %v264
  %v408 = vsel %vm395, %v150, %v266
  %v409 = vsel %vm395, %v152, %v268
  %v410 = vsel %vm395, %v154, %v270
  %v411 = vsel %vm395, %v156, %v272
  %vm412 = vcmask 261120
  %v413 = vsel %vm412, %v396, %v292
  %v414 = vsel %vm412, %v397, %v294
  %v415 = vsel %vm412, %v398, %v296
  %v416 = vsel %vm412, %v399, %v298
  %v417 = vsel %vm412, %v400, %v300
  %v418 = vsel %vm412, %v401, %v302
  %v419 = vsel %vm412, %v402, %v304
  %v420 = vsel %vm412, %v403, %v306
  %v421 = vsel %vm412, %v404, %v308
  %v422 = vsel %vm412, %v405, %v310
  %v423 = vsel %vm412, %v406, %v312
  %v424 = vsel %vm412, %v407, %v314
  %v425 = vsel %vm412, %v408, %v316
  %v426 = vsel %vm412, %v409, %v318
  %v427 = vsel %vm412, %v410, %v320
  %v428 = vsel %vm412, %v411, %v322
  %vm429 = vcmask 392192
  %v430 = vsel %vm429, %v413, %v348
  %v431 = vsel %vm429, %v414, %v350
  %v432 = vsel %vm429, %v415, %v352
  %v433 = vsel %vm429, %v416, %v354
  %v434 = vsel %vm429, %v417, %v356
  %v435 = vsel %vm429, %v418, %v358
  %v436 = vsel %vm429, %v419, %v360
  %v437 = vsel %vm429, %v420, %v362
  %v438 = vsel %vm429, %v421, %v364
  %v439 = vsel %vm429, %v422, %v366
  %v440 = vsel %vm429, %v423, %v368
  %v441 = vsel %vm429, %v424, %v370
  %v442 = vsel %vm429, %v425, %v372
  %v443 = vsel %vm429, %v426, %v374
  %v444 = vsel %vm429, %v427, %v376
  %v445 = vsel %vm429, %v428, %v378
  %v446 = vld [vmem:[%s1] sm:$0xff]
  %v447 = vld [vmem:[%s1 + $0x8] sm:$0xff]
  %v448 = vld [vmem:[%s1 + $0x10] sm:$0xff]
  %v449 = vld [vmem:[%s1 + $0x18] sm:$0xff]
  %v450 = vld [vmem:[%s1 + $0x20] sm:$0xff]
  %v451 = vld [vmem:[%s1 + $0x28] sm:$0xff]
  %v452 = vld [vmem:[%s1 + $0x30] sm:$0xff]
  %v453 = vld [vmem:[%s1 + $0x38] sm:$0xff]
  %vm454 = vcmask 523264
  %v456 = vsel %vm454, %v430, 0
  %v459 = vsel %vm454, %v431, 0
  %v462 = vsel %vm454, %v432, 0
  %v465 = vsel %vm454, %v433, 0
  %v468 = vsel %vm454, %v434, 0
  %v471 = vsel %vm454, %v435, 0
  %v474 = vsel %vm454, %v436, 0
  %v477 = vsel %vm454, %v437, 0
  %v480 = vsel %vm454, %v438, 0
  %v483 = vsel %vm454, %v439, 0
  %v486 = vsel %vm454, %v440, 0
  %v489 = vsel %vm454, %v441, 0
  %v492 = vsel %vm454, %v442, 0
  %v495 = vsel %vm454, %v443, 0
  %v498 = vsel %vm454, %v444, 0
  %v501 = vsel %vm454, %v445, 0
  %503 = vmatprep.subr.mxu0 0.0
  %504 = vmatpush1.msra.mxu0 %v446
  %505 = vmatprep.subr.mxu0 0.0
  %506 = vmatpush1.msra.mxu0 %v447
  %507 = vmatprep.subr.mxu0 0.0
  %508 = vmatpush1.msra.mxu0 %v448
  %509 = vmatprep.subr.mxu0 0.0
  %510 = vmatpush1.msra.mxu0 %v449
  %511 = vmatprep.subr.mxu0 0.0
  %512 = vmatpush1.msra.mxu0 %v450
  %513 = vmatprep.subr.mxu0 0.0
  %514 = vmatpush1.msra.mxu0 %v451
  %515 = vmatprep.subr.mxu0 0.0
  %516 = vmatpush1.msra.mxu0 %v452
  %517 = vmatprep.subr.mxu0 0.0
  %518 = vmatpush1.msra.mxu0 %v453
  %519 = vmatprep.subr.mxu0 0.0
  %520 = vmatpush1.msra.mxu0 0.0
  %521 = vmatprep.subr.mxu0 0.0
  %522 = vmatpush1.msra.mxu0 0.0
  %523 = vmatprep.subr.mxu0 0.0
  %524 = vmatpush1.msra.mxu0 0.0
  %525 = vmatprep.subr.mxu0 0.0
  %526 = vmatpush1.msra.mxu0 0.0
  %527 = vmatprep.subr.mxu0 0.0
  %528 = vmatpush1.msra.mxu0 0.0
  %529 = vmatprep.subr.mxu0 0.0
  %530 = vmatpush1.msra.mxu0 0.0
  %531 = vmatprep.subr.mxu0 0.0
  %532 = vmatpush1.msra.mxu0 0.0
  %533 = vmatprep.subr.mxu0 0.0
  %534 = vmatpush1.msra.mxu0 0.0
  %535 = vmatprep.subr.mxu0 0.0
  %536 = vmatpush1.msra.mxu0 0.0
  %537 = vmatprep.subr.mxu0 0.0
  %538 = vmatpush1.msra.mxu0 0.0
  %539 = vmatprep.subr.mxu0 0.0
  %540 = vmatpush1.msra.mxu0 0.0
  %541 = vmatprep.subr.mxu0 0.0
  %542 = vmatpush1.msra.mxu0 0.0
  %543 = vmatprep.subr.mxu0 0.0
  %544 = vmatpush1.msra.mxu0 0.0
  %545 = vmatprep.subr.mxu0 0.0
  %546 = vmatpush1.msra.mxu0 0.0
  %547 = vmatprep.subr.mxu0 0.0
  %548 = vmatpush1.msra.mxu0 0.0
  %549 = vmatprep.subr.mxu0 0.0
  %550 = vmatpush1.msra.mxu0 0.0
  %551 = vmatprep.subr.mxu0 0.0
  %552 = vmatpush1.msra.mxu0 0.0
  %553 = vmatprep.subr.mxu0 0.0
  %554 = vmatpush1.msra.mxu0 0.0
  %555 = vmatprep.subr.mxu0 0.0
  %556 = vmatpush1.msra.mxu0 0.0
  %557 = vmatprep.subr.mxu0 0.0
  %558 = vmatpush1.msra.mxu0 0.0
  %559 = vmatprep.subr.mxu0 0.0
  %560 = vmatpush1.msra.mxu0 0.0
  %561 = vmatprep.subr.mxu0 0.0
  %562 = vmatpush1.msra.mxu0 0.0
  %563 = vmatprep.subr.mxu0 0.0
  %564 = vmatpush1.msra.mxu0 0.0
  %565 = vmatprep.subr.mxu0 0.0
  %566 = vmatpush1.msra.mxu0 0.0
  %567 = vmatprep.mubr.f32.mxu0 0.0
  %568 = vmatmul.mubr.f32.gmra.mrb[0].mxu0 %v456
  %v569 = vpop.f32.mrb[0].mxu0
  %v570 = vadd.f32 0.0, %v569
  %v571 = vpop.f32.mrb[0].mxu0
  %572 = vmatprep.mubr.f32.mxu0 0.0
  %573 = vmatmul.mubr.f32.gmra.mrb[0].mxu0 %v459
  %v574 = vpop.f32.mrb[0].mxu0
  %v575 = vadd.f32 0.0, %v574
  %v576 = vpop.f32.mrb[0].mxu0
  %577 = vmatprep.mubr.f32.mxu0 0.0
  %578 = vmatmul.mubr.f32.gmra.mrb[0].mxu0 %v462
  %v579 = vpop.f32.mrb[0].mxu0
  %v580 = vadd.f32 0.0, %v579
  %v581 = vpop.f32.mrb[0].mxu0
  %582 = vmatprep.mubr.f32.mxu0 0.0
  %583 = vmatmul.mubr.f32.gmra.mrb[0].mxu0 %v465
  %v584 = vpop.f32.mrb[0].mxu0
  %v585 = vadd.f32 0.0, %v584
  %v586 = vpop.f32.mrb[0].mxu0
  %587 = vmatprep.mubr.f32.mxu0 0.0
  %588 = vmatmul.mubr.f32.gmra.mrb[0].mxu0 %v468
  %v589 = vpop.f32.mrb[0].mxu0
  %v590 = vadd.f32 0.0, %v589
  %v591 = vpop.f32.mrb[0].mxu0
  %592 = vmatprep.mubr.f32.mxu0 0.0
  %593 = vmatmul.mubr.f32.gmra.mrb[0].mxu0 %v471
  %v594 = vpop.f32.mrb[0].mxu0
  %v595 = vadd.f32 0.0, %v594
  %v596 = vpop.f32.mrb[0].mxu0
  %597 = vmatprep.mubr.f32.mxu0 0.0
  %598 = vmatmul.mubr.f32.gmra.mrb[0].mxu0 %v474
  %v599 = vpop.f32.mrb[0].mxu0
  %v600 = vadd.f32 0.0, %v599
  %v601 = vpop.f32.mrb[0].mxu0
  %602 = vmatprep.mubr.f32.mxu0 0.0
  %603 = vmatmul.mubr.f32.gmra.mrb[0].mxu0 %v477
  %v604 = vpop.f32.mrb[0].mxu0
  %v605 = vadd.f32 0.0, %v604
  %v606 = vpop.f32.mrb[0].mxu0
  %607 = vmatprep.mubr.f32.mxu0 0.0
  %608 = vmatmul.mubr.f32.gmra.mrb[0].mxu0 %v480
  %v609 = vpop.f32.mrb[0].mxu0
  %v610 = vadd.f32 0.0, %v609
  %v611 = vpop.f32.mrb[0].mxu0
  %612 = vmatprep.mubr.f32.mxu0 0.0
  %613 = vmatmul.mubr.f32.gmra.mrb[0].mxu0 %v483
  %v614 = vpop.f32.mrb[0].mxu0
  %v615 = vadd.f32 0.0, %v614
  %v616 = vpop.f32.mrb[0].mxu0
  %617 = vmatprep.mubr.f32.mxu0 0.0
  %618 = vmatmul.mubr.f32.gmra.mrb[0].mxu0 %v486
  %v619 = vpop.f32.mrb[0].mxu0
  %v620 = vadd.f32 0.0, %v619
  %v621 = vpop.f32.mrb[0].mxu0
  %622 = vmatprep.mubr.f32.mxu0 0.0
  %623 = vmatmul.mubr.f32.gmra.mrb[0].mxu0 %v489
  %v624 = vpop.f32.mrb[0].mxu0
  %v625 = vadd.f32 0.0, %v624
  %v626 = vpop.f32.mrb[0].mxu0
  %627 = vmatprep.mubr.f32.mxu0 0.0
  %628 = vmatmul.mubr.f32.gmra.mrb[0].mxu0 %v492
  %v629 = vpop.f32.mrb[0].mxu0
  %v630 = vadd.f32 0.0, %v629
  %v631 = vpop.f32.mrb[0].mxu0
  %632 = vmatprep.mubr.f32.mxu0 0.0
  %633 = vmatmul.mubr.f32.gmra.mrb[0].mxu0 %v495
  %v634 = vpop.f32.mrb[0].mxu0
  %v635 = vadd.f32 0.0, %v634
  %v636 = vpop.f32.mrb[0].mxu0
  %637 = vmatprep.mubr.f32.mxu0 0.0
  %638 = vmatmul.mubr.f32.gmra.mrb[0].mxu0 %v498
  %v639 = vpop.f32.mrb[0].mxu0
  %v640 = vadd.f32 0.0, %v639
  %v641 = vpop.f32.mrb[0].mxu0
  %642 = vmatprep.mubr.f32.mxu0 0.0
  %643 = vmatmul.mubr.f32.gmra.mrb[0].mxu0 %v501
  %v644 = vpop.f32.mrb[0].mxu0
  %v645 = vadd.f32 0.0, %v644
  %v646 = vpop.f32.mrb[0].mxu0
  %647 = vdwg.mxu0
  %vm648 = vcmask 64512
  %649 = vst.msk [vmem:[#allocation2] sm:$0xff] %vm648, 0.0
  %vm650 = vcmask 58368
  %651 = vst.msk [vmem:[#allocation2 + $0x8] sm:$0x3] %vm650, 0.0
  %652 = vst.msk [vmem:[#allocation2 + $0xa0] sm:$0xff] %vm648, 0.0
  %653 = vst.msk [vmem:[#allocation2 + $0xa8] sm:$0x3] %vm650, 0.0
  %s654 = scalar_lea.vmem [#allocation2], 144
  %655 = vst.msk [vmem:[%s654] sm:$0xff] %vm648, 0.0
  %656 = vst.msk [vmem:[%s654 + $0x8] sm:$0x3] %vm650, 0.0
  %657 = vst.msk [vmem:[%s654 + $0xa0] sm:$0xff] %vm648, 0.0
  %658 = vst.msk [vmem:[%s654 + $0xa8] sm:$0x3] %vm650, 0.0
  %s659 = scalar_lea.vmem [#allocation2], 16
  %vm660 = vcmask 57344
  %661 = vst.msk [vmem:[%s659] sm:$0x1] %vm660, 0.0
  %662 = vst.msk [vmem:[%s659 + $0x10] sm:$0x1] %vm660, 0.0
  %663 = vst.msk [vmem:[%s659 + $0x20] sm:$0x1] %vm660, 0.0
  %664 = vst.msk [vmem:[%s659 + $0x30] sm:$0x1] %vm660, 0.0
  %665 = vst.msk [vmem:[%s659 + $0x40] sm:$0x1] %vm660, 0.0
  %666 = vst.msk [vmem:[%s659 + $0x50] sm:$0x1] %vm660, 0.0
  %667 = vst.msk [vmem:[%s659 + $0x60] sm:$0x1] %vm660, 0.0
  %668 = vst.msk [vmem:[%s659 + $0x70] sm:$0x1] %vm660, 0.0
  %669 = vst.msk [vmem:[%s659 + $0xa0] sm:$0x1] %vm660, 0.0
  %670 = vst.msk [vmem:[%s659 + $0xb0] sm:$0x1] %vm660, 0.0
  %671 = vst.msk [vmem:[%s659 + $0xc0] sm:$0x1] %vm660, 0.0
  %672 = vst.msk [vmem:[%s659 + $0xd0] sm:$0x1] %vm660, 0.0
  %673 = vst.msk [vmem:[%s659 + $0xe0] sm:$0x1] %vm660, 0.0
  %674 = vst.msk [vmem:[%s659 + $0xf0] sm:$0x1] %vm660, 0.0
  %675 = vst.msk [vmem:[%s659 + $0x100] sm:$0x1] %vm660, 0.0
  %676 = vst.msk [vmem:[%s659 + $0x110] sm:$0x1] %vm660, 0.0
  %677 = vst.msk [vmem:[%s659 + $0x9] sm:$0x1] %vm660, 0.0
  %678 = vst.msk [vmem:[%s659 + $0x19] sm:$0x1] %vm660, 0.0
  %679 = vst.msk [vmem:[%s659 + $0x29] sm:$0x1] %vm660, 0.0
  %680 = vst.msk [vmem:[%s659 + $0x39] sm:$0x1] %vm660, 0.0
  %681 = vst.msk [vmem:[%s659 + $0x49] sm:$0x1] %vm660, 0.0
  %682 = vst.msk [vmem:[%s659 + $0x59] sm:$0x1] %vm660, 0.0
  %683 = vst.msk [vmem:[%s659 + $0x69] sm:$0x1] %vm660, 0.0
  %684 = vst.msk [vmem:[%s659 + $0x79] sm:$0x1] %vm660, 0.0
  %685 = vst.msk [vmem:[%s659 + $0xa9] sm:$0x1] %vm660, 0.0
  %686 = vst.msk [vmem:[%s659 + $0xb9] sm:$0x1] %vm660, 0.0
  %687 = vst.msk [vmem:[%s659 + $0xc9] sm:$0x1] %vm660, 0.0
  %688 = vst.msk [vmem:[%s659 + $0xd9] sm:$0x1] %vm660, 0.0
  %689 = vst.msk [vmem:[%s659 + $0xe9] sm:$0x1] %vm660, 0.0
  %690 = vst.msk [vmem:[%s659 + $0xf9] sm:$0x1] %vm660, 0.0
  %691 = vst.msk [vmem:[%s659 + $0x109] sm:$0x1] %vm660, 0.0
  %692 = vst.msk [vmem:[%s659 + $0x119] sm:$0x1] %vm660, 0.0
  %v693 = vmax.f32 %v570, 0.0
  %v694 = vmax.f32 %v575, 0.0
  %v695 = vmax.f32 %v580, 0.0
  %v696 = vmax.f32 %v585, 0.0
  %v697 = vmax.f32 %v590, 0.0
  %v698 = vmax.f32 %v595, 0.0
  %v699 = vmax.f32 %v600, 0.0
  %v700 = vmax.f32 %v605, 0.0
  %v701 = vmax.f32 %v610, 0.0
  %v702 = vmax.f32 %v615, 0.0
  %v703 = vmax.f32 %v620, 0.0
  %v704 = vmax.f32 %v625, 0.0
  %v705 = vmax.f32 %v630, 0.0
  %v706 = vmax.f32 %v635, 0.0
  %v707 = vmax.f32 %v640, 0.0
  %v708 = vmax.f32 %v645, 0.0
  %709 = vst.msk [vmem:[%s659 + $0x1] sm:$0xff] %vm648, %v693
  %710 = vst.msk [vmem:[%s659 + $0x11] sm:$0xff] %vm648, %v694
  %711 = vst.msk [vmem:[%s659 + $0x21] sm:$0xff] %vm648, %v695
  %712 = vst.msk [vmem:[%s659 + $0x31] sm:$0xff] %vm648, %v696
  %713 = vst.msk [vmem:[%s659 + $0x41] sm:$0xff] %vm648, %v697
  %714 = vst.msk [vmem:[%s659 + $0x51] sm:$0xff] %vm648, %v698
  %715 = vst.msk [vmem:[%s659 + $0x61] sm:$0xff] %vm648, %v699
  %716 = vst.msk [vmem:[%s659 + $0x71] sm:$0xff] %vm648, %v700
  %717 = vst.msk [vmem:[%s659 + $0xa1] sm:$0xff] %vm648, %v701
  %718 = vst.msk [vmem:[%s659 + $0xb1] sm:$0xff] %vm648, %v702
  %719 = vst.msk [vmem:[%s659 + $0xc1] sm:$0xff] %vm648, %v703
  %720 = vst.msk [vmem:[%s659 + $0xd1] sm:$0xff] %vm648, %v704
  %721 = vst.msk [vmem:[%s659 + $0xe1] sm:$0xff] %vm648, %v705
  %722 = vst.msk [vmem:[%s659 + $0xf1] sm:$0xff] %vm648, %v706
  %723 = vst.msk [vmem:[%s659 + $0x101] sm:$0xff] %vm648, %v707
  %724 = vst.msk [vmem:[%s659 + $0x111] sm:$0xff] %vm648, %v708
  %v725 = vld [vmem:[#allocation2] sm:$0xff]
  %v726 = vld [vmem:[#allocation2 + $0x10] sm:$0xff]
  %v727 = vld [vmem:[#allocation2 + $0x20] sm:$0xff]
  %v728 = vld [vmem:[#allocation2 + $0x30] sm:$0xff]
  %v729 = vld [vmem:[#allocation2 + $0x40] sm:$0xff]
  %v730 = vld [vmem:[#allocation2 + $0x50] sm:$0xff]
  %v731 = vld [vmem:[#allocation2 + $0x60] sm:$0xff]
  %v732 = vld [vmem:[#allocation2 + $0x70] sm:$0xff]
  %v733 = vld [vmem:[#allocation2 + $0xa0] sm:$0xff]
  %v734 = vld [vmem:[#allocation2 + $0xb0] sm:$0xff]
  %v735 = vld [vmem:[#allocation2 + $0xc0] sm:$0xff]
  %v736 = vld [vmem:[#allocation2 + $0xd0] sm:$0xff]
  %v737 = vld [vmem:[#allocation2 + $0xe0] sm:$0xff]
  %v738 = vld [vmem:[#allocation2 + $0xf0] sm:$0xff]
  %v739 = vld [vmem:[#allocation2 + $0x100] sm:$0xff]
  %v740 = vld [vmem:[#allocation2 + $0x110] sm:$0xff]
  %v741 = vld [vmem:[#allocation2 + $0x1] sm:$0xff]
  %v742 = vld [vmem:[#allocation2 + $0x11] sm:$0xff]
  %v743 = vld [vmem:[#allocation2 + $0x21] sm:$0xff]
  %v744 = vld [vmem:[#allocation2 + $0x31] sm:$0xff]
  %v745 = vld [vmem:[#allocation2 + $0x41] sm:$0xff]
  %v746 = vld [vmem:[#allocation2 + $0x51] sm:$0xff]
  %v747 = vld [vmem:[#allocation2 + $0x61] sm:$0xff]
  %v748 = vld [vmem:[#allocation2 + $0x71] sm:$0xff]
  %v749 = vld [vmem:[#allocation2 + $0xa1] sm:$0xff]
  %v750 = vld [vmem:[#allocation2 + $0xb1] sm:$0xff]
  %v751 = vld [vmem:[#allocation2 + $0xc1] sm:$0xff]
  %v752 = vld [vmem:[#allocation2 + $0xd1] sm:$0xff]
  %v753 = vld [vmem:[#allocation2 + $0xe1] sm:$0xff]
  %v754 = vld [vmem:[#allocation2 + $0xf1] sm:$0xff]
  %v755 = vld [vmem:[#allocation2 + $0x101] sm:$0xff]
  %v756 = vld [vmem:[#allocation2 + $0x111] sm:$0xff]
  %v757 = vld [vmem:[%s659] sm:$0xff]
  %v758 = vld [vmem:[%s659 + $0x10] sm:$0xff]
  %v759 = vld [vmem:[%s659 + $0x20] sm:$0xff]
  %v760 = vld [vmem:[%s659 + $0x30] sm:$0xff]
  %v761 = vld [vmem:[%s659 + $0x40] sm:$0xff]
  %v762 = vld [vmem:[%s659 + $0x50] sm:$0xff]
  %v763 = vld [vmem:[%s659 + $0x60] sm:$0xff]
  %v764 = vld [vmem:[%s659 + $0x70] sm:$0xff]
  %v765 = vld [vmem:[%s659 + $0xa0] sm:$0xff]
  %v766 = vld [vmem:[%s659 + $0xb0] sm:$0xff]
  %v767 = vld [vmem:[%s659 + $0xc0] sm:$0xff]
  %v768 = vld [vmem:[%s659 + $0xd0] sm:$0xff]
  %v769 = vld [vmem:[%s659 + $0xe0] sm:$0xff]
  %v770 = vld [vmem:[%s659 + $0xf0] sm:$0xff]
  %v771 = vld [vmem:[%s659 + $0x100] sm:$0xff]
  %v772 = vld [vmem:[%s659 + $0x110] sm:$0xff]
  %v773 = vld [vmem:[%s659 + $0x1] sm:$0xff]
  %v774 = vld [vmem:[%s659 + $0x11] sm:$0xff]
  %v775 = vld [vmem:[%s659 + $0x21] sm:$0xff]
  %v776 = vld [vmem:[%s659 + $0x31] sm:$0xff]
  %v777 = vld [vmem:[%s659 + $0x41] sm:$0xff]
  %v778 = vld [vmem:[%s659 + $0x51] sm:$0xff]
  %v779 = vld [vmem:[%s659 + $0x61] sm:$0xff]
  %v780 = vld [vmem:[%s659 + $0x71] sm:$0xff]
  %v781 = vld [vmem:[%s659 + $0xa1] sm:$0xff]
  %v782 = vld [vmem:[%s659 + $0xb1] sm:$0xff]
  %v783 = vld [vmem:[%s659 + $0xc1] sm:$0xff]
  %v784 = vld [vmem:[%s659 + $0xd1] sm:$0xff]
  %v785 = vld [vmem:[%s659 + $0xe1] sm:$0xff]
  %v786 = vld [vmem:[%s659 + $0xf1] sm:$0xff]
  %v787 = vld [vmem:[%s659 + $0x101] sm:$0xff]
  %v788 = vld [vmem:[%s659 + $0x111] sm:$0xff]
  %805 = vrot.lane.b32.xlu0 %v741, 8
  %v806 = vpop.permute.xlu0 %805
  %807 = vrot.lane.b32.xlu0 %v742, 8
  %v808 = vpop.permute.xlu0 %807
  %809 = vrot.lane.b32.xlu0 %v743, 8
  %v810 = vpop.permute.xlu0 %809
  %811 = vrot.lane.b32.xlu0 %v744, 8
  %v812 = vpop.permute.xlu0 %811
  %813 = vrot.lane.b32.xlu0 %v745, 8
  %v814 = vpop.permute.xlu0 %813
  %815 = vrot.lane.b32.xlu0 %v746, 8
  %v816 = vpop.permute.xlu0 %815
  %817 = vrot.lane.b32.xlu0 %v747, 8
  %v818 = vpop.permute.xlu0 %817
  %819 = vrot.lane.b32.xlu0 %v748, 8
  %v820 = vpop.permute.xlu0 %819
  %821 = vrot.lane.b32.xlu0 %v749, 8
  %v822 = vpop.permute.xlu0 %821
  %823 = vrot.lane.b32.xlu0 %v750, 8
  %v824 = vpop.permute.xlu0 %823
  %825 = vrot.lane.b32.xlu0 %v751, 8
  %v826 = vpop.permute.xlu0 %825
  %827 = vrot.lane.b32.xlu0 %v752, 8
  %v828 = vpop.permute.xlu0 %827
  %829 = vrot.lane.b32.xlu0 %v753, 8
  %v830 = vpop.permute.xlu0 %829
  %831 = vrot.lane.b32.xlu0 %v754, 8
  %v832 = vpop.permute.xlu0 %831
  %833 = vrot.lane.b32.xlu0 %v755, 8
  %v834 = vpop.permute.xlu0 %833
  %835 = vrot.lane.b32.xlu0 %v756, 8
  %v836 = vpop.permute.xlu0 %835
  %869 = vrot.lane.b32.xlu0 %v757, 16
  %v870 = vpop.permute.xlu0 %869
  %871 = vrot.lane.b32.xlu0 %v758, 16
  %v872 = vpop.permute.xlu0 %871
  %873 = vrot.lane.b32.xlu0 %v759, 16
  %v874 = vpop.permute.xlu0 %873
  %875 = vrot.lane.b32.xlu0 %v760, 16
  %v876 = vpop.permute.xlu0 %875
  %877 = vrot.lane.b32.xlu0 %v761, 16
  %v878 = vpop.permute.xlu0 %877
  %879 = vrot.lane.b32.xlu0 %v762, 16
  %v880 = vpop.permute.xlu0 %879
  %881 = vrot.lane.b32.xlu0 %v763, 16
  %v882 = vpop.permute.xlu0 %881
  %883 = vrot.lane.b32.xlu0 %v764, 16
  %v884 = vpop.permute.xlu0 %883
  %885 = vrot.lane.b32.xlu0 %v765, 16
  %v886 = vpop.permute.xlu0 %885
  %887 = vrot.lane.b32.xlu0 %v766, 16
  %v888 = vpop.permute.xlu0 %887
  %889 = vrot.lane.b32.xlu0 %v767, 16
  %v890 = vpop.permute.xlu0 %889
  %891 = vrot.lane.b32.xlu0 %v768, 16
  %v892 = vpop.permute.xlu0 %891
  %893 = vrot.lane.b32.xlu0 %v769, 16
  %v894 = vpop.permute.xlu0 %893
  %895 = vrot.lane.b32.xlu0 %v770, 16
  %v896 = vpop.permute.xlu0 %895
  %897 = vrot.lane.b32.xlu0 %v771, 16
  %v898 = vpop.permute.xlu0 %897
  %899 = vrot.lane.b32.xlu0 %v772, 16
  %v900 = vpop.permute.xlu0 %899
  %933 = vrot.lane.b32.xlu0 %v773, 24
  %v934 = vpop.permute.xlu0 %933
  %935 = vrot.lane.b32.xlu0 %v774, 24
  %v936 = vpop.permute.xlu0 %935
  %937 = vrot.lane.b32.xlu0 %v775, 24
  %v938 = vpop.permute.xlu0 %937
  %939 = vrot.lane.b32.xlu0 %v776, 24
  %v940 = vpop.permute.xlu0 %939
  %941 = vrot.lane.b32.xlu0 %v777, 24
  %v942 = vpop.permute.xlu0 %941
  %943 = vrot.lane.b32.xlu0 %v778, 24
  %v944 = vpop.permute.xlu0 %943
  %945 = vrot.lane.b32.xlu0 %v779, 24
  %v946 = vpop.permute.xlu0 %945
  %947 = vrot.lane.b32.xlu0 %v780, 24
  %v948 = vpop.permute.xlu0 %947
  %949 = vrot.lane.b32.xlu0 %v781, 24
  %v950 = vpop.permute.xlu0 %949
  %951 = vrot.lane.b32.xlu0 %v782, 24
  %v952 = vpop.permute.xlu0 %951
  %953 = vrot.lane.b32.xlu0 %v783, 24
  %v954 = vpop.permute.xlu0 %953
  %955 = vrot.lane.b32.xlu0 %v784, 24
  %v956 = vpop.permute.xlu0 %955
  %957 = vrot.lane.b32.xlu0 %v785, 24
  %v958 = vpop.permute.xlu0 %957
  %959 = vrot.lane.b32.xlu0 %v786, 24
  %v960 = vpop.permute.xlu0 %959
  %961 = vrot.lane.b32.xlu0 %v787, 24
  %v962 = vpop.permute.xlu0 %961
  %963 = vrot.lane.b32.xlu0 %v788, 24
  %v964 = vpop.permute.xlu0 %963
  %v981 = vsel %vm648, %v725, %v806
  %v982 = vsel %vm648, %v726, %v808
  %v983 = vsel %vm648, %v727, %v810
  %v984 = vsel %vm648, %v728, %v812
  %v985 = vsel %vm648, %v729, %v814
  %v986 = vsel %vm648, %v730, %v816
  %v987 = vsel %vm648, %v731, %v818
  %v988 = vsel %vm648, %v732, %v820
  %v989 = vsel %vm648, %v733, %v822
  %v990 = vsel %vm648, %v734, %v824
  %v991 = vsel %vm648, %v735, %v826
  %v992 = vsel %vm648, %v736, %v828
  %v993 = vsel %vm648, %v737, %v830
  %v994 = vsel %vm648, %v738, %v832
  %v995 = vsel %vm648, %v739, %v834
  %v996 = vsel %vm648, %v740, %v836
  %v997 = vsel %vm395, %v981, %v870
  %v998 = vsel %vm395, %v982, %v872
  %v999 = vsel %vm395, %v983, %v874
  %v1000 = vsel %vm395, %v984, %v876
  %v1001 = vsel %vm395, %v985, %v878
  %v1002 = vsel %vm395, %v986, %v880
  %v1003 = vsel %vm395, %v987, %v882
  %v1004 = vsel %vm395, %v988, %v884
  %v1005 = vsel %vm395, %v989, %v886
  %v1006 = vsel %vm395, %v990, %v888
  %v1007 = vsel %vm395, %v991, %v890
  %v1008 = vsel %vm395, %v992, %v892
  %v1009 = vsel %vm395, %v993, %v894
  %v1010 = vsel %vm395, %v994, %v896
  %v1011 = vsel %vm395, %v995, %v898
  %v1012 = vsel %vm395, %v996, %v900
  %vm1013 = vcmask 195584
  %v1014 = vsel %vm1013, %v997, %v934
  %v1015 = vsel %vm1013, %v998, %v936
  %v1016 = vsel %vm1013, %v999, %v938
  %v1017 = vsel %vm1013, %v1000, %v940
  %v1018 = vsel %vm1013, %v1001, %v942
  %v1019 = vsel %vm1013, %v1002, %v944
  %v1020 = vsel %vm1013, %v1003, %v946
  %v1021 = vsel %vm1013, %v1004, %v948
  %v1022 = vsel %vm1013, %v1005, %v950
  %v1023 = vsel %vm1013, %v1006, %v952
  %v1024 = vsel %vm1013, %v1007, %v954
  %v1025 = vsel %vm1013, %v1008, %v956
  %v1026 = vsel %vm1013, %v1009, %v958
  %v1027 = vsel %vm1013, %v1010, %v960
  %v1028 = vsel %vm1013, %v1011, %v962
  %v1029 = vsel %vm1013, %v1012, %v964
  %v1030 = vld [vmem:[%s2] sm:$0xff]
  %v1031 = vld [vmem:[%s2 + $0x8] sm:$0xff]
  %v1032 = vld [vmem:[%s2 + $0x10] sm:$0xff]
  %v1033 = vld [vmem:[%s2 + $0x18] sm:$0xff]
  %v1035 = vsel %vm412, %v1014, 0
  %v1038 = vsel %vm412, %v1015, 0
  %v1041 = vsel %vm412, %v1016, 0
  %v1044 = vsel %vm412, %v1017, 0
  %v1047 = vsel %vm412, %v1018, 0
  %v1050 = vsel %vm412, %v1019, 0
  %v1053 = vsel %vm412, %v1020, 0
  %v1056 = vsel %vm412, %v1021, 0
  %v1059 = vsel %vm412, %v1022, 0
  %v1062 = vsel %vm412, %v1023, 0
  %v1065 = vsel %vm412, %v1024, 0
  %v1068 = vsel %vm412, %v1025, 0
  %v1071 = vsel %vm412, %v1026, 0
  %v1074 = vsel %vm412, %v1027, 0
  %v1077 = vsel %vm412, %v1028, 0
  %v1080 = vsel %vm412, %v1029, 0
  %1082 = vmatprep.subr.mxu0 0.0
  %1083 = vmatpush1.msra.mxu0 %v1030
  %1084 = vmatprep.subr.mxu0 0.0
  %1085 = vmatpush1.msra.mxu0 %v1031
  %1086 = vmatprep.subr.mxu0 0.0
  %1087 = vmatpush1.msra.mxu0 %v1032
  %1088 = vmatprep.subr.mxu0 0.0
  %1089 = vmatpush1.msra.mxu0 %v1033
  %1090 = vmatprep.subr.mxu0 0.0
  %1091 = vmatpush1.msra.mxu0 0.0
  %1092 = vmatprep.subr.mxu0 0.0
  %1093 = vmatpush1.msra.mxu0 0.0
  %1094 = vmatprep.subr.mxu0 0.0
  %1095 = vmatpush1.msra.mxu0 0.0
  %1096 = vmatprep.subr.mxu0 0.0
  %1097 = vmatpush1.msra.mxu0 0.0
  %1098 = vmatprep.subr.mxu0 0.0
  %1099 = vmatpush1.msra.mxu0 0.0
  %1100 = vmatprep.subr.mxu0 0.0
  %1101 = vmatpush1.msra.mxu0 0.0
  %1102 = vmatprep.subr.mxu0 0.0
  %1103 = vmatpush1.msra.mxu0 0.0
  %1104 = vmatprep.subr.mxu0 0.0
  %1105 = vmatpush1.msra.mxu0 0.0
  %1106 = vmatprep.subr.mxu0 0.0
  %1107 = vmatpush1.msra.mxu0 0.0
  %1108 = vmatprep.subr.mxu0 0.0
  %1109 = vmatpush1.msra.mxu0 0.0
  %1110 = vmatprep.subr.mxu0 0.0
  %1111 = vmatpush1.msra.mxu0 0.0
  %1112 = vmatprep.subr.mxu0 0.0
  %1113 = vmatpush1.msra.mxu0 0.0
  %1114 = vmatprep.subr.mxu0 0.0
  %1115 = vmatpush1.msra.mxu0 0.0
  %1116 = vmatprep.subr.mxu0 0.0
  %1117 = vmatpush1.msra.mxu0 0.0
  %1118 = vmatprep.subr.mxu0 0.0
  %1119 = vmatpush1.msra.mxu0 0.0
  %1120 = vmatprep.subr.mxu0 0.0
  %1121 = vmatpush1.msra.mxu0 0.0
  %1122 = vmatprep.subr.mxu0 0.0
  %1123 = vmatpush1.msra.mxu0 0.0
  %1124 = vmatprep.subr.mxu0 0.0
  %1125 = vmatpush1.msra.mxu0 0.0
  %1126 = vmatprep.subr.mxu0 0.0
  %1127 = vmatpush1.msra.mxu0 0.0
  %1128 = vmatprep.subr.mxu0 0.0
  %1129 = vmatpush1.msra.mxu0 0.0
  %1130 = vmatprep.subr.mxu0 0.0
  %1131 = vmatpush1.msra.mxu0 0.0
  %1132 = vmatprep.subr.mxu0 0.0
  %1133 = vmatpush1.msra.mxu0 0.0
  %1134 = vmatprep.subr.mxu0 0.0
  %1135 = vmatpush1.msra.mxu0 0.0
  %1136 = vmatprep.subr.mxu0 0.0
  %1137 = vmatpush1.msra.mxu0 0.0
  %1138 = vmatprep.subr.mxu0 0.0
  %1139 = vmatpush1.msra.mxu0 0.0
  %1140 = vmatprep.subr.mxu0 0.0
  %1141 = vmatpush1.msra.mxu0 0.0
  %1142 = vmatprep.subr.mxu0 0.0
  %1143 = vmatpush1.msra.mxu0 0.0
  %1144 = vmatprep.subr.mxu0 0.0
  %1145 = vmatpush1.msra.mxu0 0.0
  %1146 = vmatprep.mubr.f32.mxu0 0.0
  %1147 = vmatmul.mubr.f32.gmra.mrb[0].mxu0 %v1035
  %v1148 = vpop.f32.mrb[0].mxu0
  %v1149 = vadd.f32 0.0, %v1148
  %v1150 = vpop.f32.mrb[0].mxu0
  %1151 = vmatprep.mubr.f32.mxu0 0.0
  %1152 = vmatmul.mubr.f32.gmra.mrb[0].mxu0 %v1038
  %v1153 = vpop.f32.mrb[0].mxu0
  %v1154 = vadd.f32 0.0, %v1153
  %v1155 = vpop.f32.mrb[0].mxu0
  %1156 = vmatprep.mubr.f32.mxu0 0.0
  %1157 = vmatmul.mubr.f32.gmra.mrb[0].mxu0 %v1041
  %v1158 = vpop.f32.mrb[0].mxu0
  %v1159 = vadd.f32 0.0, %v1158
  %v1160 = vpop.f32.mrb[0].mxu0
  %1161 = vmatprep.mubr.f32.mxu0 0.0
  %1162 = vmatmul.mubr.f32.gmra.mrb[0].mxu0 %v1044
  %v1163 = vpop.f32.mrb[0].mxu0
  %v1164 = vadd.f32 0.0, %v1163
  %v1165 = vpop.f32.mrb[0].mxu0
  %1166 = vmatprep.mubr.f32.mxu0 0.0
  %1167 = vmatmul.mubr.f32.gmra.mrb[0].mxu0 %v1047
  %v1168 = vpop.f32.mrb[0].mxu0
  %v1169 = vadd.f32 0.0, %v1168
  %v1170 = vpop.f32.mrb[0].mxu0
  %1171 = vmatprep.mubr.f32.mxu0 0.0
  %1172 = vmatmul.mubr.f32.gmra.mrb[0].mxu0 %v1050
  %v1173 = vpop.f32.mrb[0].mxu0
  %v1174 = vadd.f32 0.0, %v1173
  %v1175 = vpop.f32.mrb[0].mxu0
  %1176 = vmatprep.mubr.f32.mxu0 0.0
  %1177 = vmatmul.mubr.f32.gmra.mrb[0].mxu0 %v1053
  %v1178 = vpop.f32.mrb[0].mxu0
  %v1179 = vadd.f32 0.0, %v1178
  %v1180 = vpop.f32.mrb[0].mxu0
  %1181 = vmatprep.mubr.f32.mxu0 0.0
  %1182 = vmatmul.mubr.f32.gmra.mrb[0].mxu0 %v1056
  %v1183 = vpop.f32.mrb[0].mxu0
  %v1184 = vadd.f32 0.0, %v1183
  %v1185 = vpop.f32.mrb[0].mxu0
  %1186 = vmatprep.mubr.f32.mxu0 0.0
  %1187 = vmatmul.mubr.f32.gmra.mrb[0].mxu0 %v1059
  %v1188 = vpop.f32.mrb[0].mxu0
  %v1189 = vadd.f32 0.0, %v1188
  %v1190 = vpop.f32.mrb[0].mxu0
  %1191 = vmatprep.mubr.f32.mxu0 0.0
  %1192 = vmatmul.mubr.f32.gmra.mrb[0].mxu0 %v1062
  %v1193 = vpop.f32.mrb[0].mxu0
  %v1194 = vadd.f32 0.0, %v1193
  %v1195 = vpop.f32.mrb[0].mxu0
  %1196 = vmatprep.mubr.f32.mxu0 0.0
  %1197 = vmatmul.mubr.f32.gmra.mrb[0].mxu0 %v1065
  %v1198 = vpop.f32.mrb[0].mxu0
  %v1199 = vadd.f32 0.0, %v1198
  %v1200 = vpop.f32.mrb[0].mxu0
  %1201 = vmatprep.mubr.f32.mxu0 0.0
  %1202 = vmatmul.mubr.f32.gmra.mrb[0].mxu0 %v1068
  %v1203 = vpop.f32.mrb[0].mxu0
  %v1204 = vadd.f32 0.0, %v1203
  %v1205 = vpop.f32.mrb[0].mxu0
  %1206 = vmatprep.mubr.f32.mxu0 0.0
  %1207 = vmatmul.mubr.f32.gmra.mrb[0].mxu0 %v1071
  %v1208 = vpop.f32.mrb[0].mxu0
  %v1209 = vadd.f32 0.0, %v1208
  %v1210 = vpop.f32.mrb[0].mxu0
  %1211 = vmatprep.mubr.f32.mxu0 0.0
  %1212 = vmatmul.mubr.f32.gmra.mrb[0].mxu0 %v1074
  %v1213 = vpop.f32.mrb[0].mxu0
  %v1214 = vadd.f32 0.0, %v1213
  %v1215 = vpop.f32.mrb[0].mxu0
  %1216 = vmatprep.mubr.f32.mxu0 0.0
  %1217 = vmatmul.mubr.f32.gmra.mrb[0].mxu0 %v1077
  %v1218 = vpop.f32.mrb[0].mxu0
  %v1219 = vadd.f32 0.0, %v1218
  %v1220 = vpop.f32.mrb[0].mxu0
  %1221 = vmatprep.mubr.f32.mxu0 0.0
  %1222 = vmatmul.mubr.f32.gmra.mrb[0].mxu0 %v1080
  %v1223 = vpop.f32.mrb[0].mxu0
  %v1224 = vadd.f32 0.0, %v1223
  %v1225 = vpop.f32.mrb[0].mxu0
  %1226 = vdwg.mxu0
  %vm1227 = vcmask 31744
  %v1228 = vsel %vm1227, %v1149, 0.0
  %v1229 = vsel %vm1227, %v1154, 0.0
  %v1230 = vadd.f32 %v1228, %v1229
  %v1231 = vsel %vm1227, %v1159, 0.0
  %v1232 = vadd.f32 %v1230, %v1231
  %v1233 = vsel %vm1227, %v1164, 0.0
  %v1234 = vadd.f32 %v1232, %v1233
  %v1235 = vsel %vm1227, %v1169, 0.0
  %v1236 = vadd.f32 %v1234, %v1235
  %v1237 = vsel %vm1227, %v1174, 0.0
  %v1238 = vadd.f32 %v1236, %v1237
  %v1239 = vsel %vm1227, %v1179, 0.0
  %v1240 = vadd.f32 %v1238, %v1239
  %v1241 = vsel %vm1227, %v1184, 0.0
  %v1242 = vadd.f32 %v1240, %v1241
  %v1243 = vsel %vm1227, %v1189, 0.0
  %v1244 = vadd.f32 %v1242, %v1243
  %v1245 = vsel %vm1227, %v1194, 0.0
  %v1246 = vadd.f32 %v1244, %v1245
  %v1247 = vsel %vm1227, %v1199, 0.0
  %v1248 = vadd.f32 %v1246, %v1247
  %v1249 = vsel %vm1227, %v1204, 0.0
  %v1250 = vadd.f32 %v1248, %v1249
  %v1251 = vsel %vm1227, %v1209, 0.0
  %v1252 = vadd.f32 %v1250, %v1251
  %v1253 = vsel %vm1227, %v1214, 0.0
  %v1254 = vadd.f32 %v1252, %v1253
  %v1255 = vsel %vm1227, %v1219, 0.0
  %v1256 = vadd.f32 %v1254, %v1255
  %v1257 = vsel %vm1227, %v1224, 0.0
  %v1258 = vadd.f32 %v1256, %v1257
  %v1259 = vrot.slane %v1258, 4
  %v1260 = vadd.f32 %v1258, %v1259
  %v1261 = vrot.slane %v1260, 2
  %v1262 = vadd.f32 %v1260, %v1261
  %v1263 = vrot.slane %v1262, 1
  %v1264 = vadd.f32 %v1262, %v1263
  %v1265 = vadd.f32 %v1264, 0.0
  %v1266 = vmul.f32 %v1149, %v1149
  %v1267 = vmul.f32 %v1154, %v1154
  %v1268 = vmul.f32 %v1159, %v1159
  %v1269 = vmul.f32 %v1164, %v1164
  %v1270 = vmul.f32 %v1169, %v1169
  %v1271 = vmul.f32 %v1174, %v1174
  %v1272 = vmul.f32 %v1179, %v1179
  %v1273 = vmul.f32 %v1184, %v1184
  %v1274 = vmul.f32 %v1189, %v1189
  %v1275 = vmul.f32 %v1194, %v1194
  %v1276 = vmul.f32 %v1199, %v1199
  %v1277 = vmul.f32 %v1204, %v1204
  %v1278 = vmul.f32 %v1209, %v1209
  %v1279 = vmul.f32 %v1214, %v1214
  %v1280 = vmul.f32 %v1219, %v1219
  %v1281 = vmul.f32 %v1224, %v1224
  %v1282 = vsel %vm1227, %v1266, 0.0
  %v1283 = vsel %vm1227, %v1267, 0.0
  %v1284 = vadd.f32 %v1282, %v1283
  %v1285 = vsel %vm1227, %v1268, 0.0
  %v1286 = vadd.f32 %v1284, %v1285
  %v1287 = vsel %vm1227, %v1269, 0.0
  %v1288 = vadd.f32 %v1286, %v1287
  %v1289 = vsel %vm1227, %v1270, 0.0
  %v1290 = vadd.f32 %v1288, %v1289
  %v1291 = vsel %vm1227, %v1271, 0.0
  %v1292 = vadd.f32 %v1290, %v1291
  %v1293 = vsel %vm1227, %v1272, 0.0
  %v1294 = vadd.f32 %v1292, %v1293
  %v1295 = vsel %vm1227, %v1273, 0.0
  %v1296 = vadd.f32 %v1294, %v1295
  %v1297 = vsel %vm1227, %v1274, 0.0
  %v1298 = vadd.f32 %v1296, %v1297
  %v1299 = vsel %vm1227, %v1275, 0.0
  %v1300 = vadd.f32 %v1298, %v1299
  %v1301 = vsel %vm1227, %v1276, 0.0
  %v1302 = vadd.f32 %v1300, %v1301
  %v1303 = vsel %vm1227, %v1277, 0.0
  %v1304 = vadd.f32 %v1302, %v1303
  %v1305 = vsel %vm1227, %v1278, 0.0
  %v1306 = vadd.f32 %v1304, %v1305
  %v1307 = vsel %vm1227, %v1279, 0.0
  %v1308 = vadd.f32 %v1306, %v1307
  %v1309 = vsel %vm1227, %v1280, 0.0
  %v1310 = vadd.f32 %v1308, %v1309
  %v1311 = vsel %vm1227, %v1281, 0.0
  %v1312 = vadd.f32 %v1310, %v1311
  %v1313 = vrot.slane %v1312, 4
  %v1314 = vadd.f32 %v1312, %v1313
  %v1315 = vrot.slane %v1314, 2
  %v1316 = vadd.f32 %v1314, %v1315
  %v1317 = vrot.slane %v1316, 1
  %v1318 = vadd.f32 %v1316, %v1317
  %v1319 = vadd.f32 %v1318, 0.0
  %1320 = vst.msk [vmem:[%s3] sm:$0xff] %vm1227, %v1149
  %1321 = vst.msk [vmem:[%s3 + $0x10] sm:$0xff] %vm1227, %v1154
  %1322 = vst.msk [vmem:[%s3 + $0x20] sm:$0xff] %vm1227, %v1159
  %1323 = vst.msk [vmem:[%s3 + $0x30] sm:$0xff] %vm1227, %v1164
  %1324 = vst.msk [vmem:[%s3 + $0x40] sm:$0xff] %vm1227, %v1169
  %1325 = vst.msk [vmem:[%s3 + $0x50] sm:$0xff] %vm1227, %v1174
  %1326 = vst.msk [vmem:[%s3 + $0x60] sm:$0xff] %vm1227, %v1179
  %1327 = vst.msk [vmem:[%s3 + $0x70] sm:$0xff] %vm1227, %v1184
  %1328 = vst.msk [vmem:[%s3 + $0x80] sm:$0xff] %vm1227, %v1189
  %1329 = vst.msk [vmem:[%s3 + $0x90] sm:$0xff] %vm1227, %v1194
  %1330 = vst.msk [vmem:[%s3 + $0xa0] sm:$0xff] %vm1227, %v1199
  %1331 = vst.msk [vmem:[%s3 + $0xb0] sm:$0xff] %vm1227, %v1204
  %1332 = vst.msk [vmem:[%s3 + $0xc0] sm:$0xff] %vm1227, %v1209
  %1333 = vst.msk [vmem:[%s3 + $0xd0] sm:$0xff] %vm1227, %v1214
  %1334 = vst.msk [vmem:[%s3 + $0xe0] sm:$0xff] %vm1227, %v1219
  %1335 = vst.msk [vmem:[%s3 + $0xf0] sm:$0xff] %vm1227, %v1224
  %v1336 = vld [vmem:[#allocation2 + $0x1] sm:$0xff]
  %v1337 = vld [vmem:[#allocation2 + $0x11] sm:$0xff]
  %v1338 = vld [vmem:[#allocation2 + $0x21] sm:$0xff]
  %v1339 = vld [vmem:[#allocation2 + $0x31] sm:$0xff]
  %v1340 = vld [vmem:[#allocation2 + $0x41] sm:$0xff]
  %v1341 = vld [vmem:[#allocation2 + $0x51] sm:$0xff]
  %v1342 = vld [vmem:[#allocation2 + $0x61] sm:$0xff]
  %v1343 = vld [vmem:[#allocation2 + $0x71] sm:$0xff]
  %v1344 = vld [vmem:[#allocation2 + $0xa1] sm:$0xff]
  %v1345 = vld [vmem:[#allocation2 + $0xb1] sm:$0xff]
  %v1346 = vld [vmem:[#allocation2 + $0xc1] sm:$0xff]
  %v1347 = vld [vmem:[#allocation2 + $0xd1] sm:$0xff]
  %v1348 = vld [vmem:[#allocation2 + $0xe1] sm:$0xff]
  %v1349 = vld [vmem:[#allocation2 + $0xf1] sm:$0xff]
  %v1350 = vld [vmem:[#allocation2 + $0x101] sm:$0xff]
  %v1351 = vld [vmem:[#allocation2 + $0x111] sm:$0xff]
  %v1352 = vld [vmem:[#allocation2 + $0x2] sm:$0xff]
  %v1353 = vld [vmem:[#allocation2 + $0x12] sm:$0xff]
  %v1354 = vld [vmem:[#allocation2 + $0x22] sm:$0xff]
  %v1355 = vld [vmem:[#allocation2 + $0x32] sm:$0xff]
  %v1356 = vld [vmem:[#allocation2 + $0x42] sm:$0xff]
  %v1357 = vld [vmem:[#allocation2 + $0x52] sm:$0xff]
  %v1358 = vld [vmem:[#allocation2 + $0x62] sm:$0xff]
  %v1359 = vld [vmem:[#allocation2 + $0x72] sm:$0xff]
  %v1360 = vld [vmem:[#allocation2 + $0xa2] sm:$0xff]
  %v1361 = vld [vmem:[#allocation2 + $0xb2] sm:$0xff]
  %v1362 = vld [vmem:[#allocation2 + $0xc2] sm:$0xff]
  %v1363 = vld [vmem:[#allocation2 + $0xd2] sm:$0xff]
  %v1364 = vld [vmem:[#allocation2 + $0xe2] sm:$0xff]
  %v1365 = vld [vmem:[#allocation2 + $0xf2] sm:$0xff]
  %v1366 = vld [vmem:[#allocation2 + $0x102] sm:$0xff]
  %v1367 = vld [vmem:[#allocation2 + $0x112] sm:$0xff]
  %v1368 = vld [vmem:[%s659 + $0x1] sm:$0xff]
  %v1369 = vld [vmem:[%s659 + $0x11] sm:$0xff]
  %v1370 = vld [vmem:[%s659 + $0x21] sm:$0xff]
  %v1371 = vld [vmem:[%s659 + $0x31] sm:$0xff]
  %v1372 = vld [vmem:[%s659 + $0x41] sm:$0xff]
  %v1373 = vld [vmem:[%s659 + $0x51] sm:$0xff]
  %v1374 = vld [vmem:[%s659 + $0x61] sm:$0xff]
  %v1375 = vld [vmem:[%s659 + $0x71] sm:$0xff]
  %v1376 = vld [vmem:[%s659 + $0xa1] sm:$0xff]
  %v1377 = vld [vmem:[%s659 + $0xb1] sm:$0xff]
  %v1378 = vld [vmem:[%s659 + $0xc1] sm:$0xff]
  %v1379 = vld [vmem:[%s659 + $0xd1] sm:$0xff]
  %v1380 = vld [vmem:[%s659 + $0xe1] sm:$0xff]
  %v1381 = vld [vmem:[%s659 + $0xf1] sm:$0xff]
  %v1382 = vld [vmem:[%s659 + $0x101] sm:$0xff]
  %v1383 = vld [vmem:[%s659 + $0x111] sm:$0xff]
  %v1384 = vld [vmem:[%s659 + $0x2] sm:$0xff]
  %v1385 = vld [vmem:[%s659 + $0x12] sm:$0xff]
  %v1386 = vld [vmem:[%s659 + $0x22] sm:$0xff]
  %v1387 = vld [vmem:[%s659 + $0x32] sm:$0xff]
  %v1388 = vld [vmem:[%s659 + $0x42] sm:$0xff]
  %v1389 = vld [vmem:[%s659 + $0x52] sm:$0xff]
  %v1390 = vld [vmem:[%s659 + $0x62] sm:$0xff]
  %v1391 = vld [vmem:[%s659 + $0x72] sm:$0xff]
  %v1392 = vld [vmem:[%s659 + $0xa2] sm:$0xff]
  %v1393 = vld [vmem:[%s659 + $0xb2] sm:$0xff]
  %v1394 = vld [vmem:[%s659 + $0xc2] sm:$0xff]
  %v1395 = vld [vmem:[%s659 + $0xd2] sm:$0xff]
  %v1396 = vld [vmem:[%s659 + $0xe2] sm:$0xff]
  %v1397 = vld [vmem:[%s659 + $0xf2] sm:$0xff]
  %v1398 = vld [vmem:[%s659 + $0x102] sm:$0xff]
  %v1399 = vld [vmem:[%s659 + $0x112] sm:$0xff]
  %1416 = vrot.lane.b32.xlu0 %v1352, 8
  %v1417 = vpop.permute.xlu0 %1416
  %1418 = vrot.lane.b32.xlu0 %v1353, 8
  %v1419 = vpop.permute.xlu0 %1418
  %1420 = vrot.lane.b32.xlu0 %v1354, 8
  %v1421 = vpop.permute.xlu0 %1420
  %1422 = vrot.lane.b32.xlu0 %v1355, 8
  %v1423 = vpop.permute.xlu0 %1422
  %1424 = vrot.lane.b32.xlu0 %v1356, 8
  %v1425 = vpop.permute.xlu0 %1424
  %1426 = vrot.lane.b32.xlu0 %v1357, 8
  %v1427 = vpop.permute.xlu0 %1426
  %1428 = vrot.lane.b32.xlu0 %v1358, 8
  %v1429 = vpop.permute.xlu0 %1428
  %1430 = vrot.lane.b32.xlu0 %v1359, 8
  %v1431 = vpop.permute.xlu0 %1430
  %1432 = vrot.lane.b32.xlu0 %v1360, 8
  %v1433 = vpop.permute.xlu0 %1432
  %1434 = vrot.lane.b32.xlu0 %v1361, 8
  %v1435 = vpop.permute.xlu0 %1434
  %1436 = vrot.lane.b32.xlu0 %v1362, 8
  %v1437 = vpop.permute.xlu0 %1436
  %1438 = vrot.lane.b32.xlu0 %v1363, 8
  %v1439 = vpop.permute.xlu0 %1438
  %1440 = vrot.lane.b32.xlu0 %v1364, 8
  %v1441 = vpop.permute.xlu0 %1440
  %1442 = vrot.lane.b32.xlu0 %v1365, 8
  %v1443 = vpop.permute.xlu0 %1442
  %1444 = vrot.lane.b32.xlu0 %v1366, 8
  %v1445 = vpop.permute.xlu0 %1444
  %1446 = vrot.lane.b32.xlu0 %v1367, 8
  %v1447 = vpop.permute.xlu0 %1446
  %1480 = vrot.lane.b32.xlu0 %v1368, 16
  %v1481 = vpop.permute.xlu0 %1480
  %1482 = vrot.lane.b32.xlu0 %v1369, 16
  %v1483 = vpop.permute.xlu0 %1482
  %1484 = vrot.lane.b32.xlu0 %v1370, 16
  %v1485 = vpop.permute.xlu0 %1484
  %1486 = vrot.lane.b32.xlu0 %v1371, 16
  %v1487 = vpop.permute.xlu0 %1486
  %1488 = vrot.lane.b32.xlu0 %v1372, 16
  %v1489 = vpop.permute.xlu0 %1488
  %1490 = vrot.lane.b32.xlu0 %v1373, 16
  %v1491 = vpop.permute.xlu0 %1490
  %1492 = vrot.lane.b32.xlu0 %v1374, 16
  %v1493 = vpop.permute.xlu0 %1492
  %1494 = vrot.lane.b32.xlu0 %v1375, 16
  %v1495 = vpop.permute.xlu0 %1494
  %1496 = vrot.lane.b32.xlu0 %v1376, 16
  %v1497 = vpop.permute.xlu0 %1496
  %1498 = vrot.lane.b32.xlu0 %v1377, 16
  %v1499 = vpop.permute.xlu0 %1498
  %1500 = vrot.lane.b32.xlu0 %v1378, 16
  %v1501 = vpop.permute.xlu0 %1500
  %1502 = vrot.lane.b32.xlu0 %v1379, 16
  %v1503 = vpop.permute.xlu0 %1502
  %1504 = vrot.lane.b32.xlu0 %v1380, 16
  %v1505 = vpop.permute.xlu0 %1504
  %1506 = vrot.lane.b32.xlu0 %v1381, 16
  %v1507 = vpop.permute.xlu0 %1506
  %1508 = vrot.lane.b32.xlu0 %v1382, 16
  %v1509 = vpop.permute.xlu0 %1508
  %1510 = vrot.lane.b32.xlu0 %v1383, 16
  %v1511 = vpop.permute.xlu0 %1510
  %1544 = vrot.lane.b32.xlu0 %v1384, 24
  %v1545 = vpop.permute.xlu0 %1544
  %1546 = vrot.lane.b32.xlu0 %v1385, 24
  %v1547 = vpop.permute.xlu0 %1546
  %1548 = vrot.lane.b32.xlu0 %v1386, 24
  %v1549 = vpop.permute.xlu0 %1548
  %1550 = vrot.lane.b32.xlu0 %v1387, 24
  %v1551 = vpop.permute.xlu0 %1550
  %1552 = vrot.lane.b32.xlu0 %v1388, 24
  %v1553 = vpop.permute.xlu0 %1552
  %1554 = vrot.lane.b32.xlu0 %v1389, 24
  %v1555 = vpop.permute.xlu0 %1554
  %1556 = vrot.lane.b32.xlu0 %v1390, 24
  %v1557 = vpop.permute.xlu0 %1556
  %1558 = vrot.lane.b32.xlu0 %v1391, 24
  %v1559 = vpop.permute.xlu0 %1558
  %1560 = vrot.lane.b32.xlu0 %v1392, 24
  %v1561 = vpop.permute.xlu0 %1560
  %1562 = vrot.lane.b32.xlu0 %v1393, 24
  %v1563 = vpop.permute.xlu0 %1562
  %1564 = vrot.lane.b32.xlu0 %v1394, 24
  %v1565 = vpop.permute.xlu0 %1564
  %1566 = vrot.lane.b32.xlu0 %v1395, 24
  %v1567 = vpop.permute.xlu0 %1566
  %1568 = vrot.lane.b32.xlu0 %v1396, 24
  %v1569 = vpop.permute.xlu0 %1568
  %1570 = vrot.lane.b32.xlu0 %v1397, 24
  %v1571 = vpop.permute.xlu0 %1570
  %1572 = vrot.lane.b32.xlu0 %v1398, 24
  %v1573 = vpop.permute.xlu0 %1572
  %1574 = vrot.lane.b32.xlu0 %v1399, 24
  %v1575 = vpop.permute.xlu0 %1574
  %v1592 = vsel %vm648, %v1336, %v1417
  %v1593 = vsel %vm648, %v1337, %v1419
  %v1594 = vsel %vm648, %v1338, %v1421
  %v1595 = vsel %vm648, %v1339, %v1423
  %v1596 = vsel %vm648, %v1340, %v1425
  %v1597 = vsel %vm648, %v1341, %v1427
  %v1598 = vsel %vm648, %v1342, %v1429
  %v1599 = vsel %vm648, %v1343, %v1431
  %v1600 = vsel %vm648, %v1344, %v1433
  %v1601 = vsel %vm648, %v1345, %v1435
  %v1602 = vsel %vm648, %v1346, %v1437
  %v1603 = vsel %vm648, %v1347, %v1439
  %v1604 = vsel %vm648, %v1348, %v1441
  %v1605 = vsel %vm648, %v1349, %v1443
  %v1606 = vsel %vm648, %v1350, %v1445
  %v1607 = vsel %vm648, %v1351, %v1447
  %v1608 = vsel %vm395, %v1592, %v1481
  %v1609 = vsel %vm395, %v1593, %v1483
  %v1610 = vsel %vm395, %v1594, %v1485
  %v1611 = vsel %vm395, %v1595, %v1487
  %v1612 = vsel %vm395, %v1596, %v1489
  %v1613 = vsel %vm395, %v1597, %v1491
  %v1614 = vsel %vm395, %v1598, %v1493
  %v1615 = vsel %vm395, %v1599, %v1495
  %v1616 = vsel %vm395, %v1600, %v1497
  %v1617 = vsel %vm395, %v1601, %v1499
  %v1618 = vsel %vm395, %v1602, %v1501
  %v1619 = vsel %vm395, %v1603, %v1503
  %v1620 = vsel %vm395, %v1604, %v1505
  %v1621 = vsel %vm395, %v1605, %v1507
  %v1622 = vsel %vm395, %v1606, %v1509
  %v1623 = vsel %vm395, %v1607, %v1511
  %v1624 = vsel %vm1013, %v1608, %v1545
  %v1625 = vsel %vm1013, %v1609, %v1547
  %v1626 = vsel %vm1013, %v1610, %v1549
  %v1627 = vsel %vm1013, %v1611, %v1551
  %v1628 = vsel %vm1013, %v1612, %v1553
  %v1629 = vsel %vm1013, %v1613, %v1555
  %v1630 = vsel %vm1013, %v1614, %v1557
  %v1631 = vsel %vm1013, %v1615, %v1559
  %v1632 = vsel %vm1013, %v1616, %v1561
  %v1633 = vsel %vm1013, %v1617, %v1563
  %v1634 = vsel %vm1013, %v1618, %v1565
  %v1635 = vsel %vm1013, %v1619, %v1567
  %v1636 = vsel %vm1013, %v1620, %v1569
  %v1637 = vsel %vm1013, %v1621, %v1571
  %v1638 = vsel %vm1013, %v1622, %v1573
  %v1639 = vsel %vm1013, %v1623, %v1575
  %s1640 = scalar_lea.vmem %s2, 32
  %v1641 = vld [vmem:[%s1640] sm:$0xff]
  %v1642 = vld [vmem:[%s1640 + $0x8] sm:$0xff]
  %v1643 = vld [vmem:[%s1640 + $0x10] sm:$0xff]
  %v1644 = vld [vmem:[%s1640 + $0x18] sm:$0xff]
  %v1646 = vsel %vm412, %v1624, 0
  %v1649 = vsel %vm412, %v1625, 0
  %v1652 = vsel %vm412, %v1626, 0
  %v1655 = vsel %vm412, %v1627, 0
  %v1658 = vsel %vm412, %v1628, 0
  %v1661 = vsel %vm412, %v1629, 0
  %v1664 = vsel %vm412, %v1630, 0
  %v1667 = vsel %vm412, %v1631, 0
  %v1670 = vsel %vm412, %v1632, 0
  %v1673 = vsel %vm412, %v1633, 0
  %v1676 = vsel %vm412, %v1634, 0
  %v1679 = vsel %vm412, %v1635, 0
  %v1682 = vsel %vm412, %v1636, 0
  %v1685 = vsel %vm412, %v1637, 0
  %v1688 = vsel %vm412, %v1638, 0
  %v1691 = vsel %vm412, %v1639, 0
  %1693 = vmatprep.subr.mxu0 0.0
  %1694 = vmatpush1.msra.mxu0 %v1641
  %1695 = vmatprep.subr.mxu0 0.0
  %1696 = vmatpush1.msra.mxu0 %v1642
  %1697 = vmatprep.subr.mxu0 0.0
  %1698 = vmatpush1.msra.mxu0 %v1643
  %1699 = vmatprep.subr.mxu0 0.0
  %1700 = vmatpush1.msra.mxu0 %v1644
  %1701 = vmatprep.subr.mxu0 0.0
  %1702 = vmatpush1.msra.mxu0 0.0
  %1703 = vmatprep.subr.mxu0 0.0
  %1704 = vmatpush1.msra.mxu0 0.0
  %1705 = vmatprep.subr.mxu0 0.0
  %1706 = vmatpush1.msra.mxu0 0.0
  %1707 = vmatprep.subr.mxu0 0.0
  %1708 = vmatpush1.msra.mxu0 0.0
  %1709 = vmatprep.subr.mxu0 0.0
  %1710 = vmatpush1.msra.mxu0 0.0
  %1711 = vmatprep.subr.mxu0 0.0
  %1712 = vmatpush1.msra.mxu0 0.0
  %1713 = vmatprep.subr.mxu0 0.0
  %1714 = vmatpush1.msra.mxu0 0.0
  %1715 = vmatprep.subr.mxu0 0.0
  %1716 = vmatpush1.msra.mxu0 0.0
  %1717 = vmatprep.subr.mxu0 0.0
  %1718 = vmatpush1.msra.mxu0 0.0
  %1719 = vmatprep.subr.mxu0 0.0
  %1720 = vmatpush1.msra.mxu0 0.0
  %1721 = vmatprep.subr.mxu0 0.0
  %1722 = vmatpush1.msra.mxu0 0.0
  %1723 = vmatprep.subr.mxu0 0.0
  %1724 = vmatpush1.msra.mxu0 0.0
  %1725 = vmatprep.subr.mxu0 0.0
  %1726 = vmatpush1.msra.mxu0 0.0
  %1727 = vmatprep.subr.mxu0 0.0
  %1728 = vmatpush1.msra.mxu0 0.0
  %1729 = vmatprep.subr.mxu0 0.0
  %1730 = vmatpush1.msra.mxu0 0.0
  %1731 = vmatprep.subr.mxu0 0.0
  %1732 = vmatpush1.msra.mxu0 0.0
  %1733 = vmatprep.subr.mxu0 0.0
  %1734 = vmatpush1.msra.mxu0 0.0
  %1735 = vmatprep.subr.mxu0 0.0
  %1736 = vmatpush1.msra.mxu0 0.0
  %1737 = vmatprep.subr.mxu0 0.0
  %1738 = vmatpush1.msra.mxu0 0.0
  %1739 = vmatprep.subr.mxu0 0.0
  %1740 = vmatpush1.msra.mxu0 0.0
  %1741 = vmatprep.subr.mxu0 0.0
  %1742 = vmatpush1.msra.mxu0 0.0
  %1743 = vmatprep.subr.mxu0 0.0
  %1744 = vmatpush1.msra.mxu0 0.0
  %1745 = vmatprep.subr.mxu0 0.0
  %1746 = vmatpush1.msra.mxu0 0.0
  %1747 = vmatprep.subr.mxu0 0.0
  %1748 = vmatpush1.msra.mxu0 0.0
  %1749 = vmatprep.subr.mxu0 0.0
  %1750 = vmatpush1.msra.mxu0 0.0
  %1751 = vmatprep.subr.mxu0 0.0
  %1752 = vmatpush1.msra.mxu0 0.0
  %1753 = vmatprep.subr.mxu0 0.0
  %1754 = vmatpush1.msra.mxu0 0.0
  %1755 = vmatprep.subr.mxu0 0.0
  %1756 = vmatpush1.msra.mxu0 0.0
  %1757 = vmatprep.mubr.f32.mxu0 0.0
  %1758 = vmatmul.mubr.f32.gmra.mrb[0].mxu0 %v1646
  %v1759 = vpop.f32.mrb[0].mxu0
  %v1760 = vadd.f32 0.0, %v1759
  %v1761 = vpop.f32.mrb[0].mxu0
  %1762 = vmatprep.mubr.f32.mxu0 0.0
  %1763 = vmatmul.mubr.f32.gmra.mrb[0].mxu0 %v1649
  %v1764 = vpop.f32.mrb[0].mxu0
  %v1765 = vadd.f32 0.0, %v1764
  %v1766 = vpop.f32.mrb[0].mxu0
  %1767 = vmatprep.mubr.f32.mxu0 0.0
  %1768 = vmatmul.mubr.f32.gmra.mrb[0].mxu0 %v1652
  %v1769 = vpop.f32.mrb[0].mxu0
  %v1770 = vadd.f32 0.0, %v1769
  %v1771 = vpop.f32.mrb[0].mxu0
  %1772 = vmatprep.mubr.f32.mxu0 0.0
  %1773 = vmatmul.mubr.f32.gmra.mrb[0].mxu0 %v1655
  %v1774 = vpop.f32.mrb[0].mxu0
  %v1775 = vadd.f32 0.0, %v1774
  %v1776 = vpop.f32.mrb[0].mxu0
  %1777 = vmatprep.mubr.f32.mxu0 0.0
  %1778 = vmatmul.mubr.f32.gmra.mrb[0].mxu0 %v1658
  %v1779 = vpop.f32.mrb[0].mxu0
  %v1780 = vadd.f32 0.0, %v1779
  %v1781 = vpop.f32.mrb[0].mxu0
  %1782 = vmatprep.mubr.f32.mxu0 0.0
  %1783 = vmatmul.mubr.f32.gmra.mrb[0].mxu0 %v1661
  %v1784 = vpop.f32.mrb[0].mxu0
  %v1785 = vadd.f32 0.0, %v1784
  %v1786 = vpop.f32.mrb[0].mxu0
  %1787 = vmatprep.mubr.f32.mxu0 0.0
  %1788 = vmatmul.mubr.f32.gmra.mrb[0].mxu0 %v1664
  %v1789 = vpop.f32.mrb[0].mxu0
  %v1790 = vadd.f32 0.0, %v1789
  %v1791 = vpop.f32.mrb[0].mxu0
  %1792 = vmatprep.mubr.f32.mxu0 0.0
  %1793 = vmatmul.mubr.f32.gmra.mrb[0].mxu0 %v1667
  %v1794 = vpop.f32.mrb[0].mxu0
  %v1795 = vadd.f32 0.0, %v1794
  %v1796 = vpop.f32.mrb[0].mxu0
  %1797 = vmatprep.mubr.f32.mxu0 0.0
  %1798 = vmatmul.mubr.f32.gmra.mrb[0].mxu0 %v1670
  %v1799 = vpop.f32.mrb[0].mxu0
  %v1800 = vadd.f32 0.0, %v1799
  %v1801 = vpop.f32.mrb[0].mxu0
  %1802 = vmatprep.mubr.f32.mxu0 0.0
  %1803 = vmatmul.mubr.f32.gmra.mrb[0].mxu0 %v1673
  %v1804 = vpop.f32.mrb[0].mxu0
  %v1805 = vadd.f32 0.0, %v1804
  %v1806 = vpop.f32.mrb[0].mxu0
  %1807 = vmatprep.mubr.f32.mxu0 0.0
  %1808 = vmatmul.mubr.f32.gmra.mrb[0].mxu0 %v1676
  %v1809 = vpop.f32.mrb[0].mxu0
  %v1810 = vadd.f32 0.0, %v1809
  %v1811 = vpop.f32.mrb[0].mxu0
  %1812 = vmatprep.mubr.f32.mxu0 0.0
  %1813 = vmatmul.mubr.f32.gmra.mrb[0].mxu0 %v1679
  %v1814 = vpop.f32.mrb[0].mxu0
  %v1815 = vadd.f32 0.0, %v1814
  %v1816 = vpop.f32.mrb[0].mxu0
  %1817 = vmatprep.mubr.f32.mxu0 0.0
  %1818 = vmatmul.mubr.f32.gmra.mrb[0].mxu0 %v1682
  %v1819 = vpop.f32.mrb[0].mxu0
  %v1820 = vadd.f32 0.0, %v1819
  %v1821 = vpop.f32.mrb[0].mxu0
  %1822 = vmatprep.mubr.f32.mxu0 0.0
  %1823 = vmatmul.mubr.f32.gmra.mrb[0].mxu0 %v1685
  %v1824 = vpop.f32.mrb[0].mxu0
  %v1825 = vadd.f32 0.0, %v1824
  %v1826 = vpop.f32.mrb[0].mxu0
  %1827 = vmatprep.mubr.f32.mxu0 0.0
  %1828 = vmatmul.mubr.f32.gmra.mrb[0].mxu0 %v1688
  %v1829 = vpop.f32.mrb[0].mxu0
  %v1830 = vadd.f32 0.0, %v1829
  %v1831 = vpop.f32.mrb[0].mxu0
  %1832 = vmatprep.mubr.f32.mxu0 0.0
  %1833 = vmatmul.mubr.f32.gmra.mrb[0].mxu0 %v1691
  %v1834 = vpop.f32.mrb[0].mxu0
  %v1835 = vadd.f32 0.0, %v1834
  %v1836 = vpop.f32.mrb[0].mxu0
  %1837 = vdwg.mxu0
  %v1838 = vsel %vm1227, %v1760, 0.0
  %v1839 = vsel %vm1227, %v1765, 0.0
  %v1840 = vadd.f32 %v1838, %v1839
  %v1841 = vsel %vm1227, %v1770, 0.0
  %v1842 = vadd.f32 %v1840, %v1841
  %v1843 = vsel %vm1227, %v1775, 0.0
  %v1844 = vadd.f32 %v1842, %v1843
  %v1845 = vsel %vm1227, %v1780, 0.0
  %v1846 = vadd.f32 %v1844, %v1845
  %v1847 = vsel %vm1227, %v1785, 0.0
  %v1848 = vadd.f32 %v1846, %v1847
  %v1849 = vsel %vm1227, %v1790, 0.0
  %v1850 = vadd.f32 %v1848, %v1849
  %v1851 = vsel %vm1227, %v1795, 0.0
  %v1852 = vadd.f32 %v1850, %v1851
  %v1853 = vsel %vm1227, %v1800, 0.0
  %v1854 = vadd.f32 %v1852, %v1853
  %v1855 = vsel %vm1227, %v1805, 0.0
  %v1856 = vadd.f32 %v1854, %v1855
  %v1857 = vsel %vm1227, %v1810, 0.0
  %v1858 = vadd.f32 %v1856, %v1857
  %v1859 = vsel %vm1227, %v1815, 0.0
  %v1860 = vadd.f32 %v1858, %v1859
  %v1861 = vsel %vm1227, %v1820, 0.0
  %v1862 = vadd.f32 %v1860, %v1861
  %v1863 = vsel %vm1227, %v1825, 0.0
  %v1864 = vadd.f32 %v1862, %v1863
  %v1865 = vsel %vm1227, %v1830, 0.0
  %v1866 = vadd.f32 %v1864, %v1865
  %v1867 = vsel %vm1227, %v1835, 0.0
  %v1868 = vadd.f32 %v1866, %v1867
  %v1869 = vrot.slane %v1868, 4
  %v1870 = vadd.f32 %v1868, %v1869
  %v1871 = vrot.slane %v1870, 2
  %v1872 = vadd.f32 %v1870, %v1871
  %v1873 = vrot.slane %v1872, 1
  %v1874 = vadd.f32 %v1872, %v1873
  %v1875 = vadd.f32 %v1265, %v1874
  %v1876 = vmul.f32 %v1760, %v1760
  %v1877 = vmul.f32 %v1765, %v1765
  %v1878 = vmul.f32 %v1770, %v1770
  %v1879 = vmul.f32 %v1775, %v1775
  %v1880 = vmul.f32 %v1780, %v1780
  %v1881 = vmul.f32 %v1785, %v1785
  %v1882 = vmul.f32 %v1790, %v1790
  %v1883 = vmul.f32 %v1795, %v1795
  %v1884 = vmul.f32 %v1800, %v1800
  %v1885 = vmul.f32 %v1805, %v1805
  %v1886 = vmul.f32 %v1810, %v1810
  %v1887 = vmul.f32 %v1815, %v1815
  %v1888 = vmul.f32 %v1820, %v1820
  %v1889 = vmul.f32 %v1825, %v1825
  %v1890 = vmul.f32 %v1830, %v1830
  %v1891 = vmul.f32 %v1835, %v1835
  %v1892 = vsel %vm1227, %v1876, 0.0
  %v1893 = vsel %vm1227, %v1877, 0.0
  %v1894 = vadd.f32 %v1892, %v1893
  %v1895 = vsel %vm1227, %v1878, 0.0
  %v1896 = vadd.f32 %v1894, %v1895
  %v1897 = vsel %vm1227, %v1879, 0.0
  %v1898 = vadd.f32 %v1896, %v1897
  %v1899 = vsel %vm1227, %v1880, 0.0
  %v1900 = vadd.f32 %v1898, %v1899
  %v1901 = vsel %vm1227, %v1881, 0.0
  %v1902 = vadd.f32 %v1900, %v1901
  %v1903 = vsel %vm1227, %v1882, 0.0
  %v1904 = vadd.f32 %v1902, %v1903
  %v1905 = vsel %vm1227, %v1883, 0.0
  %v1906 = vadd.f32 %v1904, %v1905
  %v1907 = vsel %vm1227, %v1884, 0.0
  %v1908 = vadd.f32 %v1906, %v1907
  %v1909 = vsel %vm1227, %v1885, 0.0
  %v1910 = vadd.f32 %v1908, %v1909
  %v1911 = vsel %vm1227, %v1886, 0.0
  %v1912 = vadd.f32 %v1910, %v1911
  %v1913 = vsel %vm1227, %v1887, 0.0
  %v1914 = vadd.f32 %v1912, %v1913
  %v1915 = vsel %vm1227, %v1888, 0.0
  %v1916 = vadd.f32 %v1914, %v1915
  %v1917 = vsel %vm1227, %v1889, 0.0
  %v1918 = vadd.f32 %v1916, %v1917
  %v1919 = vsel %vm1227, %v1890, 0.0
  %v1920 = vadd.f32 %v1918, %v1919
  %v1921 = vsel %vm1227, %v1891, 0.0
  %v1922 = vadd.f32 %v1920, %v1921
  %v1923 = vrot.slane %v1922, 4
  %v1924 = vadd.f32 %v1922, %v1923
  %v1925 = vrot.slane %v1924, 2
  %v1926 = vadd.f32 %v1924, %v1925
  %v1927 = vrot.slane %v1926, 1
  %v1928 = vadd.f32 %v1926, %v1927
  %v1929 = vadd.f32 %v1319, %v1928
  %1946 = vrot.lane.b32.xlu0 %v1760, 4
  %v1947 = vpop.permute.xlu0 %1946
  %1948 = vrot.lane.b32.xlu0 %v1765, 4
  %v1949 = vpop.permute.xlu0 %1948
  %1950 = vrot.lane.b32.xlu0 %v1770, 4
  %v1951 = vpop.permute.xlu0 %1950
  %1952 = vrot.lane.b32.xlu0 %v1775, 4
  %v1953 = vpop.permute.xlu0 %1952
  %1954 = vrot.lane.b32.xlu0 %v1780, 4
  %v1955 = vpop.permute.xlu0 %1954
  %1956 = vrot.lane.b32.xlu0 %v1785, 4
  %v1957 = vpop.permute.xlu0 %1956
  %1958 = vrot.lane.b32.xlu0 %v1790, 4
  %v1959 = vpop.permute.xlu0 %1958
  %1960 = vrot.lane.b32.xlu0 %v1795, 4
  %v1961 = vpop.permute.xlu0 %1960
  %1962 = vrot.lane.b32.xlu0 %v1800, 4
  %v1963 = vpop.permute.xlu0 %1962
  %1964 = vrot.lane.b32.xlu0 %v1805, 4
  %v1965 = vpop.permute.xlu0 %1964
  %1966 = vrot.lane.b32.xlu0 %v1810, 4
  %v1967 = vpop.permute.xlu0 %1966
  %1968 = vrot.lane.b32.xlu0 %v1815, 4
  %v1969 = vpop.permute.xlu0 %1968
  %1970 = vrot.lane.b32.xlu0 %v1820, 4
  %v1971 = vpop.permute.xlu0 %1970
  %1972 = vrot.lane.b32.xlu0 %v1825, 4
  %v1973 = vpop.permute.xlu0 %1972
  %1974 = vrot.lane.b32.xlu0 %v1830, 4
  %v1975 = vpop.permute.xlu0 %1974
  %1976 = vrot.lane.b32.xlu0 %v1835, 4
  %v1977 = vpop.permute.xlu0 %1976
  %vm1994 = vcmask 64544
  %1995 = vst.msk [vmem:[%s3] sm:$0xff] %vm1994, %v1947
  %1996 = vst.msk [vmem:[%s3 + $0x10] sm:$0xff] %vm1994, %v1949
  %1997 = vst.msk [vmem:[%s3 + $0x20] sm:$0xff] %vm1994, %v1951
  %1998 = vst.msk [vmem:[%s3 + $0x30] sm:$0xff] %vm1994, %v1953
  %1999 = vst.msk [vmem:[%s3 + $0x40] sm:$0xff] %vm1994, %v1955
  %2000 = vst.msk [vmem:[%s3 + $0x50] sm:$0xff] %vm1994, %v1957
  %2001 = vst.msk [vmem:[%s3 + $0x60] sm:$0xff] %vm1994, %v1959
  %2002 = vst.msk [vmem:[%s3 + $0x70] sm:$0xff] %vm1994, %v1961
  %2003 = vst.msk [vmem:[%s3 + $0x80] sm:$0xff] %vm1994, %v1963
  %2004 = vst.msk [vmem:[%s3 + $0x90] sm:$0xff] %vm1994, %v1965
  %2005 = vst.msk [vmem:[%s3 + $0xa0] sm:$0xff] %vm1994, %v1967
  %2006 = vst.msk [vmem:[%s3 + $0xb0] sm:$0xff] %vm1994, %v1969
  %2007 = vst.msk [vmem:[%s3 + $0xc0] sm:$0xff] %vm1994, %v1971
  %2008 = vst.msk [vmem:[%s3 + $0xd0] sm:$0xff] %vm1994, %v1973
  %2009 = vst.msk [vmem:[%s3 + $0xe0] sm:$0xff] %vm1994, %v1975
  %2010 = vst.msk [vmem:[%s3 + $0xf0] sm:$0xff] %vm1994, %v1977
  %v2011 = vld [vmem:[%s659] sm:$0xff]
  %v2012 = vld [vmem:[%s659 + $0x10] sm:$0xff]
  %v2013 = vld [vmem:[%s659 + $0x20] sm:$0xff]
  %v2014 = vld [vmem:[%s659 + $0x30] sm:$0xff]
  %v2015 = vld [vmem:[%s659 + $0x40] sm:$0xff]
  %v2016 = vld [vmem:[%s659 + $0x50] sm:$0xff]
  %v2017 = vld [vmem:[%s659 + $0x60] sm:$0xff]
  %v2018 = vld [vmem:[%s659 + $0x70] sm:$0xff]
  %v2019 = vld [vmem:[%s659 + $0xa0] sm:$0xff]
  %v2020 = vld [vmem:[%s659 + $0xb0] sm:$0xff]
  %v2021 = vld [vmem:[%s659 + $0xc0] sm:$0xff]
  %v2022 = vld [vmem:[%s659 + $0xd0] sm:$0xff]
  %v2023 = vld [vmem:[%s659 + $0xe0] sm:$0xff]
  %v2024 = vld [vmem:[%s659 + $0xf0] sm:$0xff]
  %v2025 = vld [vmem:[%s659 + $0x100] sm:$0xff]
  %v2026 = vld [vmem:[%s659 + $0x110] sm:$0xff]
  %v2027 = vld [vmem:[%s659 + $0x1] sm:$0xff]
  %v2028 = vld [vmem:[%s659 + $0x11] sm:$0xff]
  %v2029 = vld [vmem:[%s659 + $0x21] sm:$0xff]
  %v2030 = vld [vmem:[%s659 + $0x31] sm:$0xff]
  %v2031 = vld [vmem:[%s659 + $0x41] sm:$0xff]
  %v2032 = vld [vmem:[%s659 + $0x51] sm:$0xff]
  %v2033 = vld [vmem:[%s659 + $0x61] sm:$0xff]
  %v2034 = vld [vmem:[%s659 + $0x71] sm:$0xff]
  %v2035 = vld [vmem:[%s659 + $0xa1] sm:$0xff]
  %v2036 = vld [vmem:[%s659 + $0xb1] sm:$0xff]
  %v2037 = vld [vmem:[%s659 + $0xc1] sm:$0xff]
  %v2038 = vld [vmem:[%s659 + $0xd1] sm:$0xff]
  %v2039 = vld [vmem:[%s659 + $0xe1] sm:$0xff]
  %v2040 = vld [vmem:[%s659 + $0xf1] sm:$0xff]
  %v2041 = vld [vmem:[%s659 + $0x101] sm:$0xff]
  %v2042 = vld [vmem:[%s659 + $0x111] sm:$0xff]
  %s2043 = scalar_lea.vmem [#allocation2], 32
  %v2044 = vld [vmem:[%s2043] sm:$0xff]
  %v2045 = vld [vmem:[%s2043 + $0x10] sm:$0xff]
  %v2046 = vld [vmem:[%s2043 + $0x20] sm:$0xff]
  %v2047 = vld [vmem:[%s2043 + $0x30] sm:$0xff]
  %v2048 = vld [vmem:[%s2043 + $0x40] sm:$0xff]
  %v2049 = vld [vmem:[%s2043 + $0x50] sm:$0xff]
  %v2050 = vld [vmem:[%s2043 + $0x60] sm:$0xff]
  %v2051 = vld [vmem:[%s2043 + $0x70] sm:$0xff]
  %v2052 = vld [vmem:[%s2043 + $0xa0] sm:$0xff]
  %v2053 = vld [vmem:[%s2043 + $0xb0] sm:$0xff]
  %v2054 = vld [vmem:[%s2043 + $0xc0] sm:$0xff]
  %v2055 = vld [vmem:[%s2043 + $0xd0] sm:$0xff]
  %v2056 = vld [vmem:[%s2043 + $0xe0] sm:$0xff]
  %v2057 = vld [vmem:[%s2043 + $0xf0] sm:$0xff]
  %v2058 = vld [vmem:[%s2043 + $0x100] sm:$0xff]
  %v2059 = vld [vmem:[%s2043 + $0x110] sm:$0xff]
  %v2060 = vld [vmem:[%s2043 + $0x1] sm:$0xff]
  %v2061 = vld [vmem:[%s2043 + $0x11] sm:$0xff]
  %v2062 = vld [vmem:[%s2043 + $0x21] sm:$0xff]
  %v2063 = vld [vmem:[%s2043 + $0x31] sm:$0xff]
  %v2064 = vld [vmem:[%s2043 + $0x41] sm:$0xff]
  %v2065 = vld [vmem:[%s2043 + $0x51] sm:$0xff]
  %v2066 = vld [vmem:[%s2043 + $0x61] sm:$0xff]
  %v2067 = vld [vmem:[%s2043 + $0x71] sm:$0xff]
  %v2068 = vld [vmem:[%s2043 + $0xa1] sm:$0xff]
  %v2069 = vld [vmem:[%s2043 + $0xb1] sm:$0xff]
  %v2070 = vld [vmem:[%s2043 + $0xc1] sm:$0xff]
  %v2071 = vld [vmem:[%s2043 + $0xd1] sm:$0xff]
  %v2072 = vld [vmem:[%s2043 + $0xe1] sm:$0xff]
  %v2073 = vld [vmem:[%s2043 + $0xf1] sm:$0xff]
  %v2074 = vld [vmem:[%s2043 + $0x101] sm:$0xff]
  %v2075 = vld [vmem:[%s2043 + $0x111] sm:$0xff]
  %2092 = vrot.lane.b32.xlu0 %v2027, 8
  %v2093 = vpop.permute.xlu0 %2092
  %2094 = vrot.lane.b32.xlu0 %v2028, 8
  %v2095 = vpop.permute.xlu0 %2094
  %2096 = vrot.lane.b32.xlu0 %v2029, 8
  %v2097 = vpop.permute.xlu0 %2096
  %2098 = vrot.lane.b32.xlu0 %v2030, 8
  %v2099 = vpop.permute.xlu0 %2098
  %2100 = vrot.lane.b32.xlu0 %v2031, 8
  %v2101 = vpop.permute.xlu0 %2100
  %2102 = vrot.lane.b32.xlu0 %v2032, 8
  %v2103 = vpop.permute.xlu0 %2102
  %2104 = vrot.lane.b32.xlu0 %v2033, 8
  %v2105 = vpop.permute.xlu0 %2104
  %2106 = vrot.lane.b32.xlu0 %v2034, 8
  %v2107 = vpop.permute.xlu0 %2106
  %2108 = vrot.lane.b32.xlu0 %v2035, 8
  %v2109 = vpop.permute.xlu0 %2108
  %2110 = vrot.lane.b32.xlu0 %v2036, 8
  %v2111 = vpop.permute.xlu0 %2110
  %2112 = vrot.lane.b32.xlu0 %v2037, 8
  %v2113 = vpop.permute.xlu0 %2112
  %2114 = vrot.lane.b32.xlu0 %v2038, 8
  %v2115 = vpop.permute.xlu0 %2114
  %2116 = vrot.lane.b32.xlu0 %v2039, 8
  %v2117 = vpop.permute.xlu0 %2116
  %2118 = vrot.lane.b32.xlu0 %v2040, 8
  %v2119 = vpop.permute.xlu0 %2118
  %2120 = vrot.lane.b32.xlu0 %v2041, 8
  %v2121 = vpop.permute.xlu0 %2120
  %2122 = vrot.lane.b32.xlu0 %v2042, 8
  %v2123 = vpop.permute.xlu0 %2122
  %2156 = vrot.lane.b32.xlu0 %v2044, 16
  %v2157 = vpop.permute.xlu0 %2156
  %2158 = vrot.lane.b32.xlu0 %v2045, 16
  %v2159 = vpop.permute.xlu0 %2158
  %2160 = vrot.lane.b32.xlu0 %v2046, 16
  %v2161 = vpop.permute.xlu0 %2160
  %2162 = vrot.lane.b32.xlu0 %v2047, 16
  %v2163 = vpop.permute.xlu0 %2162
  %2164 = vrot.lane.b32.xlu0 %v2048, 16
  %v2165 = vpop.permute.xlu0 %2164
  %2166 = vrot.lane.b32.xlu0 %v2049, 16
  %v2167 = vpop.permute.xlu0 %2166
  %2168 = vrot.lane.b32.xlu0 %v2050, 16
  %v2169 = vpop.permute.xlu0 %2168
  %2170 = vrot.lane.b32.xlu0 %v2051, 16
  %v2171 = vpop.permute.xlu0 %2170
  %2172 = vrot.lane.b32.xlu0 %v2052, 16
  %v2173 = vpop.permute.xlu0 %2172
  %2174 = vrot.lane.b32.xlu0 %v2053, 16
  %v2175 = vpop.permute.xlu0 %2174
  %2176 = vrot.lane.b32.xlu0 %v2054, 16
  %v2177 = vpop.permute.xlu0 %2176
  %2178 = vrot.lane.b32.xlu0 %v2055, 16
  %v2179 = vpop.permute.xlu0 %2178
  %2180 = vrot.lane.b32.xlu0 %v2056, 16
  %v2181 = vpop.permute.xlu0 %2180
  %2182 = vrot.lane.b32.xlu0 %v2057, 16
  %v2183 = vpop.permute.xlu0 %2182
  %2184 = vrot.lane.b32.xlu0 %v2058, 16
  %v2185 = vpop.permute.xlu0 %2184
  %2186 = vrot.lane.b32.xlu0 %v2059, 16
  %v2187 = vpop.permute.xlu0 %2186
  %2220 = vrot.lane.b32.xlu0 %v2060, 24
  %v2221 = vpop.permute.xlu0 %2220
  %2222 = vrot.lane.b32.xlu0 %v2061, 24
  %v2223 = vpop.permute.xlu0 %2222
  %2224 = vrot.lane.b32.xlu0 %v2062, 24
  %v2225 = vpop.permute.xlu0 %2224
  %2226 = vrot.lane.b32.xlu0 %v2063, 24
  %v2227 = vpop.permute.xlu0 %2226
  %2228 = vrot.lane.b32.xlu0 %v2064, 24
  %v2229 = vpop.permute.xlu0 %2228
  %2230 = vrot.lane.b32.xlu0 %v2065, 24
  %v2231 = vpop.permute.xlu0 %2230
  %2232 = vrot.lane.b32.xlu0 %v2066, 24
  %v2233 = vpop.permute.xlu0 %2232
  %2234 = vrot.lane.b32.xlu0 %v2067, 24
  %v2235 = vpop.permute.xlu0 %2234
  %2236 = vrot.lane.b32.xlu0 %v2068, 24
  %v2237 = vpop.permute.xlu0 %2236
  %2238 = vrot.lane.b32.xlu0 %v2069, 24
  %v2239 = vpop.permute.xlu0 %2238
  %2240 = vrot.lane.b32.xlu0 %v2070, 24
  %v2241 = vpop.permute.xlu0 %2240
  %2242 = vrot.lane.b32.xlu0 %v2071, 24
  %v2243 = vpop.permute.xlu0 %2242
  %2244 = vrot.lane.b32.xlu0 %v2072, 24
  %v2245 = vpop.permute.xlu0 %2244
  %2246 = vrot.lane.b32.xlu0 %v2073, 24
  %v2247 = vpop.permute.xlu0 %2246
  %2248 = vrot.lane.b32.xlu0 %v2074, 24
  %v2249 = vpop.permute.xlu0 %2248
  %2250 = vrot.lane.b32.xlu0 %v2075, 24
  %v2251 = vpop.permute.xlu0 %2250
  %v2268 = vsel %vm648, %v2011, %v2093
  %v2269 = vsel %vm648, %v2012, %v2095
  %v2270 = vsel %vm648, %v2013, %v2097
  %v2271 = vsel %vm648, %v2014, %v2099
  %v2272 = vsel %vm648, %v2015, %v2101
  %v2273 = vsel %vm648, %v2016, %v2103
  %v2274 = vsel %vm648, %v2017, %v2105
  %v2275 = vsel %vm648, %v2018, %v2107
  %v2276 = vsel %vm648, %v2019, %v2109
  %v2277 = vsel %vm648, %v2020, %v2111
  %v2278 = vsel %vm648, %v2021, %v2113
  %v2279 = vsel %vm648, %v2022, %v2115
  %v2280 = vsel %vm648, %v2023, %v2117
  %v2281 = vsel %vm648, %v2024, %v2119
  %v2282 = vsel %vm648, %v2025, %v2121
  %v2283 = vsel %vm648, %v2026, %v2123
  %v2284 = vsel %vm395, %v2268, %v2157
  %v2285 = vsel %vm395, %v2269, %v2159
  %v2286 = vsel %vm395, %v2270, %v2161
  %v2287 = vsel %vm395, %v2271, %v2163
  %v2288 = vsel %vm395, %v2272, %v2165
  %v2289 = vsel %vm395, %v2273, %v2167
  %v2290 = vsel %vm395, %v2274, %v2169
  %v2291 = vsel %vm395, %v2275, %v2171
  %v2292 = vsel %vm395, %v2276, %v2173
  %v2293 = vsel %vm395, %v2277, %v2175
  %v2294 = vsel %vm395, %v2278, %v2177
  %v2295 = vsel %vm395, %v2279, %v2179
  %v2296 = vsel %vm395, %v2280, %v2181
  %v2297 = vsel %vm395, %v2281, %v2183
  %v2298 = vsel %vm395, %v2282, %v2185
  %v2299 = vsel %vm395, %v2283, %v2187
  %v2300 = vsel %vm1013, %v2284, %v2221
  %v2301 = vsel %vm1013, %v2285, %v2223
  %v2302 = vsel %vm1013, %v2286, %v2225
  %v2303 = vsel %vm1013, %v2287, %v2227
  %v2304 = vsel %vm1013, %v2288, %v2229
  %v2305 = vsel %vm1013, %v2289, %v2231
  %v2306 = vsel %vm1013, %v2290, %v2233
  %v2307 = vsel %vm1013, %v2291, %v2235
  %v2308 = vsel %vm1013, %v2292, %v2237
  %v2309 = vsel %vm1013, %v2293, %v2239
  %v2310 = vsel %vm1013, %v2294, %v2241
  %v2311 = vsel %vm1013, %v2295, %v2243
  %v2312 = vsel %vm1013, %v2296, %v2245
  %v2313 = vsel %vm1013, %v2297, %v2247
  %v2314 = vsel %vm1013, %v2298, %v2249
  %v2315 = vsel %vm1013, %v2299, %v2251
  %s2316 = scalar_lea.vmem %s2, 64
  %v2317 = vld [vmem:[%s2316] sm:$0xff]
  %v2318 = vld [vmem:[%s2316 + $0x8] sm:$0xff]
  %v2319 = vld [vmem:[%s2316 + $0x10] sm:$0xff]
  %v2320 = vld [vmem:[%s2316 + $0x18] sm:$0xff]
  %v2322 = vsel %vm412, %v2300, 0
  %v2325 = vsel %vm412, %v2301, 0
  %v2328 = vsel %vm412, %v2302, 0
  %v2331 = vsel %vm412, %v2303, 0
  %v2334 = vsel %vm412, %v2304, 0
  %v2337 = vsel %vm412, %v2305, 0
  %v2340 = vsel %vm412, %v2306, 0
  %v2343 = vsel %vm412, %v2307, 0
  %v2346 = vsel %vm412, %v2308, 0
  %v2349 = vsel %vm412, %v2309, 0
  %v2352 = vsel %vm412, %v2310, 0
  %v2355 = vsel %vm412, %v2311, 0
  %v2358 = vsel %vm412, %v2312, 0
  %v2361 = vsel %vm412, %v2313, 0
  %v2364 = vsel %vm412, %v2314, 0
  %v2367 = vsel %vm412, %v2315, 0
  %2369 = vmatprep.subr.mxu0 0.0
  %2370 = vmatpush1.msra.mxu0 %v2317
  %2371 = vmatprep.subr.mxu0 0.0
  %2372 = vmatpush1.msra.mxu0 %v2318
  %2373 = vmatprep.subr.mxu0 0.0
  %2374 = vmatpush1.msra.mxu0 %v2319
  %2375 = vmatprep.subr.mxu0 0.0
  %2376 = vmatpush1.msra.mxu0 %v2320
  %2377 = vmatprep.subr.mxu0 0.0
  %2378 = vmatpush1.msra.mxu0 0.0
  %2379 = vmatprep.subr.mxu0 0.0
  %2380 = vmatpush1.msra.mxu0 0.0
  %2381 = vmatprep.subr.mxu0 0.0
  %2382 = vmatpush1.msra.mxu0 0.0
  %2383 = vmatprep.subr.mxu0 0.0
  %2384 = vmatpush1.msra.mxu0 0.0
  %2385 = vmatprep.subr.mxu0 0.0
  %2386 = vmatpush1.msra.mxu0 0.0
  %2387 = vmatprep.subr.mxu0 0.0
  %2388 = vmatpush1.msra.mxu0 0.0
  %2389 = vmatprep.subr.mxu0 0.0
  %2390 = vmatpush1.msra.mxu0 0.0
  %2391 = vmatprep.subr.mxu0 0.0
  %2392 = vmatpush1.msra.mxu0 0.0
  %2393 = vmatprep.subr.mxu0 0.0
  %2394 = vmatpush1.msra.mxu0 0.0
  %2395 = vmatprep.subr.mxu0 0.0
  %2396 = vmatpush1.msra.mxu0 0.0
  %2397 = vmatprep.subr.mxu0 0.0
  %2398 = vmatpush1.msra.mxu0 0.0
  %2399 = vmatprep.subr.mxu0 0.0
  %2400 = vmatpush1.msra.mxu0 0.0
  %2401 = vmatprep.subr.mxu0 0.0
  %2402 = vmatpush1.msra.mxu0 0.0
  %2403 = vmatprep.subr.mxu0 0.0
  %2404 = vmatpush1.msra.mxu0 0.0
  %2405 = vmatprep.subr.mxu0 0.0
  %2406 = vmatpush1.msra.mxu0 0.0
  %2407 = vmatprep.subr.mxu0 0.0
  %2408 = vmatpush1.msra.mxu0 0.0
  %2409 = vmatprep.subr.mxu0 0.0
  %2410 = vmatpush1.msra.mxu0 0.0
  %2411 = vmatprep.subr.mxu0 0.0
  %2412 = vmatpush1.msra.mxu0 0.0
  %2413 = vmatprep.subr.mxu0 0.0
  %2414 = vmatpush1.msra.mxu0 0.0
  %2415 = vmatprep.subr.mxu0 0.0
  %2416 = vmatpush1.msra.mxu0 0.0
  %2417 = vmatprep.subr.mxu0 0.0
  %2418 = vmatpush1.msra.mxu0 0.0
  %2419 = vmatprep.subr.mxu0 0.0
  %2420 = vmatpush1.msra.mxu0 0.0
  %2421 = vmatprep.subr.mxu0 0.0
  %2422 = vmatpush1.msra.mxu0 0.0
  %2423 = vmatprep.subr.mxu0 0.0
  %2424 = vmatpush1.msra.mxu0 0.0
  %2425 = vmatprep.subr.mxu0 0.0
  %2426 = vmatpush1.msra.mxu0 0.0
  %2427 = vmatprep.subr.mxu0 0.0
  %2428 = vmatpush1.msra.mxu0 0.0
  %2429 = vmatprep.subr.mxu0 0.0
  %2430 = vmatpush1.msra.mxu0 0.0
  %2431 = vmatprep.subr.mxu0 0.0
  %2432 = vmatpush1.msra.mxu0 0.0
  %2433 = vmatprep.mubr.f32.mxu0 0.0
  %2434 = vmatmul.mubr.f32.gmra.mrb[0].mxu0 %v2322
  %v2435 = vpop.f32.mrb[0].mxu0
  %v2436 = vadd.f32 0.0, %v2435
  %v2437 = vpop.f32.mrb[0].mxu0
  %2438 = vmatprep.mubr.f32.mxu0 0.0
  %2439 = vmatmul.mubr.f32.gmra.mrb[0].mxu0 %v2325
  %v2440 = vpop.f32.mrb[0].mxu0
  %v2441 = vadd.f32 0.0, %v2440
  %v2442 = vpop.f32.mrb[0].mxu0
  %2443 = vmatprep.mubr.f32.mxu0 0.0
  %2444 = vmatmul.mubr.f32.gmra.mrb[0].mxu0 %v2328
  %v2445 = vpop.f32.mrb[0].mxu0
  %v2446 = vadd.f32 0.0, %v2445
  %v2447 = vpop.f32.mrb[0].mxu0
  %2448 = vmatprep.mubr.f32.mxu0 0.0
  %2449 = vmatmul.mubr.f32.gmra.mrb[0].mxu0 %v2331
  %v2450 = vpop.f32.mrb[0].mxu0
  %v2451 = vadd.f32 0.0, %v2450
  %v2452 = vpop.f32.mrb[0].mxu0
  %2453 = vmatprep.mubr.f32.mxu0 0.0
  %2454 = vmatmul.mubr.f32.gmra.mrb[0].mxu0 %v2334
  %v2455 = vpop.f32.mrb[0].mxu0
  %v2456 = vadd.f32 0.0, %v2455
  %v2457 = vpop.f32.mrb[0].mxu0
  %2458 = vmatprep.mubr.f32.mxu0 0.0
  %2459 = vmatmul.mubr.f32.gmra.mrb[0].mxu0 %v2337
  %v2460 = vpop.f32.mrb[0].mxu0
  %v2461 = vadd.f32 0.0, %v2460
  %v2462 = vpop.f32.mrb[0].mxu0
  %2463 = vmatprep.mubr.f32.mxu0 0.0
  %2464 = vmatmul.mubr.f32.gmra.mrb[0].mxu0 %v2340
  %v2465 = vpop.f32.mrb[0].mxu0
  %v2466 = vadd.f32 0.0, %v2465
  %v2467 = vpop.f32.mrb[0].mxu0
  %2468 = vmatprep.mubr.f32.mxu0 0.0
  %2469 = vmatmul.mubr.f32.gmra.mrb[0].mxu0 %v2343
  %v2470 = vpop.f32.mrb[0].mxu0
  %v2471 = vadd.f32 0.0, %v2470
  %v2472 = vpop.f32.mrb[0].mxu0
  %2473 = vmatprep.mubr.f32.mxu0 0.0
  %2474 = vmatmul.mubr.f32.gmra.mrb[0].mxu0 %v2346
  %v2475 = vpop.f32.mrb[0].mxu0
  %v2476 = vadd.f32 0.0, %v2475
  %v2477 = vpop.f32.mrb[0].mxu0
  %2478 = vmatprep.mubr.f32.mxu0 0.0
  %2479 = vmatmul.mubr.f32.gmra.mrb[0].mxu0 %v2349
  %v2480 = vpop.f32.mrb[0].mxu0
  %v2481 = vadd.f32 0.0, %v2480
  %v2482 = vpop.f32.mrb[0].mxu0
  %2483 = vmatprep.mubr.f32.mxu0 0.0
  %2484 = vmatmul.mubr.f32.gmra.mrb[0].mxu0 %v2352
  %v2485 = vpop.f32.mrb[0].mxu0
  %v2486 = vadd.f32 0.0, %v2485
  %v2487 = vpop.f32.mrb[0].mxu0
  %2488 = vmatprep.mubr.f32.mxu0 0.0
  %2489 = vmatmul.mubr.f32.gmra.mrb[0].mxu0 %v2355
  %v2490 = vpop.f32.mrb[0].mxu0
  %v2491 = vadd.f32 0.0, %v2490
  %v2492 = vpop.f32.mrb[0].mxu0
  %2493 = vmatprep.mubr.f32.mxu0 0.0
  %2494 = vmatmul.mubr.f32.gmra.mrb[0].mxu0 %v2358
  %v2495 = vpop.f32.mrb[0].mxu0
  %v2496 = vadd.f32 0.0, %v2495
  %v2497 = vpop.f32.mrb[0].mxu0
  %2498 = vmatprep.mubr.f32.mxu0 0.0
  %2499 = vmatmul.mubr.f32.gmra.mrb[0].mxu0 %v2361
  %v2500 = vpop.f32.mrb[0].mxu0
  %v2501 = vadd.f32 0.0, %v2500
  %v2502 = vpop.f32.mrb[0].mxu0
  %2503 = vmatprep.mubr.f32.mxu0 0.0
  %2504 = vmatmul.mubr.f32.gmra.mrb[0].mxu0 %v2364
  %v2505 = vpop.f32.mrb[0].mxu0
  %v2506 = vadd.f32 0.0, %v2505
  %v2507 = vpop.f32.mrb[0].mxu0
  %2508 = vmatprep.mubr.f32.mxu0 0.0
  %2509 = vmatmul.mubr.f32.gmra.mrb[0].mxu0 %v2367
  %v2510 = vpop.f32.mrb[0].mxu0
  %v2511 = vadd.f32 0.0, %v2510
  %v2512 = vpop.f32.mrb[0].mxu0
  %2513 = vdwg.mxu0
  %v2514 = vsel %vm1227, %v2436, 0.0
  %v2515 = vsel %vm1227, %v2441, 0.0
  %v2516 = vadd.f32 %v2514, %v2515
  %v2517 = vsel %vm1227, %v2446, 0.0
  %v2518 = vadd.f32 %v2516, %v2517
  %v2519 = vsel %vm1227, %v2451, 0.0
  %v2520 = vadd.f32 %v2518, %v2519
  %v2521 = vsel %vm1227, %v2456, 0.0
  %v2522 = vadd.f32 %v2520, %v2521
  %v2523 = vsel %vm1227, %v2461, 0.0
  %v2524 = vadd.f32 %v2522, %v2523
  %v2525 = vsel %vm1227, %v2466, 0.0
  %v2526 = vadd.f32 %v2524, %v2525
  %v2527 = vsel %vm1227, %v2471, 0.0
  %v2528 = vadd.f32 %v2526, %v2527
  %v2529 = vsel %vm1227, %v2476, 0.0
  %v2530 = vadd.f32 %v2528, %v2529
  %v2531 = vsel %vm1227, %v2481, 0.0
  %v2532 = vadd.f32 %v2530, %v2531
  %v2533 = vsel %vm1227, %v2486, 0.0
  %v2534 = vadd.f32 %v2532, %v2533
  %v2535 = vsel %vm1227, %v2491, 0.0
  %v2536 = vadd.f32 %v2534, %v2535
  %v2537 = vsel %vm1227, %v2496, 0.0
  %v2538 = vadd.f32 %v2536, %v2537
  %v2539 = vsel %vm1227, %v2501, 0.0
  %v2540 = vadd.f32 %v2538, %v2539
  %v2541 = vsel %vm1227, %v2506, 0.0
  %v2542 = vadd.f32 %v2540, %v2541
  %v2543 = vsel %vm1227, %v2511, 0.0
  %v2544 = vadd.f32 %v2542, %v2543
  %v2545 = vrot.slane %v2544, 4
  %v2546 = vadd.f32 %v2544, %v2545
  %v2547 = vrot.slane %v2546, 2
  %v2548 = vadd.f32 %v2546, %v2547
  %v2549 = vrot.slane %v2548, 1
  %v2550 = vadd.f32 %v2548, %v2549
  %v2551 = vadd.f32 %v1875, %v2550
  %v2552 = vmul.f32 %v2436, %v2436
  %v2553 = vmul.f32 %v2441, %v2441
  %v2554 = vmul.f32 %v2446, %v2446
  %v2555 = vmul.f32 %v2451, %v2451
  %v2556 = vmul.f32 %v2456, %v2456
  %v2557 = vmul.f32 %v2461, %v2461
  %v2558 = vmul.f32 %v2466, %v2466
  %v2559 = vmul.f32 %v2471, %v2471
  %v2560 = vmul.f32 %v2476, %v2476
  %v2561 = vmul.f32 %v2481, %v2481
  %v2562 = vmul.f32 %v2486, %v2486
  %v2563 = vmul.f32 %v2491, %v2491
  %v2564 = vmul.f32 %v2496, %v2496
  %v2565 = vmul.f32 %v2501, %v2501
  %v2566 = vmul.f32 %v2506, %v2506
  %v2567 = vmul.f32 %v2511, %v2511
  %v2568 = vsel %vm1227, %v2552, 0.0
  %v2569 = vsel %vm1227, %v2553, 0.0
  %v2570 = vadd.f32 %v2568, %v2569
  %v2571 = vsel %vm1227, %v2554, 0.0
  %v2572 = vadd.f32 %v2570, %v2571
  %v2573 = vsel %vm1227, %v2555, 0.0
  %v2574 = vadd.f32 %v2572, %v2573
  %v2575 = vsel %vm1227, %v2556, 0.0
  %v2576 = vadd.f32 %v2574, %v2575
  %v2577 = vsel %vm1227, %v2557, 0.0
  %v2578 = vadd.f32 %v2576, %v2577
  %v2579 = vsel %vm1227, %v2558, 0.0
  %v2580 = vadd.f32 %v2578, %v2579
  %v2581 = vsel %vm1227, %v2559, 0.0
  %v2582 = vadd.f32 %v2580, %v2581
  %v2583 = vsel %vm1227, %v2560, 0.0
  %v2584 = vadd.f32 %v2582, %v2583
  %v2585 = vsel %vm1227, %v2561, 0.0
  %v2586 = vadd.f32 %v2584, %v2585
  %v2587 = vsel %vm1227, %v2562, 0.0
  %v2588 = vadd.f32 %v2586, %v2587
  %v2589 = vsel %vm1227, %v2563, 0.0
  %v2590 = vadd.f32 %v2588, %v2589
  %v2591 = vsel %vm1227, %v2564, 0.0
  %v2592 = vadd.f32 %v2590, %v2591
  %v2593 = vsel %vm1227, %v2565, 0.0
  %v2594 = vadd.f32 %v2592, %v2593
  %v2595 = vsel %vm1227, %v2566, 0.0
  %v2596 = vadd.f32 %v2594, %v2595
  %v2597 = vsel %vm1227, %v2567, 0.0
  %v2598 = vadd.f32 %v2596, %v2597
  %v2599 = vrot.slane %v2598, 4
  %v2600 = vadd.f32 %v2598, %v2599
  %v2601 = vrot.slane %v2600, 2
  %v2602 = vadd.f32 %v2600, %v2601
  %v2603 = vrot.slane %v2602, 1
  %v2604 = vadd.f32 %v2602, %v2603
  %v2605 = vadd.f32 %v1929, %v2604
  %s2606 = scalar_lea.vmem %s3, 8
  %2607 = vst.msk [vmem:[%s2606] sm:$0xff] %vm1227, %v2436
  %2608 = vst.msk [vmem:[%s2606 + $0x10] sm:$0xff] %vm1227, %v2441
  %2609 = vst.msk [vmem:[%s2606 + $0x20] sm:$0xff] %vm1227, %v2446
  %2610 = vst.msk [vmem:[%s2606 + $0x30] sm:$0xff] %vm1227, %v2451
  %2611 = vst.msk [vmem:[%s2606 + $0x40] sm:$0xff] %vm1227, %v2456
  %2612 = vst.msk [vmem:[%s2606 + $0x50] sm:$0xff] %vm1227, %v2461
  %2613 = vst.msk [vmem:[%s2606 + $0x60] sm:$0xff] %vm1227, %v2466
  %2614 = vst.msk [vmem:[%s2606 + $0x70] sm:$0xff] %vm1227, %v2471
  %2615 = vst.msk [vmem:[%s2606 + $0x80] sm:$0xff] %vm1227, %v2476
  %2616 = vst.msk [vmem:[%s2606 + $0x90] sm:$0xff] %vm1227, %v2481
  %2617 = vst.msk [vmem:[%s2606 + $0xa0] sm:$0xff] %vm1227, %v2486
  %2618 = vst.msk [vmem:[%s2606 + $0xb0] sm:$0xff] %vm1227, %v2491
  %2619 = vst.msk [vmem:[%s2606 + $0xc0] sm:$0xff] %vm1227, %v2496
  %2620 = vst.msk [vmem:[%s2606 + $0xd0] sm:$0xff] %vm1227, %v2501
  %2621 = vst.msk [vmem:[%s2606 + $0xe0] sm:$0xff] %vm1227, %v2506
  %2622 = vst.msk [vmem:[%s2606 + $0xf0] sm:$0xff] %vm1227, %v2511
  %v2623 = vld [vmem:[%s659 + $0x1] sm:$0xff]
  %v2624 = vld [vmem:[%s659 + $0x11] sm:$0xff]
  %v2625 = vld [vmem:[%s659 + $0x21] sm:$0xff]
  %v2626 = vld [vmem:[%s659 + $0x31] sm:$0xff]
  %v2627 = vld [vmem:[%s659 + $0x41] sm:$0xff]
  %v2628 = vld [vmem:[%s659 + $0x51] sm:$0xff]
  %v2629 = vld [vmem:[%s659 + $0x61] sm:$0xff]
  %v2630 = vld [vmem:[%s659 + $0x71] sm:$0xff]
  %v2631 = vld [vmem:[%s659 + $0xa1] sm:$0xff]
  %v2632 = vld [vmem:[%s659 + $0xb1] sm:$0xff]
  %v2633 = vld [vmem:[%s659 + $0xc1] sm:$0xff]
  %v2634 = vld [vmem:[%s659 + $0xd1] sm:$0xff]
  %v2635 = vld [vmem:[%s659 + $0xe1] sm:$0xff]
  %v2636 = vld [vmem:[%s659 + $0xf1] sm:$0xff]
  %v2637 = vld [vmem:[%s659 + $0x101] sm:$0xff]
  %v2638 = vld [vmem:[%s659 + $0x111] sm:$0xff]
  %v2639 = vld [vmem:[%s659 + $0x2] sm:$0xff]
  %v2640 = vld [vmem:[%s659 + $0x12] sm:$0xff]
  %v2641 = vld [vmem:[%s659 + $0x22] sm:$0xff]
  %v2642 = vld [vmem:[%s659 + $0x32] sm:$0xff]
  %v2643 = vld [vmem:[%s659 + $0x42] sm:$0xff]
  %v2644 = vld [vmem:[%s659 + $0x52] sm:$0xff]
  %v2645 = vld [vmem:[%s659 + $0x62] sm:$0xff]
  %v2646 = vld [vmem:[%s659 + $0x72] sm:$0xff]
  %v2647 = vld [vmem:[%s659 + $0xa2] sm:$0xff]
  %v2648 = vld [vmem:[%s659 + $0xb2] sm:$0xff]
  %v2649 = vld [vmem:[%s659 + $0xc2] sm:$0xff]
  %v2650 = vld [vmem:[%s659 + $0xd2] sm:$0xff]
  %v2651 = vld [vmem:[%s659 + $0xe2] sm:$0xff]
  %v2652 = vld [vmem:[%s659 + $0xf2] sm:$0xff]
  %v2653 = vld [vmem:[%s659 + $0x102] sm:$0xff]
  %v2654 = vld [vmem:[%s659 + $0x112] sm:$0xff]
  %v2655 = vld [vmem:[%s2043 + $0x1] sm:$0xff]
  %v2656 = vld [vmem:[%s2043 + $0x11] sm:$0xff]
  %v2657 = vld [vmem:[%s2043 + $0x21] sm:$0xff]
  %v2658 = vld [vmem:[%s2043 + $0x31] sm:$0xff]
  %v2659 = vld [vmem:[%s2043 + $0x41] sm:$0xff]
  %v2660 = vld [vmem:[%s2043 + $0x51] sm:$0xff]
  %v2661 = vld [vmem:[%s2043 + $0x61] sm:$0xff]
  %v2662 = vld [vmem:[%s2043 + $0x71] sm:$0xff]
  %v2663 = vld [vmem:[%s2043 + $0xa1] sm:$0xff]
  %v2664 = vld [vmem:[%s2043 + $0xb1] sm:$0xff]
  %v2665 = vld [vmem:[%s2043 + $0xc1] sm:$0xff]
  %v2666 = vld [vmem:[%s2043 + $0xd1] sm:$0xff]
  %v2667 = vld [vmem:[%s2043 + $0xe1] sm:$0xff]
  %v2668 = vld [vmem:[%s2043 + $0xf1] sm:$0xff]
  %v2669 = vld [vmem:[%s2043 + $0x101] sm:$0xff]
  %v2670 = vld [vmem:[%s2043 + $0x111] sm:$0xff]
  %v2671 = vld [vmem:[%s2043 + $0x2] sm:$0xff]
  %v2672 = vld [vmem:[%s2043 + $0x12] sm:$0xff]
  %v2673 = vld [vmem:[%s2043 + $0x22] sm:$0xff]
  %v2674 = vld [vmem:[%s2043 + $0x32] sm:$0xff]
  %v2675 = vld [vmem:[%s2043 + $0x42] sm:$0xff]
  %v2676 = vld [vmem:[%s2043 + $0x52] sm:$0xff]
  %v2677 = vld [vmem:[%s2043 + $0x62] sm:$0xff]
  %v2678 = vld [vmem:[%s2043 + $0x72] sm:$0xff]
  %v2679 = vld [vmem:[%s2043 + $0xa2] sm:$0xff]
  %v2680 = vld [vmem:[%s2043 + $0xb2] sm:$0xff]
  %v2681 = vld [vmem:[%s2043 + $0xc2] sm:$0xff]
  %v2682 = vld [vmem:[%s2043 + $0xd2] sm:$0xff]
  %v2683 = vld [vmem:[%s2043 + $0xe2] sm:$0xff]
  %v2684 = vld [vmem:[%s2043 + $0xf2] sm:$0xff]
  %v2685 = vld [vmem:[%s2043 + $0x102] sm:$0xff]
  %v2686 = vld [vmem:[%s2043 + $0x112] sm:$0xff]
  %2703 = vrot.lane.b32.xlu0 %v2639, 8
  %v2704 = vpop.permute.xlu0 %2703
  %2705 = vrot.lane.b32.xlu0 %v2640, 8
  %v2706 = vpop.permute.xlu0 %2705
  %2707 = vrot.lane.b32.xlu0 %v2641, 8
  %v2708 = vpop.permute.xlu0 %2707
  %2709 = vrot.lane.b32.xlu0 %v2642, 8
  %v2710 = vpop.permute.xlu0 %2709
  %2711 = vrot.lane.b32.xlu0 %v2643, 8
  %v2712 = vpop.permute.xlu0 %2711
  %2713 = vrot.lane.b32.xlu0 %v2644, 8
  %v2714 = vpop.permute.xlu0 %2713
  %2715 = vrot.lane.b32.xlu0 %v2645, 8
  %v2716 = vpop.permute.xlu0 %2715
  %2717 = vrot.lane.b32.xlu0 %v2646, 8
  %v2718 = vpop.permute.xlu0 %2717
  %2719 = vrot.lane.b32.xlu0 %v2647, 8
  %v2720 = vpop.permute.xlu0 %2719
  %2721 = vrot.lane.b32.xlu0 %v2648, 8
  %v2722 = vpop.permute.xlu0 %2721
  %2723 = vrot.lane.b32.xlu0 %v2649, 8
  %v2724 = vpop.permute.xlu0 %2723
  %2725 = vrot.lane.b32.xlu0 %v2650, 8
  %v2726 = vpop.permute.xlu0 %2725
  %2727 = vrot.lane.b32.xlu0 %v2651, 8
  %v2728 = vpop.permute.xlu0 %2727
  %2729 = vrot.lane.b32.xlu0 %v2652, 8
  %v2730 = vpop.permute.xlu0 %2729
  %2731 = vrot.lane.b32.xlu0 %v2653, 8
  %v2732 = vpop.permute.xlu0 %2731
  %2733 = vrot.lane.b32.xlu0 %v2654, 8
  %v2734 = vpop.permute.xlu0 %2733
  %2767 = vrot.lane.b32.xlu0 %v2655, 16
  %v2768 = vpop.permute.xlu0 %2767
  %2769 = vrot.lane.b32.xlu0 %v2656, 16
  %v2770 = vpop.permute.xlu0 %2769
  %2771 = vrot.lane.b32.xlu0 %v2657, 16
  %v2772 = vpop.permute.xlu0 %2771
  %2773 = vrot.lane.b32.xlu0 %v2658, 16
  %v2774 = vpop.permute.xlu0 %2773
  %2775 = vrot.lane.b32.xlu0 %v2659, 16
  %v2776 = vpop.permute.xlu0 %2775
  %2777 = vrot.lane.b32.xlu0 %v2660, 16
  %v2778 = vpop.permute.xlu0 %2777
  %2779 = vrot.lane.b32.xlu0 %v2661, 16
  %v2780 = vpop.permute.xlu0 %2779
  %2781 = vrot.lane.b32.xlu0 %v2662, 16
  %v2782 = vpop.permute.xlu0 %2781
  %2783 = vrot.lane.b32.xlu0 %v2663, 16
  %v2784 = vpop.permute.xlu0 %2783
  %2785 = vrot.lane.b32.xlu0 %v2664, 16
  %v2786 = vpop.permute.xlu0 %2785
  %2787 = vrot.lane.b32.xlu0 %v2665, 16
  %v2788 = vpop.permute.xlu0 %2787
  %2789 = vrot.lane.b32.xlu0 %v2666, 16
  %v2790 = vpop.permute.xlu0 %2789
  %2791 = vrot.lane.b32.xlu0 %v2667, 16
  %v2792 = vpop.permute.xlu0 %2791
  %2793 = vrot.lane.b32.xlu0 %v2668, 16
  %v2794 = vpop.permute.xlu0 %2793
  %2795 = vrot.lane.b32.xlu0 %v2669, 16
  %v2796 = vpop.permute.xlu0 %2795
  %2797 = vrot.lane.b32.xlu0 %v2670, 16
  %v2798 = vpop.permute.xlu0 %2797
  %2831 = vrot.lane.b32.xlu0 %v2671, 24
  %v2832 = vpop.permute.xlu0 %2831
  %2833 = vrot.lane.b32.xlu0 %v2672, 24
  %v2834 = vpop.permute.xlu0 %2833
  %2835 = vrot.lane.b32.xlu0 %v2673, 24
  %v2836 = vpop.permute.xlu0 %2835
  %2837 = vrot.lane.b32.xlu0 %v2674, 24
  %v2838 = vpop.permute.xlu0 %2837
  %2839 = vrot.lane.b32.xlu0 %v2675, 24
  %v2840 = vpop.permute.xlu0 %2839
  %2841 = vrot.lane.b32.xlu0 %v2676, 24
  %v2842 = vpop.permute.xlu0 %2841
  %2843 = vrot.lane.b32.xlu0 %v2677, 24
  %v2844 = vpop.permute.xlu0 %2843
  %2845 = vrot.lane.b32.xlu0 %v2678, 24
  %v2846 = vpop.permute.xlu0 %2845
  %2847 = vrot.lane.b32.xlu0 %v2679, 24
  %v2848 = vpop.permute.xlu0 %2847
  %2849 = vrot.lane.b32.xlu0 %v2680, 24
  %v2850 = vpop.permute.xlu0 %2849
  %2851 = vrot.lane.b32.xlu0 %v2681, 24
  %v2852 = vpop.permute.xlu0 %2851
  %2853 = vrot.lane.b32.xlu0 %v2682, 24
  %v2854 = vpop.permute.xlu0 %2853
  %2855 = vrot.lane.b32.xlu0 %v2683, 24
  %v2856 = vpop.permute.xlu0 %2855
  %2857 = vrot.lane.b32.xlu0 %v2684, 24
  %v2858 = vpop.permute.xlu0 %2857
  %2859 = vrot.lane.b32.xlu0 %v2685, 24
  %v2860 = vpop.permute.xlu0 %2859
  %2861 = vrot.lane.b32.xlu0 %v2686, 24
  %v2862 = vpop.permute.xlu0 %2861
  %v2879 = vsel %vm648, %v2623, %v2704
  %v2880 = vsel %vm648, %v2624, %v2706
  %v2881 = vsel %vm648, %v2625, %v2708
  %v2882 = vsel %vm648, %v2626, %v2710
  %v2883 = vsel %vm648, %v2627, %v2712
  %v2884 = vsel %vm648, %v2628, %v2714
  %v2885 = vsel %vm648, %v2629, %v2716
  %v2886 = vsel %vm648, %v2630, %v2718
  %v2887 = vsel %vm648, %v2631, %v2720
  %v2888 = vsel %vm648, %v2632, %v2722
  %v2889 = vsel %vm648, %v2633, %v2724
  %v2890 = vsel %vm648, %v2634, %v2726
  %v2891 = vsel %vm648, %v2635, %v2728
  %v2892 = vsel %vm648, %v2636, %v2730
  %v2893 = vsel %vm648, %v2637, %v2732
  %v2894 = vsel %vm648, %v2638, %v2734
  %v2895 = vsel %vm395, %v2879, %v2768
  %v2896 = vsel %vm395, %v2880, %v2770
  %v2897 = vsel %vm395, %v2881, %v2772
  %v2898 = vsel %vm395, %v2882, %v2774
  %v2899 = vsel %vm395, %v2883, %v2776
  %v2900 = vsel %vm395, %v2884, %v2778
  %v2901 = vsel %vm395, %v2885, %v2780
  %v2902 = vsel %vm395, %v2886, %v2782
  %v2903 = vsel %vm395, %v2887, %v2784
  %v2904 = vsel %vm395, %v2888, %v2786
  %v2905 = vsel %vm395, %v2889, %v2788
  %v2906 = vsel %vm395, %v2890, %v2790
  %v2907 = vsel %vm395, %v2891, %v2792
  %v2908 = vsel %vm395, %v2892, %v2794
  %v2909 = vsel %vm395, %v2893, %v2796
  %v2910 = vsel %vm395, %v2894, %v2798
  %v2911 = vsel %vm1013, %v2895, %v2832
  %v2912 = vsel %vm1013, %v2896, %v2834
  %v2913 = vsel %vm1013, %v2897, %v2836
  %v2914 = vsel %vm1013, %v2898, %v2838
  %v2915 = vsel %vm1013, %v2899, %v2840
  %v2916 = vsel %vm1013, %v2900, %v2842
  %v2917 = vsel %vm1013, %v2901, %v2844
  %v2918 = vsel %vm1013, %v2902, %v2846
  %v2919 = vsel %vm1013, %v2903, %v2848
  %v2920 = vsel %vm1013, %v2904, %v2850
  %v2921 = vsel %vm1013, %v2905, %v2852
  %v2922 = vsel %vm1013, %v2906, %v2854
  %v2923 = vsel %vm1013, %v2907, %v2856
  %v2924 = vsel %vm1013, %v2908, %v2858
  %v2925 = vsel %vm1013, %v2909, %v2860
  %v2926 = vsel %vm1013, %v2910, %v2862
  %s2927 = scalar_lea.vmem %s2, 96
  %v2928 = vld [vmem:[%s2927] sm:$0xff]
  %v2929 = vld [vmem:[%s2927 + $0x8] sm:$0xff]
  %v2930 = vld [vmem:[%s2927 + $0x10] sm:$0xff]
  %v2931 = vld [vmem:[%s2927 + $0x18] sm:$0xff]
  %v2933 = vsel %vm412, %v2911, 0
  %v2936 = vsel %vm412, %v2912, 0
  %v2939 = vsel %vm412, %v2913, 0
  %v2942 = vsel %vm412, %v2914, 0
  %v2945 = vsel %vm412, %v2915, 0
  %v2948 = vsel %vm412, %v2916, 0
  %v2951 = vsel %vm412, %v2917, 0
  %v2954 = vsel %vm412, %v2918, 0
  %v2957 = vsel %vm412, %v2919, 0
  %v2960 = vsel %vm412, %v2920, 0
  %v2963 = vsel %vm412, %v2921, 0
  %v2966 = vsel %vm412, %v2922, 0
  %v2969 = vsel %vm412, %v2923, 0
  %v2972 = vsel %vm412, %v2924, 0
  %v2975 = vsel %vm412, %v2925, 0
  %v2978 = vsel %vm412, %v2926, 0
  %2980 = vmatprep.subr.mxu0 0.0
  %2981 = vmatpush1.msra.mxu0 %v2928
  %2982 = vmatprep.subr.mxu0 0.0
  %2983 = vmatpush1.msra.mxu0 %v2929
  %2984 = vmatprep.subr.mxu0 0.0
  %2985 = vmatpush1.msra.mxu0 %v2930
  %2986 = vmatprep.subr.mxu0 0.0
  %2987 = vmatpush1.msra.mxu0 %v2931
  %2988 = vmatprep.subr.mxu0 0.0
  %2989 = vmatpush1.msra.mxu0 0.0
  %2990 = vmatprep.subr.mxu0 0.0
  %2991 = vmatpush1.msra.mxu0 0.0
  %2992 = vmatprep.subr.mxu0 0.0
  %2993 = vmatpush1.msra.mxu0 0.0
  %2994 = vmatprep.subr.mxu0 0.0
  %2995 = vmatpush1.msra.mxu0 0.0
  %2996 = vmatprep.subr.mxu0 0.0
  %2997 = vmatpush1.msra.mxu0 0.0
  %2998 = vmatprep.subr.mxu0 0.0
  %2999 = vmatpush1.msra.mxu0 0.0
  %3000 = vmatprep.subr.mxu0 0.0
  %3001 = vmatpush1.msra.mxu0 0.0
  %3002 = vmatprep.subr.mxu0 0.0
  %3003 = vmatpush1.msra.mxu0 0.0
  %3004 = vmatprep.subr.mxu0 0.0
  %3005 = vmatpush1.msra.mxu0 0.0
  %3006 = vmatprep.subr.mxu0 0.0
  %3007 = vmatpush1.msra.mxu0 0.0
  %3008 = vmatprep.subr.mxu0 0.0
  %3009 = vmatpush1.msra.mxu0 0.0
  %3010 = vmatprep.subr.mxu0 0.0
  %3011 = vmatpush1.msra.mxu0 0.0
  %3012 = vmatprep.subr.mxu0 0.0
  %3013 = vmatpush1.msra.mxu0 0.0
  %3014 = vmatprep.subr.mxu0 0.0
  %3015 = vmatpush1.msra.mxu0 0.0
  %3016 = vmatprep.subr.mxu0 0.0
  %3017 = vmatpush1.msra.mxu0 0.0
  %3018 = vmatprep.subr.mxu0 0.0
  %3019 = vmatpush1.msra.mxu0 0.0
  %3020 = vmatprep.subr.mxu0 0.0
  %3021 = vmatpush1.msra.mxu0 0.0
  %3022 = vmatprep.subr.mxu0 0.0
  %3023 = vmatpush1.msra.mxu0 0.0
  %3024 = vmatprep.subr.mxu0 0.0
  %3025 = vmatpush1.msra.mxu0 0.0
  %3026 = vmatprep.subr.mxu0 0.0
  %3027 = vmatpush1.msra.mxu0 0.0
  %3028 = vmatprep.subr.mxu0 0.0
  %3029 = vmatpush1.msra.mxu0 0.0
  %3030 = vmatprep.subr.mxu0 0.0
  %3031 = vmatpush1.msra.mxu0 0.0
  %3032 = vmatprep.subr.mxu0 0.0
  %3033 = vmatpush1.msra.mxu0 0.0
  %3034 = vmatprep.subr.mxu0 0.0
  %3035 = vmatpush1.msra.mxu0 0.0
  %3036 = vmatprep.subr.mxu0 0.0
  %3037 = vmatpush1.msra.mxu0 0.0
  %3038 = vmatprep.subr.mxu0 0.0
  %3039 = vmatpush1.msra.mxu0 0.0
  %3040 = vmatprep.subr.mxu0 0.0
  %3041 = vmatpush1.msra.mxu0 0.0
  %3042 = vmatprep.subr.mxu0 0.0
  %3043 = vmatpush1.msra.mxu0 0.0
  %3044 = vmatprep.mubr.f32.mxu0 0.0
  %3045 = vmatmul.mubr.f32.gmra.mrb[0].mxu0 %v2933
  %v3046 = vpop.f32.mrb[0].mxu0
  %v3047 = vadd.f32 0.0, %v3046
  %v3048 = vpop.f32.mrb[0].mxu0
  %3049 = vmatprep.mubr.f32.mxu0 0.0
  %3050 = vmatmul.mubr.f32.gmra.mrb[0].mxu0 %v2936
  %v3051 = vpop.f32.mrb[0].mxu0
  %v3052 = vadd.f32 0.0, %v3051
  %v3053 = vpop.f32.mrb[0].mxu0
  %3054 = vmatprep.mubr.f32.mxu0 0.0
  %3055 = vmatmul.mubr.f32.gmra.mrb[0].mxu0 %v2939
  %v3056 = vpop.f32.mrb[0].mxu0
  %v3057 = vadd.f32 0.0, %v3056
  %v3058 = vpop.f32.mrb[0].mxu0
  %3059 = vmatprep.mubr.f32.mxu0 0.0
  %3060 = vmatmul.mubr.f32.gmra.mrb[0].mxu0 %v2942
  %v3061 = vpop.f32.mrb[0].mxu0
  %v3062 = vadd.f32 0.0, %v3061
  %v3063 = vpop.f32.mrb[0].mxu0
  %3064 = vmatprep.mubr.f32.mxu0 0.0
  %3065 = vmatmul.mubr.f32.gmra.mrb[0].mxu0 %v2945
  %v3066 = vpop.f32.mrb[0].mxu0
  %v3067 = vadd.f32 0.0, %v3066
  %v3068 = vpop.f32.mrb[0].mxu0
  %3069 = vmatprep.mubr.f32.mxu0 0.0
  %3070 = vmatmul.mubr.f32.gmra.mrb[0].mxu0 %v2948
  %v3071 = vpop.f32.mrb[0].mxu0
  %v3072 = vadd.f32 0.0, %v3071
  %v3073 = vpop.f32.mrb[0].mxu0
  %3074 = vmatprep.mubr.f32.mxu0 0.0
  %3075 = vmatmul.mubr.f32.gmra.mrb[0].mxu0 %v2951
  %v3076 = vpop.f32.mrb[0].mxu0
  %v3077 = vadd.f32 0.0, %v3076
  %v3078 = vpop.f32.mrb[0].mxu0
  %3079 = vmatprep.mubr.f32.mxu0 0.0
  %3080 = vmatmul.mubr.f32.gmra.mrb[0].mxu0 %v2954
  %v3081 = vpop.f32.mrb[0].mxu0
  %v3082 = vadd.f32 0.0, %v3081
  %v3083 = vpop.f32.mrb[0].mxu0
  %3084 = vmatprep.mubr.f32.mxu0 0.0
  %3085 = vmatmul.mubr.f32.gmra.mrb[0].mxu0 %v2957
  %v3086 = vpop.f32.mrb[0].mxu0
  %v3087 = vadd.f32 0.0, %v3086
  %v3088 = vpop.f32.mrb[0].mxu0
  %3089 = vmatprep.mubr.f32.mxu0 0.0
  %3090 = vmatmul.mubr.f32.gmra.mrb[0].mxu0 %v2960
  %v3091 = vpop.f32.mrb[0].mxu0
  %v3092 = vadd.f32 0.0, %v3091
  %v3093 = vpop.f32.mrb[0].mxu0
  %3094 = vmatprep.mubr.f32.mxu0 0.0
  %3095 = vmatmul.mubr.f32.gmra.mrb[0].mxu0 %v2963
  %v3096 = vpop.f32.mrb[0].mxu0
  %v3097 = vadd.f32 0.0, %v3096
  %v3098 = vpop.f32.mrb[0].mxu0
  %3099 = vmatprep.mubr.f32.mxu0 0.0
  %3100 = vmatmul.mubr.f32.gmra.mrb[0].mxu0 %v2966
  %v3101 = vpop.f32.mrb[0].mxu0
  %v3102 = vadd.f32 0.0, %v3101
  %v3103 = vpop.f32.mrb[0].mxu0
  %3104 = vmatprep.mubr.f32.mxu0 0.0
  %3105 = vmatmul.mubr.f32.gmra.mrb[0].mxu0 %v2969
  %v3106 = vpop.f32.mrb[0].mxu0
  %v3107 = vadd.f32 0.0, %v3106
  %v3108 = vpop.f32.mrb[0].mxu0
  %3109 = vmatprep.mubr.f32.mxu0 0.0
  %3110 = vmatmul.mubr.f32.gmra.mrb[0].mxu0 %v2972
  %v3111 = vpop.f32.mrb[0].mxu0
  %v3112 = vadd.f32 0.0, %v3111
  %v3113 = vpop.f32.mrb[0].mxu0
  %3114 = vmatprep.mubr.f32.mxu0 0.0
  %3115 = vmatmul.mubr.f32.gmra.mrb[0].mxu0 %v2975
  %v3116 = vpop.f32.mrb[0].mxu0
  %v3117 = vadd.f32 0.0, %v3116
  %v3118 = vpop.f32.mrb[0].mxu0
  %3119 = vmatprep.mubr.f32.mxu0 0.0
  %3120 = vmatmul.mubr.f32.gmra.mrb[0].mxu0 %v2978
  %v3121 = vpop.f32.mrb[0].mxu0
  %v3122 = vadd.f32 0.0, %v3121
  %v3123 = vpop.f32.mrb[0].mxu0
  %3124 = vdwg.mxu0
  %v3125 = vsel %vm1227, %v3047, 0.0
  %v3126 = vsel %vm1227, %v3052, 0.0
  %v3127 = vadd.f32 %v3125, %v3126
  %v3128 = vsel %vm1227, %v3057, 0.0
  %v3129 = vadd.f32 %v3127, %v3128
  %v3130 = vsel %vm1227, %v3062, 0.0
  %v3131 = vadd.f32 %v3129, %v3130
  %v3132 = vsel %vm1227, %v3067, 0.0
  %v3133 = vadd.f32 %v3131, %v3132
  %v3134 = vsel %vm1227, %v3072, 0.0
  %v3135 = vadd.f32 %v3133, %v3134
  %v3136 = vsel %vm1227, %v3077, 0.0
  %v3137 = vadd.f32 %v3135, %v3136
  %v3138 = vsel %vm1227, %v3082, 0.0
  %v3139 = vadd.f32 %v3137, %v3138
  %v3140 = vsel %vm1227, %v3087, 0.0
  %v3141 = vadd.f32 %v3139, %v3140
  %v3142 = vsel %vm1227, %v3092, 0.0
  %v3143 = vadd.f32 %v3141, %v3142
  %v3144 = vsel %vm1227, %v3097, 0.0
  %v3145 = vadd.f32 %v3143, %v3144
  %v3146 = vsel %vm1227, %v3102, 0.0
  %v3147 = vadd.f32 %v3145, %v3146
  %v3148 = vsel %vm1227, %v3107, 0.0
  %v3149 = vadd.f32 %v3147, %v3148
  %v3150 = vsel %vm1227, %v3112, 0.0
  %v3151 = vadd.f32 %v3149, %v3150
  %v3152 = vsel %vm1227, %v3117, 0.0
  %v3153 = vadd.f32 %v3151, %v3152
  %v3154 = vsel %vm1227, %v3122, 0.0
  %v3155 = vadd.f32 %v3153, %v3154
  %v3156 = vrot.slane %v3155, 4
  %v3157 = vadd.f32 %v3155, %v3156
  %v3158 = vrot.slane %v3157, 2
  %v3159 = vadd.f32 %v3157, %v3158
  %v3160 = vrot.slane %v3159, 1
  %v3161 = vadd.f32 %v3159, %v3160
  %v3162 = vadd.f32 %v2551, %v3161
  %v3163 = vmul.f32 %v3047, %v3047
  %v3164 = vmul.f32 %v3052, %v3052
  %v3165 = vmul.f32 %v3057, %v3057
  %v3166 = vmul.f32 %v3062, %v3062
  %v3167 = vmul.f32 %v3067, %v3067
  %v3168 = vmul.f32 %v3072, %v3072
  %v3169 = vmul.f32 %v3077, %v3077
  %v3170 = vmul.f32 %v3082, %v3082
  %v3171 = vmul.f32 %v3087, %v3087
  %v3172 = vmul.f32 %v3092, %v3092
  %v3173 = vmul.f32 %v3097, %v3097
  %v3174 = vmul.f32 %v3102, %v3102
  %v3175 = vmul.f32 %v3107, %v3107
  %v3176 = vmul.f32 %v3112, %v3112
  %v3177 = vmul.f32 %v3117, %v3117
  %v3178 = vmul.f32 %v3122, %v3122
  %v3179 = vsel %vm1227, %v3163, 0.0
  %v3180 = vsel %vm1227, %v3164, 0.0
  %v3181 = vadd.f32 %v3179, %v3180
  %v3182 = vsel %vm1227, %v3165, 0.0
  %v3183 = vadd.f32 %v3181, %v3182
  %v3184 = vsel %vm1227, %v3166, 0.0
  %v3185 = vadd.f32 %v3183, %v3184
  %v3186 = vsel %vm1227, %v3167, 0.0
  %v3187 = vadd.f32 %v3185, %v3186
  %v3188 = vsel %vm1227, %v3168, 0.0
  %v3189 = vadd.f32 %v3187, %v3188
  %v3190 = vsel %vm1227, %v3169, 0.0
  %v3191 = vadd.f32 %v3189, %v3190
  %v3192 = vsel %vm1227, %v3170, 0.0
  %v3193 = vadd.f32 %v3191, %v3192
  %v3194 = vsel %vm1227, %v3171, 0.0
  %v3195 = vadd.f32 %v3193, %v3194
  %v3196 = vsel %vm1227, %v3172, 0.0
  %v3197 = vadd.f32 %v3195, %v3196
  %v3198 = vsel %vm1227, %v3173, 0.0
  %v3199 = vadd.f32 %v3197, %v3198
  %v3200 = vsel %vm1227, %v3174, 0.0
  %v3201 = vadd.f32 %v3199, %v3200
  %v3202 = vsel %vm1227, %v3175, 0.0
  %v3203 = vadd.f32 %v3201, %v3202
  %v3204 = vsel %vm1227, %v3176, 0.0
  %v3205 = vadd.f32 %v3203, %v3204
  %v3206 = vsel %vm1227, %v3177, 0.0
  %v3207 = vadd.f32 %v3205, %v3206
  %v3208 = vsel %vm1227, %v3178, 0.0
  %v3209 = vadd.f32 %v3207, %v3208
  %v3210 = vrot.slane %v3209, 4
  %v3211 = vadd.f32 %v3209, %v3210
  %v3212 = vrot.slane %v3211, 2
  %v3213 = vadd.f32 %v3211, %v3212
  %v3214 = vrot.slane %v3213, 1
  %v3215 = vadd.f32 %v3213, %v3214
  %v3216 = vadd.f32 %v2605, %v3215
  %3233 = vrot.lane.b32.xlu0 %v3047, 4
  %v3234 = vpop.permute.xlu0 %3233
  %3235 = vrot.lane.b32.xlu0 %v3052, 4
  %v3236 = vpop.permute.xlu0 %3235
  %3237 = vrot.lane.b32.xlu0 %v3057, 4
  %v3238 = vpop.permute.xlu0 %3237
  %3239 = vrot.lane.b32.xlu0 %v3062, 4
  %v3240 = vpop.permute.xlu0 %3239
  %3241 = vrot.lane.b32.xlu0 %v3067, 4
  %v3242 = vpop.permute.xlu0 %3241
  %3243 = vrot.lane.b32.xlu0 %v3072, 4
  %v3244 = vpop.permute.xlu0 %3243
  %3245 = vrot.lane.b32.xlu0 %v3077, 4
  %v3246 = vpop.permute.xlu0 %3245
  %3247 = vrot.lane.b32.xlu0 %v3082, 4
  %v3248 = vpop.permute.xlu0 %3247
  %3249 = vrot.lane.b32.xlu0 %v3087, 4
  %v3250 = vpop.permute.xlu0 %3249
  %3251 = vrot.lane.b32.xlu0 %v3092, 4
  %v3252 = vpop.permute.xlu0 %3251
  %3253 = vrot.lane.b32.xlu0 %v3097, 4
  %v3254 = vpop.permute.xlu0 %3253
  %3255 = vrot.lane.b32.xlu0 %v3102, 4
  %v3256 = vpop.permute.xlu0 %3255
  %3257 = vrot.lane.b32.xlu0 %v3107, 4
  %v3258 = vpop.permute.xlu0 %3257
  %3259 = vrot.lane.b32.xlu0 %v3112, 4
  %v3260 = vpop.permute.xlu0 %3259
  %3261 = vrot.lane.b32.xlu0 %v3117, 4
  %v3262 = vpop.permute.xlu0 %3261
  %3263 = vrot.lane.b32.xlu0 %v3122, 4
  %v3264 = vpop.permute.xlu0 %3263
  %3281 = vst.msk [vmem:[%s2606] sm:$0xff] %vm1994, %v3234
  %3282 = vst.msk [vmem:[%s2606 + $0x10] sm:$0xff] %vm1994, %v3236
  %3283 = vst.msk [vmem:[%s2606 + $0x20] sm:$0xff] %vm1994, %v3238
  %3284 = vst.msk [vmem:[%s2606 + $0x30] sm:$0xff] %vm1994, %v3240
  %3285 = vst.msk [vmem:[%s2606 + $0x40] sm:$0xff] %vm1994, %v3242
  %3286 = vst.msk [vmem:[%s2606 + $0x50] sm:$0xff] %vm1994, %v3244
  %3287 = vst.msk [vmem:[%s2606 + $0x60] sm:$0xff] %vm1994, %v3246
  %3288 = vst.msk [vmem:[%s2606 + $0x70] sm:$0xff] %vm1994, %v3248
  %3289 = vst.msk [vmem:[%s2606 + $0x80] sm:$0xff] %vm1994, %v3250
  %3290 = vst.msk [vmem:[%s2606 + $0x90] sm:$0xff] %vm1994, %v3252
  %3291 = vst.msk [vmem:[%s2606 + $0xa0] sm:$0xff] %vm1994, %v3254
  %3292 = vst.msk [vmem:[%s2606 + $0xb0] sm:$0xff] %vm1994, %v3256
  %3293 = vst.msk [vmem:[%s2606 + $0xc0] sm:$0xff] %vm1994, %v3258
  %3294 = vst.msk [vmem:[%s2606 + $0xd0] sm:$0xff] %vm1994, %v3260
  %3295 = vst.msk [vmem:[%s2606 + $0xe0] sm:$0xff] %vm1994, %v3262
  %3296 = vst.msk [vmem:[%s2606 + $0xf0] sm:$0xff] %vm1994, %v3264
  %vm3297 = vcmask 1040384
  %v3298 = vsel %vm3297, %v3162, %v3216
  %vm3299 = vcmask 25600
  %3300 = vst.msk [vmem:[%s4] sm:$0x3] %vm3299, %v3298
  // Predicated region
  $region14: #{unet_block_forward.2} parent=0 // pred_check
    _
  $region15: #{unet_block_forward.2} parent=0 // pred_check_branch
    %3302 = sbr.rel (0) target = $region17
  $region16: #{unet_block_forward.2} parent=0 // pred_region
    _
  $region17: #{unet_block_forward.2} parent=0 // pred_fallthru
    _
  // Predicated region
  $region18: #{unet_block_forward.2} parent=0 // pred_check
    _
  $region19: #{unet_block_forward.2} parent=0 // pred_check_branch
    %3304 = sbr.rel (0) target = $region21
  $region20: #{unet_block_forward.2} parent=0 // pred_region
    _
  $region21: #{unet_block_forward.2} parent=0 // pred_fallthru
    _
  // Predicated region
  $region22: #{unet_block_forward.2} parent=0 // pred_check
    _
  $region23: #{unet_block_forward.2} parent=0 // pred_check_branch
    %3306 = sbr.rel (0) target = $region25
  $region24: #{unet_block_forward.2} parent=0 // pred_region
    _
  $region25: #{unet_block_forward.2} parent=0 // pred_fallthru
    _
  // Predicated region
  $region26: #{unet_block_forward.2} parent=0 // pred_check
    _
  $region27: #{unet_block_forward.2} parent=0 // pred_check_branch
    %3308 = sbr.rel (0) target = $region29
  $region28: #{unet_block_forward.2} parent=0 // pred_region
    _
  $region29: #{unet_block_forward.2} parent=0 // pred_fallthru
    _

</llo_original>
